<compile_context>
chip_gen: v6e
topology: v6e:2x2x1
jax: 0.10.0
libtpu: 0.0.40
codegen_flags: <defaults>
</compile_context>

<pallas_src>
import functools

import numpy as np
import jax
import jax.numpy as jnp
from jax.experimental import pallas as pl
from jax.experimental.pallas import tpu as pltpu


def _round_up(x, m):
    return (x + m - 1) // m * m


# ----------------------------------------------------------------------------
# Module config / deterministic parameter init (mirrors __init__)
# ----------------------------------------------------------------------------
def get_2d_padding(kernel_size, dilation=(1, 1)):
    return ((kernel_size[0] - 1) * dilation[0] // 2,
            (kernel_size[1] - 1) * dilation[1] // 2)


def build_layer_cfgs(cfg):
    filters = cfg["filters"]
    fs, mf = cfg["filters_scale"], cfg["max_filters"]
    k = cfg["kernel_size"]
    stride = cfg["stride"]
    dilations = cfg["dilations"]
    spec_channels = 2 * cfg["in_channels"]

    layers = [dict(cin=spec_channels, cout=filters, k=k, stride=(1, 1),
                   dil=(1, 1), pad=get_2d_padding(k))]
    in_chs = min(fs * filters, mf)
    for i, d in enumerate(dilations):
        out_chs = min(fs ** (i + 1) * filters, mf)
        layers.append(dict(cin=in_chs, cout=out_chs, k=k, stride=stride,
                           dil=(d, 1), pad=get_2d_padding(k, (d, 1))))
        in_chs = out_chs
    out_chs = min(fs ** (len(dilations) + 1) * filters, mf)
    layers.append(dict(cin=in_chs, cout=out_chs, k=(k[0], k[0]), stride=(1, 1),
                       dil=(1, 1), pad=get_2d_padding((k[0], k[0]))))
    conv_post = dict(cin=out_chs, cout=cfg["out_channels"], k=(k[0], k[0]),
                     stride=(1, 1), dil=(1, 1),
                     pad=get_2d_padding((k[0], k[0])))
    return layers, conv_post


def init_raw_params(key, cfg):
    layers, conv_post = build_layer_cfgs(cfg)
    out = []
    for lc in layers + [conv_post]:
        key, kw_, kb_ = jax.random.split(key, 3)
        kH, kW = lc["k"]
        w = 0.1 * jax.random.normal(kw_, (lc["cout"], lc["cin"], kH, kW),
                                    dtype=jnp.float32)
        b = 0.01 * jax.random.normal(kb_, (lc["cout"],), dtype=jnp.float32)
        out.append(dict(w=w, b=b, **lc))
    return out[:-1], out[-1]


# ----------------------------------------------------------------------------
# One-time weight preparation
#   * DFT basis with window + normalization folded in, re/im interleaved per
#     frequency, lane-padded to a multiple of 128.
#   * Per-conv freq-banded GEMM weight with the kH time taps folded into K:
#     (kH*pad128(W_in*Cin), pad128(Wout*Cout)) bf16, plus a bias row.
# ----------------------------------------------------------------------------
def build_stft_basis(cfg):
    n_fft, win_length, hop = cfg["n_fft"], cfg["win_length"], cfg["hop_length"]
    assert win_length == n_fft, "TODO(synk): win_length < n_fft not supported"
    assert n_fft % hop == 0, "TODO(synk): in-kernel framing assumes hop | n_fft"
    n = np.arange(n_fft, dtype=np.float64)
    win = 0.5 - 0.5 * np.cos(2.0 * np.pi * n / win_length)   # periodic Hann
    F = n_fft // 2 + 1
    f = np.arange(F, dtype=np.float64)
    ang = 2.0 * np.pi * np.outer(n, f) / n_fft
    basis = np.zeros((n_fft, 2 * F), np.float64)
    basis[:, 0::2] = np.cos(ang)            # real part
    basis[:, 1::2] = -np.sin(ang)           # imag part
    basis *= win[:, None]                   # fold Hann window into the basis
    if cfg["normalized"]:
        basis /= np.sqrt(np.sum(win ** 2))  # torchaudio normalized='window'
    Npad = _round_up(2 * F, 128)
    out = np.zeros((n_fft, Npad), np.float32)
    out[:, :2 * F] = basis
    return dict(basis=jnp.asarray(out), F=F, Npad=Npad)


def prepare_params(raw_layers, raw_post, cfg, stft_pack):
    """Returns (static config, device weights) for the fused kernel."""
    F = stft_pack["F"]
    Ca = cfg["in_channels"]
    assert Ca == 1, "TODO(synk): multi-channel audio path not fused"
    in_cols = _round_up(2 * F * Ca, 128)     # == STFT Npad
    assert in_cols == stft_pack["Npad"]
    W_in = F

    layer_static, bands, biases = [], [], []
    for lc in raw_layers + [raw_post]:
        kH, kW = lc["k"]
        sH, sW = lc["stride"]
        dH, dW = lc["dil"]
        pH, pW = lc["pad"]
        assert sH == 1, "TODO(synk): non-unit time stride not supported"
        Cin, Cout = lc["cin"], lc["cout"]
        Wp = W_in + 2 * pW
        Wout = (Wp - dW * (kW - 1) - 1) // sW + 1
        out_cols = Wout * Cout
        out_cols_pad = _round_up(out_cols, 128)

        w_np = np.asarray(lc["w"], np.float32)       # (Cout, Cin, kH, kW)
        b_np = np.asarray(lc["b"], np.float32)
        band = np.zeros((kH, in_cols, out_cols_pad), np.float32)
        for kw in range(kW):
            blk = np.transpose(w_np[:, :, :, kw], (2, 1, 0))   # (kH, Cin, Cout)
            for wo in range(Wout):
                wi = wo * sW + kw * dW - pW          # zero-padding in freq
                if 0 <= wi < W_in:
                    band[:, wi * Cin:(wi + 1) * Cin,
                         wo * Cout:(wo + 1) * Cout] = blk
        band2d = band.reshape(kH * in_cols, out_cols_pad)   # fold kH into K
        bias = np.zeros((1, out_cols_pad), np.float32)
        bias[0, :out_cols] = np.tile(b_np, Wout)

        bands.append(jnp.asarray(band2d).astype(jnp.bfloat16))
        biases.append(jnp.asarray(bias))
        layer_static.append(dict(kH=kH, dH=dH, pH=pH, Wout=Wout, Cout=Cout,
                                 out_cols=out_cols, Ncols=out_cols_pad,
                                 Kcols=in_cols))
        in_cols = out_cols_pad
        W_in = Wout

    static = dict(layers=tuple(layer_static), Npad=stft_pack["Npad"], F=F)
    weights = dict(basis=stft_pack["basis"], bands=bands, biases=biases)
    return static, weights


# ----------------------------------------------------------------------------
# Fused Pallas kernel: STFT + all conv layers for one batch sample.
# refs = (x, basis, band0..band_{n-1}, bias0..bias_{n-1},
#         fmap0..fmap_{n-2}, z)
# ----------------------------------------------------------------------------
def _fused_kernel(*refs, T, ratio, layers, Houts, neg_slope):
    n = len(layers)
    x_ref, basis_ref = refs[0], refs[1]
    band_refs = refs[2:2 + n]
    bias_refs = refs[2 + n:2 + 2 * n]
    out_refs = refs[2 + 2 * n:2 + 3 * n]

    # --- STFT: frame in-register -> one (T, n_fft) @ (n_fft, Npad) GEMM ----
    # frame t = x[t*hop : t*hop + n_fft] == concat of hop-rows t .. t+ratio-1
    frames = jnp.concatenate(
        [x_ref[0, j:j + T, :] for j in range(ratio)], axis=-1)   # (T, n_fft)
    h = jnp.dot(frames, basis_ref[...],
                preferred_element_type=jnp.float32)              # (T, Npad)

    # --- conv stack: activations never leave the chip ----------------------
    for i, lc in enumerate(layers):
        kH, dH, pH = lc["kH"], lc["dH"], lc["pH"]
        Hout = Houts[i]
        Kc = h.shape[-1]
        if pH > 0:                                   # time zero-padding
            zer = jnp.zeros((pH, Kc), jnp.float32)
            hp = jnp.concatenate([zer, h, zer], axis=0)
        else:
            hp = h
        hb = hp.astype(jnp.bfloat16)                 # cast once (hoisted)
        # kH taps folded into K: lane-aligned concat, single GEMM per layer.
        lhs = jnp.concatenate(
            [hb[k * dH:k * dH + Hout, :] for k in range(kH)], axis=-1)
        acc = jnp.dot(lhs, band_refs[i][...],
                      preferred_element_type=jnp.float32)        # (Hout, Ncols)
        acc = acc + bias_refs[i][...]                # (1, Ncols) broadcast
        if i < n - 1:                                # LeakyReLU (not conv_post)
            acc = jnp.where(acc > 0, acc, jnp.float32(neg_slope) * acc)
        out_refs[i][0] = acc                         # lane-dense full-block store
        h = acc                                      # feeds the next layer


# ----------------------------------------------------------------------------
# Forward pass (DiscriminatorSTFT.forward) -- one pallas_call.
# Returns z and fmaps in the kernel's lane-dense layout (B, T, pad128(W*C));
# use `to_nchw` to recover the PyTorch (B, C, T, W) layout when needed.
# ----------------------------------------------------------------------------
def discriminator_stft_forward(x, weights, static, cfg, *, neg_slope=0.2):
    B, Ca, L = x.shape
    assert Ca == 1, "TODO(synk): multi-channel audio path not fused"
    n_fft, hop = cfg["n_fft"], cfg["hop_length"]
    ratio = n_fft // hop
    Lq = L // hop
    T = Lq - ratio + 1
    assert T >= 1
    layers = static["layers"]
    n = len(layers)

    # per-layer output time heights (all equal T for these configs)
    H = T
    Houts = []
    for lc in layers:
        H = H + 2 * lc["pH"] - lc["dH"] * (lc["kH"] - 1)
        Houts.append(H)
    Houts = tuple(Houts)

    xr = x.reshape(B, L)[:, :Lq * hop].reshape(B, Lq, hop)   # metadata reshape

    kernel = functools.partial(_fused_kernel, T=T, ratio=ratio, layers=layers,
                               Houts=Houts, neg_slope=neg_slope)

    in_specs = [pl.BlockSpec((1, Lq, hop), lambda b: (b, 0, 0)),
                pl.BlockSpec(weights["basis"].shape, lambda b: (0, 0))]
    in_specs += [pl.BlockSpec(w.shape, lambda b: (0, 0))
                 for w in weights["bands"]]
    in_specs += [pl.BlockSpec(w.shape, lambda b: (0, 0))
                 for w in weights["biases"]]

    out_shapes = tuple(
        jax.ShapeDtypeStruct((B, Houts[i], layers[i]["Ncols"]), jnp.float32)
        for i in range(n))
    out_specs = tuple(
        pl.BlockSpec((1, Houts[i], layers[i]["Ncols"]), lambda b: (b, 0, 0))
        for i in range(n))

    # advisory cost estimate for XLA scheduling
    flops = B * 2 * T * n_fft * static["Npad"]
    bytes_acc = xr.size * 4 + weights["basis"].size * 4
    for i, lc in enumerate(layers):
        flops += B * 2 * Houts[i] * (lc["kH"] * lc["Kcols"]) * lc["Ncols"]
        bytes_acc += (weights["bands"][i].size * 2
                      + weights["biases"][i].size * 4
                      + B * Houts[i] * lc["Ncols"] * 4)
    ce = pl.CostEstimate(flops=int(flops), transcendentals=0,
                         bytes_accessed=int(bytes_acc))

    outs = pl.pallas_call(
        kernel,
        out_shape=out_shapes,
        grid=(B,),
        in_specs=in_specs,
        out_specs=out_specs,
        compiler_params=pltpu.CompilerParams(
            dimension_semantics=("parallel",)),   # B=2 -> one sample per TC on v7x
        cost_estimate=ce,
    )(xr, weights["basis"], *weights["bands"], *weights["biases"])

    fmaps = list(outs[:-1])
    z = outs[-1]
    return z, fmaps


def to_nchw(a, Wout, Cout):
    """Lane-dense kernel output (B, T, pad128(Wout*Cout)) -> torch (B, C, T, W)."""
    B, T_, _ = a.shape
    a = a[:, :, :Wout * Cout].reshape(B, T_, Wout, Cout)
    return jnp.transpose(a, (0, 3, 1, 2))


# ----------------------------------------------------------------------------
if __name__ == "__main__":
    cfg = dict(
        filters=8, in_channels=1, out_channels=1,
        n_fft=64, hop_length=16, win_length=64,
        max_filters=1024, filters_scale=1,
        kernel_size=(3, 9), dilations=[1, 2, 4], stride=(1, 2),
        normalized=True,
    )

    key = jax.random.PRNGKey(0)
    k_x, k_p = jax.random.split(key)
    B, L = 2, 256
    x = jax.random.normal(k_x, (B, cfg["in_channels"], L), dtype=jnp.float32)

    raw_layers, raw_post = init_raw_params(k_p, cfg)
    stft_pack = build_stft_basis(cfg)
    static, weights = prepare_params(raw_layers, raw_post, cfg, stft_pack)

    fwd = jax.jit(functools.partial(discriminator_stft_forward,
                                    static=static, cfg=cfg))

    z, fmaps = fwd(x, weights)
    jax.block_until_ready(z)
    for f in fmaps:
        jax.block_until_ready(f)

    # Tiny off-hot-path conversion of the logit map to the PyTorch layout.
    z_nchw = to_nchw(z, static["layers"][-1]["Wout"], static["layers"][-1]["Cout"])
    jax.block_until_ready(z_nchw)

    print("KERNEL_OK")
</pallas_src>

<mosaic_0001>
module attributes {stable_mosaic.version = 11 : i64} {
  func.func @_fused_kernel(%arg0: i32, %arg1: memref<1x16x16xf32, #tpu.memory_space<vmem>>, %arg2: memref<64x128xf32, #tpu.memory_space<vmem>>, %arg3: memref<384x384xbf16, #tpu.memory_space<vmem>>, %arg4: memref<1152x256xbf16, #tpu.memory_space<vmem>>, %arg5: memref<768x128xbf16, #tpu.memory_space<vmem>>, %arg6: memref<384x128xbf16, #tpu.memory_space<vmem>>, %arg7: memref<384x128xbf16, #tpu.memory_space<vmem>>, %arg8: memref<384x128xbf16, #tpu.memory_space<vmem>>, %arg9: memref<1x384xf32, #tpu.memory_space<vmem>>, %arg10: memref<1x256xf32, #tpu.memory_space<vmem>>, %arg11: memref<1x128xf32, #tpu.memory_space<vmem>>, %arg12: memref<1x128xf32, #tpu.memory_space<vmem>>, %arg13: memref<1x128xf32, #tpu.memory_space<vmem>>, %arg14: memref<1x128xf32, #tpu.memory_space<vmem>>, %arg15: memref<1x13x384xf32, #tpu.memory_space<vmem>>, %arg16: memref<1x13x256xf32, #tpu.memory_space<vmem>>, %arg17: memref<1x13x128xf32, #tpu.memory_space<vmem>>, %arg18: memref<1x13x128xf32, #tpu.memory_space<vmem>>, %arg19: memref<1x13x128xf32, #tpu.memory_space<vmem>>, %arg20: memref<1x13x128xf32, #tpu.memory_space<vmem>>) attributes {dimension_semantics = [#tpu.dimension_semantics<parallel>], iteration_bounds = array<i64: 2>, scalar_prefetch = 0 : i64, scratch_operands = 0 : i64, tpu.core_type = #tpu.core_type<tc>, window_params = [{transform_indices = @transform_0, window_bounds = array<i64: 1, 16, 16>}, {pipeline_mode = #tpu.pipeline_mode<synchronous>, transform_indices = @transform_1, window_bounds = array<i64: 64, 128>}, {pipeline_mode = #tpu.pipeline_mode<synchronous>, transform_indices = @transform_2, window_bounds = array<i64: 384, 384>}, {pipeline_mode = #tpu.pipeline_mode<synchronous>, transform_indices = @transform_3, window_bounds = array<i64: 1152, 256>}, {pipeline_mode = #tpu.pipeline_mode<synchronous>, transform_indices = @transform_4, window_bounds = array<i64: 768, 128>}, {pipeline_mode = #tpu.pipeline_mode<synchronous>, transform_indices = @transform_5, window_bounds = array<i64: 384, 128>}, {pipeline_mode = #tpu.pipeline_mode<synchronous>, transform_indices = @transform_6, window_bounds = array<i64: 384, 128>}, {pipeline_mode = #tpu.pipeline_mode<synchronous>, transform_indices = @transform_7, window_bounds = array<i64: 384, 128>}, {pipeline_mode = #tpu.pipeline_mode<synchronous>, transform_indices = @transform_8, window_bounds = array<i64: 1, 384>}, {pipeline_mode = #tpu.pipeline_mode<synchronous>, transform_indices = @transform_9, window_bounds = array<i64: 1, 256>}, {pipeline_mode = #tpu.pipeline_mode<synchronous>, transform_indices = @transform_10, window_bounds = array<i64: 1, 128>}, {pipeline_mode = #tpu.pipeline_mode<synchronous>, transform_indices = @transform_11, window_bounds = array<i64: 1, 128>}, {pipeline_mode = #tpu.pipeline_mode<synchronous>, transform_indices = @transform_12, window_bounds = array<i64: 1, 128>}, {pipeline_mode = #tpu.pipeline_mode<synchronous>, transform_indices = @transform_13, window_bounds = array<i64: 1, 128>}, {transform_indices = @transform_14, window_bounds = array<i64: 1, 13, 384>}, {transform_indices = @transform_15, window_bounds = array<i64: 1, 13, 256>}, {transform_indices = @transform_16, window_bounds = array<i64: 1, 13, 128>}, {transform_indices = @transform_17, window_bounds = array<i64: 1, 13, 128>}, {transform_indices = @transform_18, window_bounds = array<i64: 1, 13, 128>}, {transform_indices = @transform_19, window_bounds = array<i64: 1, 13, 128>}]} {
    %c0 = arith.constant 0 : index
    %c0_0 = arith.constant 0 : index
    %c0_1 = arith.constant 0 : index
    %0 = vector.load %arg1[%c0, %c0_0, %c0_1] : memref<1x16x16xf32, #tpu.memory_space<vmem>>, vector<1x13x16xf32>
    %1 = vector.shape_cast %0 : vector<1x13x16xf32> to vector<13x16xf32>
    %c0_2 = arith.constant 0 : index
    %c1 = arith.constant 1 : index
    %c0_3 = arith.constant 0 : index
    %2 = vector.load %arg1[%c0_2, %c1, %c0_3] : memref<1x16x16xf32, #tpu.memory_space<vmem>>, vector<1x13x16xf32>
    %3 = vector.shape_cast %2 : vector<1x13x16xf32> to vector<13x16xf32>
    %c0_4 = arith.constant 0 : index
    %c2 = arith.constant 2 : index
    %c0_5 = arith.constant 0 : index
    %4 = vector.load %arg1[%c0_4, %c2, %c0_5] : memref<1x16x16xf32, #tpu.memory_space<vmem>>, vector<1x13x16xf32>
    %5 = vector.shape_cast %4 : vector<1x13x16xf32> to vector<13x16xf32>
    %c0_6 = arith.constant 0 : index
    %c3 = arith.constant 3 : index
    %c0_7 = arith.constant 0 : index
    %6 = vector.load %arg1[%c0_6, %c3, %c0_7] : memref<1x16x16xf32, #tpu.memory_space<vmem>>, vector<1x13x16xf32>
    %7 = vector.shape_cast %6 : vector<1x13x16xf32> to vector<13x16xf32>
    %8 = tpu.concatenate %1, %3, %5, %7 in 1 : vector<13x16xf32>, vector<13x16xf32>, vector<13x16xf32>, vector<13x16xf32> -> vector<13x64xf32>
    %c0_8 = arith.constant 0 : index
    %c0_9 = arith.constant 0 : index
    %9 = vector.load %arg2[%c0_8, %c0_9] : memref<64x128xf32, #tpu.memory_space<vmem>>, vector<64x128xf32>
    %cst = arith.constant dense<0.000000e+00> : vector<13x128xf32>
    %10 = tpu.matmul %8, %9, %cst {dimension_numbers = #tpu.dot_dimension_numbers<[1], [0], [0], [1], [0, 0, 1, 1], [], []>} : vector<13x64xf32>, vector<64x128xf32>, vector<13x128xf32> -> vector<13x128xf32>
    %cst_10 = arith.constant 0.000000e+00 : f32
    %11 = vector.broadcast %cst_10 : f32 to vector<1x128xf32>
    %12 = tpu.concatenate %11, %10, %11 in 0 : vector<1x128xf32>, vector<13x128xf32>, vector<1x128xf32> -> vector<15x128xf32>
    %13 = arith.truncf %12 : vector<15x128xf32> to vector<15x128xbf16>
    %14 = vector.extract_strided_slice %13 {offsets = [0, 0], sizes = [13, 128], strides = [1, 1]} : vector<15x128xbf16> to vector<13x128xbf16>
    %15 = vector.extract_strided_slice %13 {offsets = [1, 0], sizes = [13, 128], strides = [1, 1]} : vector<15x128xbf16> to vector<13x128xbf16>
    %16 = vector.extract_strided_slice %13 {offsets = [2, 0], sizes = [13, 128], strides = [1, 1]} : vector<15x128xbf16> to vector<13x128xbf16>
    %17 = tpu.concatenate %14, %15, %16 in 1 : vector<13x128xbf16>, vector<13x128xbf16>, vector<13x128xbf16> -> vector<13x384xbf16>
    %c0_11 = arith.constant 0 : index
    %c0_12 = arith.constant 0 : index
    %18 = vector.load %arg3[%c0_11, %c0_12] : memref<384x384xbf16, #tpu.memory_space<vmem>>, vector<384x384xbf16>
    %cst_13 = arith.constant dense<0.000000e+00> : vector<13x384xf32>
    %19 = tpu.matmul %17, %18, %cst_13 {dimension_numbers = #tpu.dot_dimension_numbers<[1], [0], [0], [1], [0, 0, 1, 1], [], []>} : vector<13x384xbf16>, vector<384x384xbf16>, vector<13x384xf32> -> vector<13x384xf32>
    %c0_14 = arith.constant 0 : index
    %c0_15 = arith.constant 0 : index
    %20 = vector.load %arg9[%c0_14, %c0_15] : memref<1x384xf32, #tpu.memory_space<vmem>>, vector<1x384xf32>
    %21 = vector.broadcast %20 : vector<1x384xf32> to vector<13x384xf32>
    %22 = arith.addf %19, %21 : vector<13x384xf32>
    %cst_16 = arith.constant 0.000000e+00 : f32
    %23 = vector.broadcast %cst_16 : f32 to vector<13x384xf32>
    %24 = arith.cmpf ogt, %22, %23 : vector<13x384xf32>
    %cst_17 = arith.constant 2.000000e-01 : f32
    %25 = vector.broadcast %cst_17 : f32 to vector<13x384xf32>
    %26 = arith.mulf %25, %22 : vector<13x384xf32>
    %27 = arith.select %24, %22, %26 : vector<13x384xi1>, vector<13x384xf32>
    %c0_18 = arith.constant 0 : index
    %c0_19 = arith.constant 0 : index
    %c0_20 = arith.constant 0 : index
    %28 = vector.load %arg15[%c0_18, %c0_19, %c0_20] : memref<1x13x384xf32, #tpu.memory_space<vmem>>, vector<1x13x384xf32>
    %29 = vector.shape_cast %28 : vector<1x13x384xf32> to vector<13x384xf32>
    %30 = vector.shape_cast %27 : vector<13x384xf32> to vector<1x13x384xf32>
    tpu.vector_store %arg15[%c0_18, %c0_19, %c0_20], %30 {strides = array<i32>} : memref<1x13x384xf32, #tpu.memory_space<vmem>>, vector<1x13x384xf32>,
    %cst_21 = arith.constant 0.000000e+00 : f32
    %31 = vector.broadcast %cst_21 : f32 to vector<1x384xf32>
    %32 = tpu.concatenate %31, %27, %31 in 0 : vector<1x384xf32>, vector<13x384xf32>, vector<1x384xf32> -> vector<15x384xf32>
    %33 = arith.truncf %32 : vector<15x384xf32> to vector<15x384xbf16>
    %34 = vector.extract_strided_slice %33 {offsets = [0, 0], sizes = [13, 384], strides = [1, 1]} : vector<15x384xbf16> to vector<13x384xbf16>
    %35 = vector.extract_strided_slice %33 {offsets = [1, 0], sizes = [13, 384], strides = [1, 1]} : vector<15x384xbf16> to vector<13x384xbf16>
    %36 = vector.extract_strided_slice %33 {offsets = [2, 0], sizes = [13, 384], strides = [1, 1]} : vector<15x384xbf16> to vector<13x384xbf16>
    %37 = tpu.concatenate %34, %35, %36 in 1 : vector<13x384xbf16>, vector<13x384xbf16>, vector<13x384xbf16> -> vector<13x1152xbf16>
    %c0_22 = arith.constant 0 : index
    %c0_23 = arith.constant 0 : index
    %38 = vector.load %arg4[%c0_22, %c0_23] : memref<1152x256xbf16, #tpu.memory_space<vmem>>, vector<1152x256xbf16>
    %cst_24 = arith.constant dense<0.000000e+00> : vector<13x256xf32>
    %39 = tpu.matmul %37, %38, %cst_24 {dimension_numbers = #tpu.dot_dimension_numbers<[1], [0], [0], [1], [0, 0, 1, 1], [], []>} : vector<13x1152xbf16>, vector<1152x256xbf16>, vector<13x256xf32> -> vector<13x256xf32>
    %c0_25 = arith.constant 0 : index
    %c0_26 = arith.constant 0 : index
    %40 = vector.load %arg10[%c0_25, %c0_26] : memref<1x256xf32, #tpu.memory_space<vmem>>, vector<1x256xf32>
    %41 = vector.broadcast %40 : vector<1x256xf32> to vector<13x256xf32>
    %42 = arith.addf %39, %41 : vector<13x256xf32>
    %cst_27 = arith.constant 0.000000e+00 : f32
    %43 = vector.broadcast %cst_27 : f32 to vector<13x256xf32>
    %44 = arith.cmpf ogt, %42, %43 : vector<13x256xf32>
    %cst_28 = arith.constant 2.000000e-01 : f32
    %45 = vector.broadcast %cst_28 : f32 to vector<13x256xf32>
    %46 = arith.mulf %45, %42 : vector<13x256xf32>
    %47 = arith.select %44, %42, %46 : vector<13x256xi1>, vector<13x256xf32>
    %c0_29 = arith.constant 0 : index
    %c0_30 = arith.constant 0 : index
    %c0_31 = arith.constant 0 : index
    %48 = vector.load %arg16[%c0_29, %c0_30, %c0_31] : memref<1x13x256xf32, #tpu.memory_space<vmem>>, vector<1x13x256xf32>
    %49 = vector.shape_cast %48 : vector<1x13x256xf32> to vector<13x256xf32>
    %50 = vector.shape_cast %47 : vector<13x256xf32> to vector<1x13x256xf32>
    tpu.vector_store %arg16[%c0_29, %c0_30, %c0_31], %50 {strides = array<i32>} : memref<1x13x256xf32, #tpu.memory_space<vmem>>, vector<1x13x256xf32>,
    %cst_32 = arith.constant 0.000000e+00 : f32
    %51 = vector.broadcast %cst_32 : f32 to vector<2x256xf32>
    %52 = tpu.concatenate %51, %47, %51 in 0 : vector<2x256xf32>, vector<13x256xf32>, vector<2x256xf32> -> vector<17x256xf32>
    %53 = arith.truncf %52 : vector<17x256xf32> to vector<17x256xbf16>
    %54 = vector.extract_strided_slice %53 {offsets = [0, 0], sizes = [13, 256], strides = [1, 1]} : vector<17x256xbf16> to vector<13x256xbf16>
    %55 = vector.extract_strided_slice %53 {offsets = [2, 0], sizes = [13, 256], strides = [1, 1]} : vector<17x256xbf16> to vector<13x256xbf16>
    %56 = vector.extract_strided_slice %53 {offsets = [4, 0], sizes = [13, 256], strides = [1, 1]} : vector<17x256xbf16> to vector<13x256xbf16>
    %57 = tpu.concatenate %54, %55, %56 in 1 : vector<13x256xbf16>, vector<13x256xbf16>, vector<13x256xbf16> -> vector<13x768xbf16>
    %c0_33 = arith.constant 0 : index
    %c0_34 = arith.constant 0 : index
    %58 = vector.load %arg5[%c0_33, %c0_34] : memref<768x128xbf16, #tpu.memory_space<vmem>>, vector<768x128xbf16>
    %cst_35 = arith.constant dense<0.000000e+00> : vector<13x128xf32>
    %59 = tpu.matmul %57, %58, %cst_35 {dimension_numbers = #tpu.dot_dimension_numbers<[1], [0], [0], [1], [0, 0, 1, 1], [], []>} : vector<13x768xbf16>, vector<768x128xbf16>, vector<13x128xf32> -> vector<13x128xf32>
    %c0_36 = arith.constant 0 : index
    %c0_37 = arith.constant 0 : index
    %60 = vector.load %arg11[%c0_36, %c0_37] : memref<1x128xf32, #tpu.memory_space<vmem>>, vector<1x128xf32>
    %61 = vector.broadcast %60 : vector<1x128xf32> to vector<13x128xf32>
    %62 = arith.addf %59, %61 : vector<13x128xf32>
    %cst_38 = arith.constant 0.000000e+00 : f32
    %63 = vector.broadcast %cst_38 : f32 to vector<13x128xf32>
    %64 = arith.cmpf ogt, %62, %63 : vector<13x128xf32>
    %cst_39 = arith.constant 2.000000e-01 : f32
    %65 = vector.broadcast %cst_39 : f32 to vector<13x128xf32>
    %66 = arith.mulf %65, %62 : vector<13x128xf32>
    %67 = arith.select %64, %62, %66 : vector<13x128xi1>, vector<13x128xf32>
    %c0_40 = arith.constant 0 : index
    %c0_41 = arith.constant 0 : index
    %c0_42 = arith.constant 0 : index
    %68 = vector.load %arg17[%c0_40, %c0_41, %c0_42] : memref<1x13x128xf32, #tpu.memory_space<vmem>>, vector<1x13x128xf32>
    %69 = vector.shape_cast %68 : vector<1x13x128xf32> to vector<13x128xf32>
    %70 = vector.shape_cast %67 : vector<13x128xf32> to vector<1x13x128xf32>
    tpu.vector_store %arg17[%c0_40, %c0_41, %c0_42], %70 {strides = array<i32>} : memref<1x13x128xf32, #tpu.memory_space<vmem>>, vector<1x13x128xf32>,
    %cst_43 = arith.constant 0.000000e+00 : f32
    %71 = vector.broadcast %cst_43 : f32 to vector<4x128xf32>
    %72 = tpu.concatenate %71, %67, %71 in 0 : vector<4x128xf32>, vector<13x128xf32>, vector<4x128xf32> -> vector<21x128xf32>
    %73 = arith.truncf %72 : vector<21x128xf32> to vector<21x128xbf16>
    %74 = vector.extract_strided_slice %73 {offsets = [0, 0], sizes = [13, 128], strides = [1, 1]} : vector<21x128xbf16> to vector<13x128xbf16>
    %75 = vector.extract_strided_slice %73 {offsets = [4, 0], sizes = [13, 128], strides = [1, 1]} : vector<21x128xbf16> to vector<13x128xbf16>
    %76 = vector.extract_strided_slice %73 {offsets = [8, 0], sizes = [13, 128], strides = [1, 1]} : vector<21x128xbf16> to vector<13x128xbf16>
    %77 = tpu.concatenate %74, %75, %76 in 1 : vector<13x128xbf16>, vector<13x128xbf16>, vector<13x128xbf16> -> vector<13x384xbf16>
    %c0_44 = arith.constant 0 : index
    %c0_45 = arith.constant 0 : index
    %78 = vector.load %arg6[%c0_44, %c0_45] : memref<384x128xbf16, #tpu.memory_space<vmem>>, vector<384x128xbf16>
    %cst_46 = arith.constant dense<0.000000e+00> : vector<13x128xf32>
    %79 = tpu.matmul %77, %78, %cst_46 {dimension_numbers = #tpu.dot_dimension_numbers<[1], [0], [0], [1], [0, 0, 1, 1], [], []>} : vector<13x384xbf16>, vector<384x128xbf16>, vector<13x128xf32> -> vector<13x128xf32>
    %c0_47 = arith.constant 0 : index
    %c0_48 = arith.constant 0 : index
    %80 = vector.load %arg12[%c0_47, %c0_48] : memref<1x128xf32, #tpu.memory_space<vmem>>, vector<1x128xf32>
    %81 = vector.broadcast %80 : vector<1x128xf32> to vector<13x128xf32>
    %82 = arith.addf %79, %81 : vector<13x128xf32>
    %cst_49 = arith.constant 0.000000e+00 : f32
    %83 = vector.broadcast %cst_49 : f32 to vector<13x128xf32>
    %84 = arith.cmpf ogt, %82, %83 : vector<13x128xf32>
    %cst_50 = arith.constant 2.000000e-01 : f32
    %85 = vector.broadcast %cst_50 : f32 to vector<13x128xf32>
    %86 = arith.mulf %85, %82 : vector<13x128xf32>
    %87 = arith.select %84, %82, %86 : vector<13x128xi1>, vector<13x128xf32>
    %c0_51 = arith.constant 0 : index
    %c0_52 = arith.constant 0 : index
    %c0_53 = arith.constant 0 : index
    %88 = vector.load %arg18[%c0_51, %c0_52, %c0_53] : memref<1x13x128xf32, #tpu.memory_space<vmem>>, vector<1x13x128xf32>
    %89 = vector.shape_cast %88 : vector<1x13x128xf32> to vector<13x128xf32>
    %90 = vector.shape_cast %87 : vector<13x128xf32> to vector<1x13x128xf32>
    tpu.vector_store %arg18[%c0_51, %c0_52, %c0_53], %90 {strides = array<i32>} : memref<1x13x128xf32, #tpu.memory_space<vmem>>, vector<1x13x128xf32>,
    %cst_54 = arith.constant 0.000000e+00 : f32
    %91 = vector.broadcast %cst_54 : f32 to vector<1x128xf32>
    %92 = tpu.concatenate %91, %87, %91 in 0 : vector<1x128xf32>, vector<13x128xf32>, vector<1x128xf32> -> vector<15x128xf32>
    %93 = arith.truncf %92 : vector<15x128xf32> to vector<15x128xbf16>
    %94 = vector.extract_strided_slice %93 {offsets = [0, 0], sizes = [13, 128], strides = [1, 1]} : vector<15x128xbf16> to vector<13x128xbf16>
    %95 = vector.extract_strided_slice %93 {offsets = [1, 0], sizes = [13, 128], strides = [1, 1]} : vector<15x128xbf16> to vector<13x128xbf16>
    %96 = vector.extract_strided_slice %93 {offsets = [2, 0], sizes = [13, 128], strides = [1, 1]} : vector<15x128xbf16> to vector<13x128xbf16>
    %97 = tpu.concatenate %94, %95, %96 in 1 : vector<13x128xbf16>, vector<13x128xbf16>, vector<13x128xbf16> -> vector<13x384xbf16>
    %c0_55 = arith.constant 0 : index
    %c0_56 = arith.constant 0 : index
    %98 = vector.load %arg7[%c0_55, %c0_56] : memref<384x128xbf16, #tpu.memory_space<vmem>>, vector<384x128xbf16>
    %cst_57 = arith.constant dense<0.000000e+00> : vector<13x128xf32>
    %99 = tpu.matmul %97, %98, %cst_57 {dimension_numbers = #tpu.dot_dimension_numbers<[1], [0], [0], [1], [0, 0, 1, 1], [], []>} : vector<13x384xbf16>, vector<384x128xbf16>, vector<13x128xf32> -> vector<13x128xf32>
    %c0_58 = arith.constant 0 : index
    %c0_59 = arith.constant 0 : index
    %100 = vector.load %arg13[%c0_58, %c0_59] : memref<1x128xf32, #tpu.memory_space<vmem>>, vector<1x128xf32>
    %101 = vector.broadcast %100 : vector<1x128xf32> to vector<13x128xf32>
    %102 = arith.addf %99, %101 : vector<13x128xf32>
    %cst_60 = arith.constant 0.000000e+00 : f32
    %103 = vector.broadcast %cst_60 : f32 to vector<13x128xf32>
    %104 = arith.cmpf ogt, %102, %103 : vector<13x128xf32>
    %cst_61 = arith.constant 2.000000e-01 : f32
    %105 = vector.broadcast %cst_61 : f32 to vector<13x128xf32>
    %106 = arith.mulf %105, %102 : vector<13x128xf32>
    %107 = arith.select %104, %102, %106 : vector<13x128xi1>, vector<13x128xf32>
    %c0_62 = arith.constant 0 : index
    %c0_63 = arith.constant 0 : index
    %c0_64 = arith.constant 0 : index
    %108 = vector.load %arg19[%c0_62, %c0_63, %c0_64] : memref<1x13x128xf32, #tpu.memory_space<vmem>>, vector<1x13x128xf32>
    %109 = vector.shape_cast %108 : vector<1x13x128xf32> to vector<13x128xf32>
    %110 = vector.shape_cast %107 : vector<13x128xf32> to vector<1x13x128xf32>
    tpu.vector_store %arg19[%c0_62, %c0_63, %c0_64], %110 {strides = array<i32>} : memref<1x13x128xf32, #tpu.memory_space<vmem>>, vector<1x13x128xf32>,
    %cst_65 = arith.constant 0.000000e+00 : f32
    %111 = vector.broadcast %cst_65 : f32 to vector<1x128xf32>
    %112 = tpu.concatenate %111, %107, %111 in 0 : vector<1x128xf32>, vector<13x128xf32>, vector<1x128xf32> -> vector<15x128xf32>
    %113 = arith.truncf %112 : vector<15x128xf32> to vector<15x128xbf16>
    %114 = vector.extract_strided_slice %113 {offsets = [0, 0], sizes = [13, 128], strides = [1, 1]} : vector<15x128xbf16> to vector<13x128xbf16>
    %115 = vector.extract_strided_slice %113 {offsets = [1, 0], sizes = [13, 128], strides = [1, 1]} : vector<15x128xbf16> to vector<13x128xbf16>
    %116 = vector.extract_strided_slice %113 {offsets = [2, 0], sizes = [13, 128], strides = [1, 1]} : vector<15x128xbf16> to vector<13x128xbf16>
    %117 = tpu.concatenate %114, %115, %116 in 1 : vector<13x128xbf16>, vector<13x128xbf16>, vector<13x128xbf16> -> vector<13x384xbf16>
    %c0_66 = arith.constant 0 : index
    %c0_67 = arith.constant 0 : index
    %118 = vector.load %arg8[%c0_66, %c0_67] : memref<384x128xbf16, #tpu.memory_space<vmem>>, vector<384x128xbf16>
    %cst_68 = arith.constant dense<0.000000e+00> : vector<13x128xf32>
    %119 = tpu.matmul %117, %118, %cst_68 {dimension_numbers = #tpu.dot_dimension_numbers<[1], [0], [0], [1], [0, 0, 1, 1], [], []>} : vector<13x384xbf16>, vector<384x128xbf16>, vector<13x128xf32> -> vector<13x128xf32>
    %c0_69 = arith.constant 0 : index
    %c0_70 = arith.constant 0 : index
    %120 = vector.load %arg14[%c0_69, %c0_70] : memref<1x128xf32, #tpu.memory_space<vmem>>, vector<1x128xf32>
    %121 = vector.broadcast %120 : vector<1x128xf32> to vector<13x128xf32>
    %122 = arith.addf %119, %121 : vector<13x128xf32>
    %c0_71 = arith.constant 0 : index
    %c0_72 = arith.constant 0 : index
    %c0_73 = arith.constant 0 : index
    %123 = vector.load %arg20[%c0_71, %c0_72, %c0_73] : memref<1x13x128xf32, #tpu.memory_space<vmem>>, vector<1x13x128xf32>
    %124 = vector.shape_cast %123 : vector<1x13x128xf32> to vector<13x128xf32>
    %125 = vector.shape_cast %122 : vector<13x128xf32> to vector<1x13x128xf32>
    tpu.vector_store %arg20[%c0_71, %c0_72, %c0_73], %125 {strides = array<i32>} : memref<1x13x128xf32, #tpu.memory_space<vmem>>, vector<1x13x128xf32>,
    return
  }
  func.func @transform_0(%arg0: i32) -> (i32, i32, i32) {
    %c0_i32 = arith.constant 0 : i32
    %c0_i32_0 = arith.constant 0 : i32
    %c0_i32_1 = arith.constant 0 : i32
    return %arg0, %c0_i32, %c0_i32_0 : i32, i32, i32
  }
  func.func @transform_1(%arg0: i32) -> (i32, i32) {
    %c0_i32 = arith.constant 0 : i32
    %c0_i32_0 = arith.constant 0 : i32
    %c0_i32_1 = arith.constant 0 : i32
    return %c0_i32, %c0_i32_0 : i32, i32
  }
  func.func @transform_2(%arg0: i32) -> (i32, i32) {
    %c0_i32 = arith.constant 0 : i32
    %c0_i32_0 = arith.constant 0 : i32
    %c0_i32_1 = arith.constant 0 : i32
    return %c0_i32, %c0_i32_0 : i32, i32
  }
  func.func @transform_3(%arg0: i32) -> (i32, i32) {
    %c0_i32 = arith.constant 0 : i32
    %c0_i32_0 = arith.constant 0 : i32
    %c0_i32_1 = arith.constant 0 : i32
    return %c0_i32, %c0_i32_0 : i32, i32
  }
  func.func @transform_4(%arg0: i32) -> (i32, i32) {
    %c0_i32 = arith.constant 0 : i32
    %c0_i32_0 = arith.constant 0 : i32
    %c0_i32_1 = arith.constant 0 : i32
    return %c0_i32, %c0_i32_0 : i32, i32
  }
  func.func @transform_5(%arg0: i32) -> (i32, i32) {
    %c0_i32 = arith.constant 0 : i32
    %c0_i32_0 = arith.constant 0 : i32
    %c0_i32_1 = arith.constant 0 : i32
    return %c0_i32, %c0_i32_0 : i32, i32
  }
  func.func @transform_6(%arg0: i32) -> (i32, i32) {
    %c0_i32 = arith.constant 0 : i32
    %c0_i32_0 = arith.constant 0 : i32
    %c0_i32_1 = arith.constant 0 : i32
    return %c0_i32, %c0_i32_0 : i32, i32
  }
  func.func @transform_7(%arg0: i32) -> (i32, i32) {
    %c0_i32 = arith.constant 0 : i32
    %c0_i32_0 = arith.constant 0 : i32
    %c0_i32_1 = arith.constant 0 : i32
    return %c0_i32, %c0_i32_0 : i32, i32
  }
  func.func @transform_8(%arg0: i32) -> (i32, i32) {
    %c0_i32 = arith.constant 0 : i32
    %c0_i32_0 = arith.constant 0 : i32
    %c0_i32_1 = arith.constant 0 : i32
    return %c0_i32, %c0_i32_0 : i32, i32
  }
  func.func @transform_9(%arg0: i32) -> (i32, i32) {
    %c0_i32 = arith.constant 0 : i32
    %c0_i32_0 = arith.constant 0 : i32
    %c0_i32_1 = arith.constant 0 : i32
    return %c0_i32, %c0_i32_0 : i32, i32
  }
  func.func @transform_10(%arg0: i32) -> (i32, i32) {
    %c0_i32 = arith.constant 0 : i32
    %c0_i32_0 = arith.constant 0 : i32
    %c0_i32_1 = arith.constant 0 : i32
    return %c0_i32, %c0_i32_0 : i32, i32
  }
  func.func @transform_11(%arg0: i32) -> (i32, i32) {
    %c0_i32 = arith.constant 0 : i32
    %c0_i32_0 = arith.constant 0 : i32
    %c0_i32_1 = arith.constant 0 : i32
    return %c0_i32, %c0_i32_0 : i32, i32
  }
  func.func @transform_12(%arg0: i32) -> (i32, i32) {
    %c0_i32 = arith.constant 0 : i32
    %c0_i32_0 = arith.constant 0 : i32
    %c0_i32_1 = arith.constant 0 : i32
    return %c0_i32, %c0_i32_0 : i32, i32
  }
  func.func @transform_13(%arg0: i32) -> (i32, i32) {
    %c0_i32 = arith.constant 0 : i32
    %c0_i32_0 = arith.constant 0 : i32
    %c0_i32_1 = arith.constant 0 : i32
    return %c0_i32, %c0_i32_0 : i32, i32
  }
  func.func @transform_14(%arg0: i32) -> (i32, i32, i32) {
    %c0_i32 = arith.constant 0 : i32
    %c0_i32_0 = arith.constant 0 : i32
    %c0_i32_1 = arith.constant 0 : i32
    return %arg0, %c0_i32, %c0_i32_0 : i32, i32, i32
  }
  func.func @transform_15(%arg0: i32) -> (i32, i32, i32) {
    %c0_i32 = arith.constant 0 : i32
    %c0_i32_0 = arith.constant 0 : i32
    %c0_i32_1 = arith.constant 0 : i32
    return %arg0, %c0_i32, %c0_i32_0 : i32, i32, i32
  }
  func.func @transform_16(%arg0: i32) -> (i32, i32, i32) {
    %c0_i32 = arith.constant 0 : i32
    %c0_i32_0 = arith.constant 0 : i32
    %c0_i32_1 = arith.constant 0 : i32
    return %arg0, %c0_i32, %c0_i32_0 : i32, i32, i32
  }
  func.func @transform_17(%arg0: i32) -> (i32, i32, i32) {
    %c0_i32 = arith.constant 0 : i32
    %c0_i32_0 = arith.constant 0 : i32
    %c0_i32_1 = arith.constant 0 : i32
    return %arg0, %c0_i32, %c0_i32_0 : i32, i32, i32
  }
  func.func @transform_18(%arg0: i32) -> (i32, i32, i32) {
    %c0_i32 = arith.constant 0 : i32
    %c0_i32_0 = arith.constant 0 : i32
    %c0_i32_1 = arith.constant 0 : i32
    return %arg0, %c0_i32, %c0_i32_0 : i32, i32, i32
  }
  func.func @transform_19(%arg0: i32) -> (i32, i32, i32) {
    %c0_i32 = arith.constant 0 : i32
    %c0_i32_0 = arith.constant 0 : i32
    %c0_i32_1 = arith.constant 0 : i32
    return %arg0, %c0_i32, %c0_i32_0 : i32, i32, i32
  }
}

</mosaic_0001>

<llo_original>
// kernel: discriminator_stft_forward.1
$region0: #{discriminator_stft_forward.1}
  #allocation0 [shape = 'u32[]', space=smem, size = 0x4, offset = 0x4, fixed_abs, tag = 'smem constant byte address 0x4 - core index']
  #allocation1 [shape = 'u32[144,128]{1,0:T(1,128)}', space=vmem, size = 0x12000, scoped, tag = 'internal scratch']
  %s0 = inlined_call_operand.vmem [shape: f32[2,16,16], index: 0, kind: input, shape index: {}]
  %s1 = inlined_call_operand.hbm [shape: f32[64,128], index: 1, kind: input, shape index: {}]
  %s2 = inlined_call_operand.hbm [shape: bf16[384,384], index: 2, kind: input, shape index: {}]
  %s3 = inlined_call_operand.hbm [shape: bf16[1152,256], index: 3, kind: input, shape index: {}]
  %s4 = inlined_call_operand.hbm [shape: bf16[768,128], index: 4, kind: input, shape index: {}]
  %s5 = inlined_call_operand.hbm [shape: bf16[384,128], index: 5, kind: input, shape index: {}]
  %s6 = inlined_call_operand.hbm [shape: bf16[384,128], index: 6, kind: input, shape index: {}]
  %s7 = inlined_call_operand.hbm [shape: bf16[384,128], index: 7, kind: input, shape index: {}]
  %s8 = inlined_call_operand.vmem [shape: f32[1,384], index: 8, kind: input, shape index: {}]
  %s9 = inlined_call_operand.vmem [shape: f32[1,256], index: 9, kind: input, shape index: {}]
  %s10 = inlined_call_operand.vmem [shape: f32[1,128], index: 10, kind: input, shape index: {}]
  %s11 = inlined_call_operand.vmem [shape: f32[1,128], index: 11, kind: input, shape index: {}]
  %s12 = inlined_call_operand.vmem [shape: f32[1,128], index: 12, kind: input, shape index: {}]
  %s13 = inlined_call_operand.vmem [shape: f32[1,128], index: 13, kind: input, shape index: {}]
  %s14 = inlined_call_operand.vmem [shape: f32[2,13,384], index: 14, kind: output, shape index: {0}]
  %s15 = inlined_call_operand.vmem [shape: f32[2,13,256], index: 15, kind: output, shape index: {1}]
  %s16 = inlined_call_operand.vmem [shape: f32[2,13,128], index: 16, kind: output, shape index: {2}]
  %s17 = inlined_call_operand.vmem [shape: f32[2,13,128], index: 17, kind: output, shape index: {3}]
  %s18 = inlined_call_operand.vmem [shape: f32[2,13,128], index: 18, kind: output, shape index: {4}]
  %s19 = inlined_call_operand.vmem [shape: f32[2,13,128], index: 19, kind: output, shape index: {5}]
  %20 = xla_tuple %s14, %s15, %s16, %s17, %s18, %s19
  %s21 = sld [smem:[#allocation0]]
  $region157: #{discriminator_stft_forward.1} parent=0
    _
  %s23 = ssub.s32 1, %s21
  %s24 = scalar_select 0, %s23, %s21
  $region1: #{discriminator_stft_forward.1} parent=0
    #allocation2 [shape = 'u8[32768]{0}', space=vmem, size = 0x8000, scoped, tag = 'input window, operand 1, single buffered']
    #allocation3 [shape = 's32[2]{0}', space=sflag, size = 0x8, scoped, tag = 'scoped memory for discriminator_stft_forward.1']
    #allocation4 [shape = 'u8[294912]{0}', space=vmem, size = 0x48000, scoped, tag = 'input window, operand 2, single buffered']
    #allocation5 [shape = 's32[1]{0}', space=sflag, size = 0x4, scoped, tag = 'scoped memory for discriminator_stft_forward.1']
    #allocation6 [shape = 'u8[589824]{0}', space=vmem, size = 0x90000, scoped, tag = 'input window, operand 3, single buffered']
    #allocation7 [shape = 'u8[196608]{0}', space=vmem, size = 0x30000, scoped, tag = 'input window, operand 4, single buffered']
    #allocation8 [shape = 's32[1]{0}', space=sflag, size = 0x4, scoped, tag = 'scoped memory for discriminator_stft_forward.1']
    #allocation9 [shape = 'u8[98304]{0}', space=vmem, size = 0x18000, scoped, tag = 'input window, operand 5, single buffered']
    #allocation10 [shape = 'u8[98304]{0}', space=vmem, size = 0x18000, scoped, tag = 'input window, operand 6, single buffered']
    #allocation11 [shape = 's32[1]{0}', space=sflag, size = 0x4, scoped, tag = 'scoped memory for discriminator_stft_forward.1']
    #allocation12 [shape = 'u8[98304]{0}', space=vmem, size = 0x18000, scoped, tag = 'input window, operand 7, single buffered']
    %25 = vsyncpa [#allocation3], 0
    %26 = vsyncpa [#allocation5], 0
    %27 = vsyncpa [#allocation8], 0
    %28 = vsyncpa [#allocation11], 0
    loop: start=0, step=1, limit=4
    $region2: #{discriminator_stft_forward.1} parent=1 // loop_pre_header
      _
    $region3: #{discriminator_stft_forward.1} parent=1 // loop_header
      %s30 = sphi 0, %s34
      %p31 = scmp.ge.s32.totalorder %s30, 4
      %s40 = sphi 0, %s42
      %s43 = sphi 0, %s40
      %s44 = sphi 0, %s43
      %s60 = sphi 0, %s44
      %s64 = sphi 0, %s64
      %s66 = sphi 0, %s64
      %s67 = sphi 0, %s66
      %s81 = sphi 0, %s67
      %s85 = sphi 0, %s85
      %s87 = sphi 0, %s85
      %s88 = sphi 0, %s87
      %s102 = sphi 0, %s88
      %s106 = sphi 0, %s106
      %s108 = sphi 0, %s106
      %s109 = sphi 0, %s108
      %s123 = sphi 0, %s109
      %s127 = sphi 0, %s127
      %s129 = sphi 0, %s127
      %s130 = sphi 0, %s129
      %s144 = sphi 0, %s130
      %s148 = sphi 0, %s148
      %s150 = sphi 0, %s148
      %s151 = sphi 0, %s150
      %s165 = sphi 0, %s151
      %s169 = sphi 0, %s169
      %s171 = sphi 0, %s169
      %s172 = sphi 0, %s171
      %s186 = sphi 0, %s172
      %s190 = sphi 0, %s190
      %s192 = sphi 0, %s190
      %s193 = sphi 0, %s192
      %s207 = sphi 0, %s193
      %s211 = sphi 0, %s211
      %s213 = sphi 0, %s211
      %s214 = sphi 0, %s213
      %s228 = sphi 0, %s214
      %s232 = sphi 0, %s232
      %s234 = sphi 0, %s232
      %s235 = sphi 0, %s234
      %s249 = sphi 0, %s235
      %s253 = sphi 0, %s253
      %s255 = sphi 0, %s253
      %s256 = sphi 0, %s255
      %s270 = sphi 0, %s256
      %s274 = sphi 0, %s274
      %s276 = sphi 0, %s274
      %s277 = sphi 0, %s276
      %s291 = sphi 0, %s277
      %s295 = sphi 0, %s295
      %s297 = sphi 0, %s295
      %s298 = sphi 0, %s297
      %s312 = sphi 0, %s298
      %s316 = sphi 0, %s316
      %s318 = sphi 0, %s316
      %s319 = sphi 0, %s318
      %s333 = sphi 0, %s319
      %s339 = sphi 0, %s341
      %s342 = sphi 0, %s339
      %s343 = sphi 0, %s342
      %s359 = sphi 0, %s343
      %s365 = sphi 0, %s367
      %s368 = sphi 0, %s365
      %s369 = sphi 0, %s368
      %s385 = sphi 0, %s369
      %s391 = sphi 0, %s393
      %s394 = sphi 0, %s391
      %s395 = sphi 0, %s394
      %s411 = sphi 0, %s395
      %s417 = sphi 0, %s419
      %s420 = sphi 0, %s417
      %s421 = sphi 0, %s420
      %s437 = sphi 0, %s421
      %s443 = sphi 0, %s445
      %s446 = sphi 0, %s443
      %s447 = sphi 0, %s446
      %s463 = sphi 0, %s447
      %s469 = sphi 0, %s471
      %s472 = sphi 0, %s469
      %s473 = sphi 0, %s472
      %s489 = sphi 0, %s473
    $region4: #{discriminator_stft_forward.1} parent=1 // loop_header_branch
      %33 = sbr.rel (%p31) target = $region8
    $region5: #{discriminator_stft_forward.1} parent=1 // loop_body
      %s35 = ssub.s32 %s30, 1
      %s36 = ssub.s32 %s30, 2
      %s37 = sadd.s32 %s30, 1
      %s38 = ssub.s32 %s30, %s37
      %p39 = scmp.eq.s32.totalorder %s38, 0
      %s41 = sadd.s32 %s40, 1
      %s42 = scalar_select %p39, %s40, %s41
      %p45 = pneg %p39
      %p46 = scmp.eq.s32.totalorder %s30, 1
      %p47 = por %p45, %p46
      %p48 = scmp.ne.s32.totalorder %s40, %s43
      %p49 = scmp.eq.s32.totalorder %s30, 0
      %p50 = por %p48, %p49
      %p51 = scmp.ne.s32.totalorder %s40, %s43
      %p52 = scmp.eq.s32.totalorder %s35, 1
      %p53 = por %p51, %p52
      %p54 = scmp.ne.s32.totalorder %s43, %s44
      %p55 = scmp.eq.s32.totalorder %s35, 0
      %p56 = por %p54, %p55
      %p57 = scmp.ne.s32.totalorder %s43, %s44
      %p58 = scmp.eq.s32.totalorder %s36, 1
      %p59 = por %p57, %p58
      %p61 = scmp.ne.s32.totalorder %s44, %s60
      %p62 = scmp.eq.s32.totalorder %s36, 0
      %p63 = por %p61, %p62
      %s65 = sadd.s32 %s64, 1
      %p68 = scmp.eq.s32.totalorder %s30, 1
      %p69 = scmp.ne.s32.totalorder %s64, %s66
      %p70 = scmp.eq.s32.totalorder %s30, 0
      %p71 = por %p69, %p70
      %p72 = scmp.ne.s32.totalorder %s64, %s66
      %p73 = scmp.eq.s32.totalorder %s35, 1
      %p74 = por %p72, %p73
      %p75 = scmp.ne.s32.totalorder %s66, %s67
      %p76 = scmp.eq.s32.totalorder %s35, 0
      %p77 = por %p75, %p76
      %p78 = scmp.ne.s32.totalorder %s66, %s67
      %p79 = scmp.eq.s32.totalorder %s36, 1
      %p80 = por %p78, %p79
      %p82 = scmp.ne.s32.totalorder %s67, %s81
      %p83 = scmp.eq.s32.totalorder %s36, 0
      %p84 = por %p82, %p83
      %s86 = sadd.s32 %s85, 1
      %p89 = scmp.eq.s32.totalorder %s30, 1
      %p90 = scmp.ne.s32.totalorder %s85, %s87
      %p91 = scmp.eq.s32.totalorder %s30, 0
      %p92 = por %p90, %p91
      %p93 = scmp.ne.s32.totalorder %s85, %s87
      %p94 = scmp.eq.s32.totalorder %s35, 1
      %p95 = por %p93, %p94
      %p96 = scmp.ne.s32.totalorder %s87, %s88
      %p97 = scmp.eq.s32.totalorder %s35, 0
      %p98 = por %p96, %p97
      %p99 = scmp.ne.s32.totalorder %s87, %s88
      %p100 = scmp.eq.s32.totalorder %s36, 1
      %p101 = por %p99, %p100
      %p103 = scmp.ne.s32.totalorder %s88, %s102
      %p104 = scmp.eq.s32.totalorder %s36, 0
      %p105 = por %p103, %p104
      %s107 = sadd.s32 %s106, 1
      %p110 = scmp.eq.s32.totalorder %s30, 1
      %p111 = scmp.ne.s32.totalorder %s106, %s108
      %p112 = scmp.eq.s32.totalorder %s30, 0
      %p113 = por %p111, %p112
      %p114 = scmp.ne.s32.totalorder %s106, %s108
      %p115 = scmp.eq.s32.totalorder %s35, 1
      %p116 = por %p114, %p115
      %p117 = scmp.ne.s32.totalorder %s108, %s109
      %p118 = scmp.eq.s32.totalorder %s35, 0
      %p119 = por %p117, %p118
      %p120 = scmp.ne.s32.totalorder %s108, %s109
      %p121 = scmp.eq.s32.totalorder %s36, 1
      %p122 = por %p120, %p121
      %p124 = scmp.ne.s32.totalorder %s109, %s123
      %p125 = scmp.eq.s32.totalorder %s36, 0
      %p126 = por %p124, %p125
      %s128 = sadd.s32 %s127, 1
      %p131 = scmp.eq.s32.totalorder %s30, 1
      %p132 = scmp.ne.s32.totalorder %s127, %s129
      %p133 = scmp.eq.s32.totalorder %s30, 0
      %p134 = por %p132, %p133
      %p135 = scmp.ne.s32.totalorder %s127, %s129
      %p136 = scmp.eq.s32.totalorder %s35, 1
      %p137 = por %p135, %p136
      %p138 = scmp.ne.s32.totalorder %s129, %s130
      %p139 = scmp.eq.s32.totalorder %s35, 0
      %p140 = por %p138, %p139
      %p141 = scmp.ne.s32.totalorder %s129, %s130
      %p142 = scmp.eq.s32.totalorder %s36, 1
      %p143 = por %p141, %p142
      %p145 = scmp.ne.s32.totalorder %s130, %s144
      %p146 = scmp.eq.s32.totalorder %s36, 0
      %p147 = por %p145, %p146
      %s149 = sadd.s32 %s148, 1
      %p152 = scmp.eq.s32.totalorder %s30, 1
      %p153 = scmp.ne.s32.totalorder %s148, %s150
      %p154 = scmp.eq.s32.totalorder %s30, 0
      %p155 = por %p153, %p154
      %p156 = scmp.ne.s32.totalorder %s148, %s150
      %p157 = scmp.eq.s32.totalorder %s35, 1
      %p158 = por %p156, %p157
      %p159 = scmp.ne.s32.totalorder %s150, %s151
      %p160 = scmp.eq.s32.totalorder %s35, 0
      %p161 = por %p159, %p160
      %p162 = scmp.ne.s32.totalorder %s150, %s151
      %p163 = scmp.eq.s32.totalorder %s36, 1
      %p164 = por %p162, %p163
      %p166 = scmp.ne.s32.totalorder %s151, %s165
      %p167 = scmp.eq.s32.totalorder %s36, 0
      %p168 = por %p166, %p167
      %s170 = sadd.s32 %s169, 1
      %p173 = scmp.eq.s32.totalorder %s30, 1
      %p174 = scmp.ne.s32.totalorder %s169, %s171
      %p175 = scmp.eq.s32.totalorder %s30, 0
      %p176 = por %p174, %p175
      %p177 = scmp.ne.s32.totalorder %s169, %s171
      %p178 = scmp.eq.s32.totalorder %s35, 1
      %p179 = por %p177, %p178
      %p180 = scmp.ne.s32.totalorder %s171, %s172
      %p181 = scmp.eq.s32.totalorder %s35, 0
      %p182 = por %p180, %p181
      %p183 = scmp.ne.s32.totalorder %s171, %s172
      %p184 = scmp.eq.s32.totalorder %s36, 1
      %p185 = por %p183, %p184
      %p187 = scmp.ne.s32.totalorder %s172, %s186
      %p188 = scmp.eq.s32.totalorder %s36, 0
      %p189 = por %p187, %p188
      %s191 = sadd.s32 %s190, 1
      %p194 = scmp.eq.s32.totalorder %s30, 1
      %p195 = scmp.ne.s32.totalorder %s190, %s192
      %p196 = scmp.eq.s32.totalorder %s30, 0
      %p197 = por %p195, %p196
      %p198 = scmp.ne.s32.totalorder %s190, %s192
      %p199 = scmp.eq.s32.totalorder %s35, 1
      %p200 = por %p198, %p199
      %p201 = scmp.ne.s32.totalorder %s192, %s193
      %p202 = scmp.eq.s32.totalorder %s35, 0
      %p203 = por %p201, %p202
      %p204 = scmp.ne.s32.totalorder %s192, %s193
      %p205 = scmp.eq.s32.totalorder %s36, 1
      %p206 = por %p204, %p205
      %p208 = scmp.ne.s32.totalorder %s193, %s207
      %p209 = scmp.eq.s32.totalorder %s36, 0
      %p210 = por %p208, %p209
      %s212 = sadd.s32 %s211, 1
      %p215 = scmp.eq.s32.totalorder %s30, 1
      %p216 = scmp.ne.s32.totalorder %s211, %s213
      %p217 = scmp.eq.s32.totalorder %s30, 0
      %p218 = por %p216, %p217
      %p219 = scmp.ne.s32.totalorder %s211, %s213
      %p220 = scmp.eq.s32.totalorder %s35, 1
      %p221 = por %p219, %p220
      %p222 = scmp.ne.s32.totalorder %s213, %s214
      %p223 = scmp.eq.s32.totalorder %s35, 0
      %p224 = por %p222, %p223
      %p225 = scmp.ne.s32.totalorder %s213, %s214
      %p226 = scmp.eq.s32.totalorder %s36, 1
      %p227 = por %p225, %p226
      %p229 = scmp.ne.s32.totalorder %s214, %s228
      %p230 = scmp.eq.s32.totalorder %s36, 0
      %p231 = por %p229, %p230
      %s233 = sadd.s32 %s232, 1
      %p236 = scmp.eq.s32.totalorder %s30, 1
      %p237 = scmp.ne.s32.totalorder %s232, %s234
      %p238 = scmp.eq.s32.totalorder %s30, 0
      %p239 = por %p237, %p238
      %p240 = scmp.ne.s32.totalorder %s232, %s234
      %p241 = scmp.eq.s32.totalorder %s35, 1
      %p242 = por %p240, %p241
      %p243 = scmp.ne.s32.totalorder %s234, %s235
      %p244 = scmp.eq.s32.totalorder %s35, 0
      %p245 = por %p243, %p244
      %p246 = scmp.ne.s32.totalorder %s234, %s235
      %p247 = scmp.eq.s32.totalorder %s36, 1
      %p248 = por %p246, %p247
      %p250 = scmp.ne.s32.totalorder %s235, %s249
      %p251 = scmp.eq.s32.totalorder %s36, 0
      %p252 = por %p250, %p251
      %s254 = sadd.s32 %s253, 1
      %p257 = scmp.eq.s32.totalorder %s30, 1
      %p258 = scmp.ne.s32.totalorder %s253, %s255
      %p259 = scmp.eq.s32.totalorder %s30, 0
      %p260 = por %p258, %p259
      %p261 = scmp.ne.s32.totalorder %s253, %s255
      %p262 = scmp.eq.s32.totalorder %s35, 1
      %p263 = por %p261, %p262
      %p264 = scmp.ne.s32.totalorder %s255, %s256
      %p265 = scmp.eq.s32.totalorder %s35, 0
      %p266 = por %p264, %p265
      %p267 = scmp.ne.s32.totalorder %s255, %s256
      %p268 = scmp.eq.s32.totalorder %s36, 1
      %p269 = por %p267, %p268
      %p271 = scmp.ne.s32.totalorder %s256, %s270
      %p272 = scmp.eq.s32.totalorder %s36, 0
      %p273 = por %p271, %p272
      %s275 = sadd.s32 %s274, 1
      %p278 = scmp.eq.s32.totalorder %s30, 1
      %p279 = scmp.ne.s32.totalorder %s274, %s276
      %p280 = scmp.eq.s32.totalorder %s30, 0
      %p281 = por %p279, %p280
      %p282 = scmp.ne.s32.totalorder %s274, %s276
      %p283 = scmp.eq.s32.totalorder %s35, 1
      %p284 = por %p282, %p283
      %p285 = scmp.ne.s32.totalorder %s276, %s277
      %p286 = scmp.eq.s32.totalorder %s35, 0
      %p287 = por %p285, %p286
      %p288 = scmp.ne.s32.totalorder %s276, %s277
      %p289 = scmp.eq.s32.totalorder %s36, 1
      %p290 = por %p288, %p289
      %p292 = scmp.ne.s32.totalorder %s277, %s291
      %p293 = scmp.eq.s32.totalorder %s36, 0
      %p294 = por %p292, %p293
      %s296 = sadd.s32 %s295, 1
      %p299 = scmp.eq.s32.totalorder %s30, 1
      %p300 = scmp.ne.s32.totalorder %s295, %s297
      %p301 = scmp.eq.s32.totalorder %s30, 0
      %p302 = por %p300, %p301
      %p303 = scmp.ne.s32.totalorder %s295, %s297
      %p304 = scmp.eq.s32.totalorder %s35, 1
      %p305 = por %p303, %p304
      %p306 = scmp.ne.s32.totalorder %s297, %s298
      %p307 = scmp.eq.s32.totalorder %s35, 0
      %p308 = por %p306, %p307
      %p309 = scmp.ne.s32.totalorder %s297, %s298
      %p310 = scmp.eq.s32.totalorder %s36, 1
      %p311 = por %p309, %p310
      %p313 = scmp.ne.s32.totalorder %s298, %s312
      %p314 = scmp.eq.s32.totalorder %s36, 0
      %p315 = por %p313, %p314
      %s317 = sadd.s32 %s316, 1
      %p320 = scmp.eq.s32.totalorder %s30, 1
      %p321 = scmp.ne.s32.totalorder %s316, %s318
      %p322 = scmp.eq.s32.totalorder %s30, 0
      %p323 = por %p321, %p322
      %p324 = scmp.ne.s32.totalorder %s316, %s318
      %p325 = scmp.eq.s32.totalorder %s35, 1
      %p326 = por %p324, %p325
      %p327 = scmp.ne.s32.totalorder %s318, %s319
      %p328 = scmp.eq.s32.totalorder %s35, 0
      %p329 = por %p327, %p328
      %p330 = scmp.ne.s32.totalorder %s318, %s319
      %p331 = scmp.eq.s32.totalorder %s36, 1
      %p332 = por %p330, %p331
      %p334 = scmp.ne.s32.totalorder %s319, %s333
      %p335 = scmp.eq.s32.totalorder %s36, 0
      %p336 = por %p334, %p335
      %s337 = ssub.s32 %s30, %s37
      %p338 = scmp.eq.s32.totalorder %s337, 0
      %s340 = sadd.s32 %s339, 1
      %s341 = scalar_select %p338, %s339, %s340
      %p344 = pneg %p338
      %p345 = scmp.eq.s32.totalorder %s30, 1
      %p346 = por %p344, %p345
      %p347 = scmp.ne.s32.totalorder %s339, %s342
      %p348 = scmp.eq.s32.totalorder %s30, 0
      %p349 = por %p347, %p348
      %p350 = scmp.ne.s32.totalorder %s339, %s342
      %p351 = scmp.eq.s32.totalorder %s35, 1
      %p352 = por %p350, %p351
      %p353 = scmp.ne.s32.totalorder %s342, %s343
      %p354 = scmp.eq.s32.totalorder %s35, 0
      %p355 = por %p353, %p354
      %p356 = scmp.ne.s32.totalorder %s342, %s343
      %p357 = scmp.eq.s32.totalorder %s36, 1
      %p358 = por %p356, %p357
      %p360 = scmp.ne.s32.totalorder %s343, %s359
      %p361 = scmp.eq.s32.totalorder %s36, 0
      %p362 = por %p360, %p361
      %s363 = ssub.s32 %s30, %s37
      %p364 = scmp.eq.s32.totalorder %s363, 0
      %s366 = sadd.s32 %s365, 1
      %s367 = scalar_select %p364, %s365, %s366
      %p370 = pneg %p364
      %p371 = scmp.eq.s32.totalorder %s30, 1
      %p372 = por %p370, %p371
      %p373 = scmp.ne.s32.totalorder %s365, %s368
      %p374 = scmp.eq.s32.totalorder %s30, 0
      %p375 = por %p373, %p374
      %p376 = scmp.ne.s32.totalorder %s365, %s368
      %p377 = scmp.eq.s32.totalorder %s35, 1
      %p378 = por %p376, %p377
      %p379 = scmp.ne.s32.totalorder %s368, %s369
      %p380 = scmp.eq.s32.totalorder %s35, 0
      %p381 = por %p379, %p380
      %p382 = scmp.ne.s32.totalorder %s368, %s369
      %p383 = scmp.eq.s32.totalorder %s36, 1
      %p384 = por %p382, %p383
      %p386 = scmp.ne.s32.totalorder %s369, %s385
      %p387 = scmp.eq.s32.totalorder %s36, 0
      %p388 = por %p386, %p387
      %s389 = ssub.s32 %s30, %s37
      %p390 = scmp.eq.s32.totalorder %s389, 0
      %s392 = sadd.s32 %s391, 1
      %s393 = scalar_select %p390, %s391, %s392
      %p396 = pneg %p390
      %p397 = scmp.eq.s32.totalorder %s30, 1
      %p398 = por %p396, %p397
      %p399 = scmp.ne.s32.totalorder %s391, %s394
      %p400 = scmp.eq.s32.totalorder %s30, 0
      %p401 = por %p399, %p400
      %p402 = scmp.ne.s32.totalorder %s391, %s394
      %p403 = scmp.eq.s32.totalorder %s35, 1
      %p404 = por %p402, %p403
      %p405 = scmp.ne.s32.totalorder %s394, %s395
      %p406 = scmp.eq.s32.totalorder %s35, 0
      %p407 = por %p405, %p406
      %p408 = scmp.ne.s32.totalorder %s394, %s395
      %p409 = scmp.eq.s32.totalorder %s36, 1
      %p410 = por %p408, %p409
      %p412 = scmp.ne.s32.totalorder %s395, %s411
      %p413 = scmp.eq.s32.totalorder %s36, 0
      %p414 = por %p412, %p413
      %s415 = ssub.s32 %s30, %s37
      %p416 = scmp.eq.s32.totalorder %s415, 0
      %s418 = sadd.s32 %s417, 1
      %s419 = scalar_select %p416, %s417, %s418
      %p422 = pneg %p416
      %p423 = scmp.eq.s32.totalorder %s30, 1
      %p424 = por %p422, %p423
      %p425 = scmp.ne.s32.totalorder %s417, %s420
      %p426 = scmp.eq.s32.totalorder %s30, 0
      %p427 = por %p425, %p426
      %p428 = scmp.ne.s32.totalorder %s417, %s420
      %p429 = scmp.eq.s32.totalorder %s35, 1
      %p430 = por %p428, %p429
      %p431 = scmp.ne.s32.totalorder %s420, %s421
      %p432 = scmp.eq.s32.totalorder %s35, 0
      %p433 = por %p431, %p432
      %p434 = scmp.ne.s32.totalorder %s420, %s421
      %p435 = scmp.eq.s32.totalorder %s36, 1
      %p436 = por %p434, %p435
      %p438 = scmp.ne.s32.totalorder %s421, %s437
      %p439 = scmp.eq.s32.totalorder %s36, 0
      %p440 = por %p438, %p439
      %s441 = ssub.s32 %s30, %s37
      %p442 = scmp.eq.s32.totalorder %s441, 0
      %s444 = sadd.s32 %s443, 1
      %s445 = scalar_select %p442, %s443, %s444
      %p448 = pneg %p442
      %p449 = scmp.eq.s32.totalorder %s30, 1
      %p450 = por %p448, %p449
      %p451 = scmp.ne.s32.totalorder %s443, %s446
      %p452 = scmp.eq.s32.totalorder %s30, 0
      %p453 = por %p451, %p452
      %p454 = scmp.ne.s32.totalorder %s443, %s446
      %p455 = scmp.eq.s32.totalorder %s35, 1
      %p456 = por %p454, %p455
      %p457 = scmp.ne.s32.totalorder %s446, %s447
      %p458 = scmp.eq.s32.totalorder %s35, 0
      %p459 = por %p457, %p458
      %p460 = scmp.ne.s32.totalorder %s446, %s447
      %p461 = scmp.eq.s32.totalorder %s36, 1
      %p462 = por %p460, %p461
      %p464 = scmp.ne.s32.totalorder %s447, %s463
      %p465 = scmp.eq.s32.totalorder %s36, 0
      %p466 = por %p464, %p465
      %s467 = ssub.s32 %s30, %s37
      %p468 = scmp.eq.s32.totalorder %s467, 0
      %s470 = sadd.s32 %s469, 1
      %s471 = scalar_select %p468, %s469, %s470
      %p474 = pneg %p468
      %p475 = scmp.eq.s32.totalorder %s30, 1
      %p476 = por %p474, %p475
      %p477 = scmp.ne.s32.totalorder %s469, %s472
      %p478 = scmp.eq.s32.totalorder %s30, 0
      %p479 = por %p477, %p478
      %p480 = scmp.ne.s32.totalorder %s469, %s472
      %p481 = scmp.eq.s32.totalorder %s35, 1
      %p482 = por %p480, %p481
      %p483 = scmp.ne.s32.totalorder %s472, %s473
      %p484 = scmp.eq.s32.totalorder %s35, 0
      %p485 = por %p483, %p484
      %p486 = scmp.ne.s32.totalorder %s472, %s473
      %p487 = scmp.eq.s32.totalorder %s36, 1
      %p488 = por %p486, %p487
      %p490 = scmp.ne.s32.totalorder %s473, %s489
      %p491 = scmp.eq.s32.totalorder %s36, 0
      %p492 = por %p490, %p491
      %p493 = scmp.le.s32.totalorder 1, %s30
      %p494 = scmp.lt.s32.totalorder %s30, 3
      %p495 = pnand %p493, %p494
      %p496 = pneg %p495
      // Predicated region
      $region9: #{discriminator_stft_forward.1} parent=5 // pred_check
        _
      $region10: #{discriminator_stft_forward.1} parent=5 // pred_check_branch
        %498 = sbr.rel (%p495) target = $region12
      $region11: #{discriminator_stft_forward.1} parent=5 // pred_region
        %s499 = ssub.s32 %s30, 1
        // Predicated region
        $region13: #{discriminator_stft_forward.1} parent=11 // pred_check
          %p500 = pneg %p77
        $region14: #{discriminator_stft_forward.1} parent=11 // pred_check_branch
          %502 = sbr.rel (%p500) target = $region16
        $region15: #{discriminator_stft_forward.1} parent=11 // pred_region
          %s504 = ssub.s32 1024, 1024
          %505 = vsyncadd [#allocation3], %s504
          %s506 = sshll.u32 [#allocation2], 4
          %s507 = int_to_ptr.vmem [resolvable:$true] %s506
          %512 = dma.hbm_to_vmem [thread:$0]  %s1, 1024, %s507, [#allocation3], 128, 128, 8
        $region16: #{discriminator_stft_forward.1} parent=11 // pred_fallthru
          _
        // Predicated region
        $region17: #{discriminator_stft_forward.1} parent=11 // pred_check
          %p513 = pneg %p98
        $region18: #{discriminator_stft_forward.1} parent=11 // pred_check_branch
          %515 = sbr.rel (%p513) target = $region20
        $region19: #{discriminator_stft_forward.1} parent=11 // pred_region
          %s517 = ssub.s32 9216, 9216
          %518 = vsyncadd [#allocation5], %s517
          %s519 = sshll.u32 [#allocation4], 4
          %s520 = int_to_ptr.vmem [resolvable:$true] %s519
          %525 = dma.hbm_to_vmem [thread:$0]  %s2, 9216, %s520, [#allocation5], 192, 192, 12
        $region20: #{discriminator_stft_forward.1} parent=11 // pred_fallthru
          _
        // Predicated region
        $region21: #{discriminator_stft_forward.1} parent=11 // pred_check
          %p526 = pneg %p119
        $region22: #{discriminator_stft_forward.1} parent=11 // pred_check_branch
          %528 = sbr.rel (%p526) target = $region24
        $region23: #{discriminator_stft_forward.1} parent=11 // pred_region
          %s530 = ssub.s32 18432, 18432
          %531 = vsyncadd [#allocation5], %s530
          %s532 = sshll.u32 [#allocation6], 4
          %s533 = int_to_ptr.vmem [resolvable:$true] %s532
          %538 = dma.hbm_to_vmem [thread:$0]  %s3, 18432, %s533, [#allocation5], 128, 128, 8
        $region24: #{discriminator_stft_forward.1} parent=11 // pred_fallthru
          _
        // Predicated region
        $region25: #{discriminator_stft_forward.1} parent=11 // pred_check
          %p539 = pneg %p140
        $region26: #{discriminator_stft_forward.1} parent=11 // pred_check_branch
          %541 = sbr.rel (%p539) target = $region28
        $region27: #{discriminator_stft_forward.1} parent=11 // pred_region
          %s543 = ssub.s32 6144, 6144
          %544 = vsyncadd [#allocation8], %s543
          %s545 = sshll.u32 [#allocation7], 4
          %s546 = int_to_ptr.vmem [resolvable:$true] %s545
          %551 = dma.hbm_to_vmem [thread:$0]  %s4, 6144, %s546, [#allocation8], 64, 64, 4
        $region28: #{discriminator_stft_forward.1} parent=11 // pred_fallthru
          _
        // Predicated region
        $region29: #{discriminator_stft_forward.1} parent=11 // pred_check
          %p552 = pneg %p161
        $region30: #{discriminator_stft_forward.1} parent=11 // pred_check_branch
          %554 = sbr.rel (%p552) target = $region32
        $region31: #{discriminator_stft_forward.1} parent=11 // pred_region
          %s556 = ssub.s32 3072, 3072
          %557 = vsyncadd [#allocation8], %s556
          %s558 = sshll.u32 [#allocation9], 4
          %s559 = int_to_ptr.vmem [resolvable:$true] %s558
          %564 = dma.hbm_to_vmem [thread:$0]  %s5, 3072, %s559, [#allocation8], 64, 64, 4
        $region32: #{discriminator_stft_forward.1} parent=11 // pred_fallthru
          _
        // Predicated region
        $region33: #{discriminator_stft_forward.1} parent=11 // pred_check
          %p565 = pneg %p182
        $region34: #{discriminator_stft_forward.1} parent=11 // pred_check_branch
          %567 = sbr.rel (%p565) target = $region36
        $region35: #{discriminator_stft_forward.1} parent=11 // pred_region
          %s569 = ssub.s32 3072, 3072
          %570 = vsyncadd [#allocation11], %s569
          %s571 = sshll.u32 [#allocation10], 4
          %s572 = int_to_ptr.vmem [resolvable:$true] %s571
          %577 = dma.hbm_to_vmem [thread:$0]  %s6, 3072, %s572, [#allocation11], 64, 64, 4
        $region36: #{discriminator_stft_forward.1} parent=11 // pred_fallthru
          _
        // Predicated region
        $region37: #{discriminator_stft_forward.1} parent=11 // pred_check
          %p578 = pneg %p203
        $region38: #{discriminator_stft_forward.1} parent=11 // pred_check_branch
          %580 = sbr.rel (%p578) target = $region40
        $region39: #{discriminator_stft_forward.1} parent=11 // pred_region
          %s582 = ssub.s32 3072, 3072
          %583 = vsyncadd [#allocation11], %s582
          %s584 = sshll.u32 [#allocation12], 4
          %s585 = int_to_ptr.vmem [resolvable:$true] %s584
          %590 = dma.hbm_to_vmem [thread:$0]  %s7, 3072, %s585, [#allocation11], 64, 64, 4
        $region40: #{discriminator_stft_forward.1} parent=11 // pred_fallthru
          _
        // Predicated region
        $region41: #{discriminator_stft_forward.1} parent=11 // pred_check
          %p591 = pneg %p224
        $region42: #{discriminator_stft_forward.1} parent=11 // pred_check_branch
          %593 = sbr.rel (%p591) target = $region44
        $region43: #{discriminator_stft_forward.1} parent=11 // pred_region
          _
        $region44: #{discriminator_stft_forward.1} parent=11 // pred_fallthru
          _
        // Predicated region
        $region45: #{discriminator_stft_forward.1} parent=11 // pred_check
          %p594 = pneg %p245
        $region46: #{discriminator_stft_forward.1} parent=11 // pred_check_branch
          %596 = sbr.rel (%p594) target = $region48
        $region47: #{discriminator_stft_forward.1} parent=11 // pred_region
          _
        $region48: #{discriminator_stft_forward.1} parent=11 // pred_fallthru
          _
        // Predicated region
        $region49: #{discriminator_stft_forward.1} parent=11 // pred_check
          %p597 = pneg %p266
        $region50: #{discriminator_stft_forward.1} parent=11 // pred_check_branch
          %599 = sbr.rel (%p597) target = $region52
        $region51: #{discriminator_stft_forward.1} parent=11 // pred_region
          _
        $region52: #{discriminator_stft_forward.1} parent=11 // pred_fallthru
          _
        // Predicated region
        $region53: #{discriminator_stft_forward.1} parent=11 // pred_check
          %p600 = pneg %p287
        $region54: #{discriminator_stft_forward.1} parent=11 // pred_check_branch
          %602 = sbr.rel (%p600) target = $region56
        $region55: #{discriminator_stft_forward.1} parent=11 // pred_region
          _
        $region56: #{discriminator_stft_forward.1} parent=11 // pred_fallthru
          _
        // Predicated region
        $region57: #{discriminator_stft_forward.1} parent=11 // pred_check
          %p603 = pneg %p308
        $region58: #{discriminator_stft_forward.1} parent=11 // pred_check_branch
          %605 = sbr.rel (%p603) target = $region60
        $region59: #{discriminator_stft_forward.1} parent=11 // pred_region
          _
        $region60: #{discriminator_stft_forward.1} parent=11 // pred_fallthru
          _
        // Predicated region
        $region61: #{discriminator_stft_forward.1} parent=11 // pred_check
          %p606 = pneg %p329
        $region62: #{discriminator_stft_forward.1} parent=11 // pred_check_branch
          %608 = sbr.rel (%p606) target = $region64
        $region63: #{discriminator_stft_forward.1} parent=11 // pred_region
          _
        $region64: #{discriminator_stft_forward.1} parent=11 // pred_fallthru
          _
      $region12: #{discriminator_stft_forward.1} parent=5 // pred_fallthru
        _
      %p609 = scmp.lt.s32.totalorder %s30, 2
      // Predicated region
      $region65: #{discriminator_stft_forward.1} parent=5 // pred_check
        %p610 = pneg %p609
      $region66: #{discriminator_stft_forward.1} parent=5 // pred_check_branch
        %612 = sbr.rel (%p610) target = $region68
      $region67: #{discriminator_stft_forward.1} parent=5 // pred_region
        // Predicated region
        $region69: #{discriminator_stft_forward.1} parent=67 // pred_check
          %p613 = pneg %p50
        $region70: #{discriminator_stft_forward.1} parent=67 // pred_check_branch
          %615 = sbr.rel (%p613) target = $region72
        $region71: #{discriminator_stft_forward.1} parent=67 // pred_region
          %p616 = scmp.lt.s32.totalorder %s30, 1
          %s617 = scalar_select %p616, %s30, 1
          %s618 = smul.addr %s617, 2
          %s619 = smul.addr %s618, 8
          %s620 = scalar_lea.vmem %s0, %s619
        $region72: #{discriminator_stft_forward.1} parent=67 // pred_fallthru
          _
      $region68: #{discriminator_stft_forward.1} parent=5 // pred_fallthru
        _
      %p621 = scmp.le.s32.totalorder 1, %s30
      %p622 = scmp.lt.s32.totalorder %s30, 3
      %p623 = pnand %p621, %p622
      %p624 = pneg %p623
      // Predicated region
      $region73: #{discriminator_stft_forward.1} parent=5 // pred_check
        _
      $region74: #{discriminator_stft_forward.1} parent=5 // pred_check_branch
        %626 = sbr.rel (%p623) target = $region76
      $region75: #{discriminator_stft_forward.1} parent=5 // pred_region
        %s627 = ssub.s32 %s30, 1
        // Predicated region
        $region77: #{discriminator_stft_forward.1} parent=75 // pred_check
          %p628 = pneg %p77
        $region78: #{discriminator_stft_forward.1} parent=75 // pred_check_branch
          %630 = sbr.rel (%p628) target = $region80
        $region79: #{discriminator_stft_forward.1} parent=75 // pred_region
          %631 = dma.done [#allocation3], 1024
        $region80: #{discriminator_stft_forward.1} parent=75 // pred_fallthru
          _
        // Predicated region
        $region81: #{discriminator_stft_forward.1} parent=75 // pred_check
          %p632 = pneg %p98
        $region82: #{discriminator_stft_forward.1} parent=75 // pred_check_branch
          %634 = sbr.rel (%p632) target = $region84
        $region83: #{discriminator_stft_forward.1} parent=75 // pred_region
          %635 = dma.done [#allocation5], 9216
        $region84: #{discriminator_stft_forward.1} parent=75 // pred_fallthru
          _
        // Predicated region
        $region85: #{discriminator_stft_forward.1} parent=75 // pred_check
          %p636 = pneg %p119
        $region86: #{discriminator_stft_forward.1} parent=75 // pred_check_branch
          %638 = sbr.rel (%p636) target = $region88
        $region87: #{discriminator_stft_forward.1} parent=75 // pred_region
          %639 = dma.done [#allocation5], 18432
        $region88: #{discriminator_stft_forward.1} parent=75 // pred_fallthru
          _
        // Predicated region
        $region89: #{discriminator_stft_forward.1} parent=75 // pred_check
          %p640 = pneg %p140
        $region90: #{discriminator_stft_forward.1} parent=75 // pred_check_branch
          %642 = sbr.rel (%p640) target = $region92
        $region91: #{discriminator_stft_forward.1} parent=75 // pred_region
          %643 = dma.done [#allocation8], 6144
        $region92: #{discriminator_stft_forward.1} parent=75 // pred_fallthru
          _
        // Predicated region
        $region93: #{discriminator_stft_forward.1} parent=75 // pred_check
          %p644 = pneg %p161
        $region94: #{discriminator_stft_forward.1} parent=75 // pred_check_branch
          %646 = sbr.rel (%p644) target = $region96
        $region95: #{discriminator_stft_forward.1} parent=75 // pred_region
          %647 = dma.done [#allocation8], 3072
        $region96: #{discriminator_stft_forward.1} parent=75 // pred_fallthru
          _
        // Predicated region
        $region97: #{discriminator_stft_forward.1} parent=75 // pred_check
          %p648 = pneg %p182
        $region98: #{discriminator_stft_forward.1} parent=75 // pred_check_branch
          %650 = sbr.rel (%p648) target = $region100
        $region99: #{discriminator_stft_forward.1} parent=75 // pred_region
          %651 = dma.done [#allocation11], 3072
        $region100: #{discriminator_stft_forward.1} parent=75 // pred_fallthru
          _
        // Predicated region
        $region101: #{discriminator_stft_forward.1} parent=75 // pred_check
          %p652 = pneg %p203
        $region102: #{discriminator_stft_forward.1} parent=75 // pred_check_branch
          %654 = sbr.rel (%p652) target = $region104
        $region103: #{discriminator_stft_forward.1} parent=75 // pred_region
          %655 = dma.done [#allocation11], 3072
        $region104: #{discriminator_stft_forward.1} parent=75 // pred_fallthru
          _
        %p656 = scmp.lt.s32.totalorder %s35, 1
        %s657 = scalar_select %p656, %s35, 1
        %s658 = smul.addr %s657, 2
        %s659 = smul.addr %s658, 8
        %s660 = scalar_lea.vmem %s0, %s659
        %p661 = pneg %p56
        %p662 = pneg %p53
        %p663 = pneg %p77
        %p664 = pneg %p74
        %p665 = pneg %p98
        %p666 = pneg %p95
        %p667 = pneg %p119
        %p668 = pneg %p116
        %p669 = pneg %p140
        %p670 = pneg %p137
        %p671 = pneg %p161
        %p672 = pneg %p158
        %p673 = pneg %p182
        %p674 = pneg %p179
        %p675 = pneg %p203
        %p676 = pneg %p200
        %p677 = pneg %p224
        %p678 = pneg %p221
        %p679 = pneg %p245
        %p680 = pneg %p242
        %p681 = pneg %p266
        %p682 = pneg %p263
        %p683 = pneg %p287
        %p684 = pneg %p284
        %p685 = pneg %p308
        %p686 = pneg %p305
        %p687 = pneg %p329
        %p688 = pneg %p326
        %p689 = pneg %p355
        %p690 = pneg %p352
        %p691 = scmp.lt.s32.totalorder %s35, 1
        %s692 = scalar_select %p691, %s35, 1
        %s693 = smul.addr %s692, 6
        %s694 = smul.addr %s693, 8
        %s695 = scalar_lea.vmem %s14, %s694
        %p696 = pneg %p381
        %p697 = pneg %p378
        %p698 = scmp.lt.s32.totalorder %s35, 1
        %s699 = scalar_select %p698, %s35, 1
        %s700 = smul.addr %s699, 4
        %s701 = smul.addr %s700, 8
        %s702 = scalar_lea.vmem %s15, %s701
        %p703 = pneg %p407
        %p704 = pneg %p404
        %p705 = scmp.lt.s32.totalorder %s35, 1
        %s706 = scalar_select %p705, %s35, 1
        %s707 = smul.addr %s706, 2
        %s708 = smul.addr %s707, 8
        %s709 = scalar_lea.vmem %s16, %s708
        %p710 = pneg %p433
        %p711 = pneg %p430
        %p712 = scmp.lt.s32.totalorder %s35, 1
        %s713 = scalar_select %p712, %s35, 1
        %s714 = smul.addr %s713, 2
        %s715 = smul.addr %s714, 8
        %s716 = scalar_lea.vmem %s17, %s715
        %p717 = pneg %p459
        %p718 = pneg %p456
        %p719 = scmp.lt.s32.totalorder %s35, 1
        %s720 = scalar_select %p719, %s35, 1
        %s721 = smul.addr %s720, 2
        %s722 = smul.addr %s721, 8
        %s723 = scalar_lea.vmem %s18, %s722
        %p724 = pneg %p485
        %p725 = pneg %p482
        %p726 = scmp.lt.s32.totalorder %s35, 1
        %s727 = scalar_select %p726, %s35, 1
        %s728 = smul.addr %s727, 2
        %s729 = smul.addr %s728, 8
        %s730 = scalar_lea.vmem %s19, %s729
        %p731 = scmp.lt.s32.totalorder %s35, 1
        %s732 = scalar_select %p731, %s35, 1
        %s733 = smul.addr %s732, 2
        %s734 = smul.addr %s733, 8
        %s735 = scalar_lea.vmem %s0, %s734
        %p736 = scmp.lt.s32.totalorder %s35, 1
        %s737 = scalar_select %p736, %s35, 1
        %s738 = smul.addr %s737, 6
        %s739 = smul.addr %s738, 8
        %s740 = scalar_lea.vmem %s14, %s739
        %p741 = scmp.lt.s32.totalorder %s35, 1
        %s742 = scalar_select %p741, %s35, 1
        %s743 = smul.addr %s742, 4
        %s744 = smul.addr %s743, 8
        %s745 = scalar_lea.vmem %s15, %s744
        %p746 = scmp.lt.s32.totalorder %s35, 1
        %s747 = scalar_select %p746, %s35, 1
        %s748 = smul.addr %s747, 2
        %s749 = smul.addr %s748, 8
        %s750 = scalar_lea.vmem %s16, %s749
        %p751 = scmp.lt.s32.totalorder %s35, 1
        %s752 = scalar_select %p751, %s35, 1
        %s753 = smul.addr %s752, 2
        %s754 = smul.addr %s753, 8
        %s755 = scalar_lea.vmem %s17, %s754
        %p756 = scmp.lt.s32.totalorder %s35, 1
        %s757 = scalar_select %p756, %s35, 1
        %s758 = smul.addr %s757, 2
        %s759 = smul.addr %s758, 8
        %s760 = scalar_lea.vmem %s18, %s759
        %p761 = scmp.lt.s32.totalorder %s35, 1
        %s762 = scalar_select %p761, %s35, 1
        %s763 = smul.addr %s762, 2
        %s764 = smul.addr %s763, 8
        %s765 = scalar_lea.vmem %s19, %s764
        %v767 = vld [vmem:[%s735] sm:$0xff]
        %v768 = vld [vmem:[%s735 + $0x8] sm:$0x1f]
        %v769 = vld [vmem:[%s735 + $0x1] sm:$0xff]
        %v770 = vld [vmem:[%s735 + $0x9] sm:$0x1f]
        %v771 = vld [vmem:[%s735 + $0x2] sm:$0xff]
        %v772 = vld [vmem:[%s735 + $0xa] sm:$0x1f]
        %v773 = vld [vmem:[%s735 + $0x3] sm:$0xff]
        %v774 = vld [vmem:[%s735 + $0xb] sm:$0x1f]
        %777 = vrot.lane.b32.xlu0 %v769, 16
        %v778 = vpop.permute.xlu0 %777
        %779 = vrot.lane.b32.xlu0 %v770, 16
        %v780 = vpop.permute.xlu0 %779
        %785 = vrot.lane.b32.xlu0 %v771, 32
        %v786 = vpop.permute.xlu0 %785
        %787 = vrot.lane.b32.xlu0 %v772, 32
        %v788 = vpop.permute.xlu0 %787
        %793 = vrot.lane.b32.xlu0 %v773, 48
        %v794 = vpop.permute.xlu0 %793
        %795 = vrot.lane.b32.xlu0 %v774, 48
        %v796 = vpop.permute.xlu0 %795
        %vm799 = vcmask 130048
        %v800 = vsel %vm799, %v767, %v778
        %v801 = vsel %vm799, %v768, %v780
        %vm802 = vcmask 261120
        %v803 = vsel %vm802, %v800, %v786
        %v804 = vsel %vm802, %v801, %v788
        %vm805 = vcmask 392192
        %v806 = vsel %vm805, %v803, %v794
        %v807 = vsel %vm805, %v804, %v796
        %v808 = vld [vmem:[#allocation2] sm:$0xff]
        %v809 = vld [vmem:[#allocation2 + $0x8] sm:$0xff]
        %v810 = vld [vmem:[#allocation2 + $0x10] sm:$0xff]
        %v811 = vld [vmem:[#allocation2 + $0x18] sm:$0xff]
        %v812 = vld [vmem:[#allocation2 + $0x20] sm:$0xff]
        %v813 = vld [vmem:[#allocation2 + $0x28] sm:$0xff]
        %v814 = vld [vmem:[#allocation2 + $0x30] sm:$0xff]
        %v815 = vld [vmem:[#allocation2 + $0x38] sm:$0xff]
        %vm816 = vcmask 523264
        %v818 = vsel %vm816, %v806, 0
        %v821 = vsel %vm816, %v807, 0
        %823 = vmatprep.subr.mxu0 0.0
        %824 = vmatpush1.msra.mxu0 0.0
        %825 = vmatprep.subr.mxu0 0.0
        %826 = vmatpush1.msra.mxu0 0.0
        %827 = vmatprep.subr.mxu0 0.0
        %828 = vmatpush1.msra.mxu0 0.0
        %829 = vmatprep.subr.mxu0 0.0
        %830 = vmatpush1.msra.mxu0 0.0
        %831 = vmatprep.subr.mxu0 0.0
        %832 = vmatpush1.msra.mxu0 0.0
        %833 = vmatprep.subr.mxu0 0.0
        %834 = vmatpush1.msra.mxu0 0.0
        %835 = vmatprep.subr.mxu0 0.0
        %836 = vmatpush1.msra.mxu0 0.0
        %837 = vmatprep.subr.mxu0 0.0
        %838 = vmatpush1.msra.mxu0 0.0
        %839 = vmatprep.subr.mxu0 0.0
        %840 = vmatpush1.msra.mxu0 %v815
        %841 = vmatprep.subr.mxu0 0.0
        %842 = vmatpush1.msra.mxu0 %v814
        %843 = vmatprep.subr.mxu0 0.0
        %844 = vmatpush1.msra.mxu0 %v813
        %845 = vmatprep.subr.mxu0 0.0
        %846 = vmatpush1.msra.mxu0 %v812
        %847 = vmatprep.subr.mxu0 0.0
        %848 = vmatpush1.msra.mxu0 %v811
        %849 = vmatprep.subr.mxu0 0.0
        %850 = vmatpush1.msra.mxu0 %v810
        %851 = vmatprep.subr.mxu0 0.0
        %852 = vmatpush1.msra.mxu0 %v809
        %853 = vmatprep.subr.mxu0 0.0
        %854 = vmatpush1.msra.mxu0 %v808
        %855 = vmatprep.subr.mxu0 0.0
        %856 = vmatpush2.msra.mxu0 0.0
        %857 = vmatprep.subr.mxu0 0.0
        %858 = vmatpush2.msra.mxu0 0.0
        %859 = vmatprep.subr.mxu0 0.0
        %860 = vmatpush2.msra.mxu0 0.0
        %861 = vmatprep.subr.mxu0 0.0
        %862 = vmatpush2.msra.mxu0 0.0
        %863 = vmatprep.subr.mxu0 0.0
        %864 = vmatpush2.msra.mxu0 0.0
        %865 = vmatprep.subr.mxu0 0.0
        %866 = vmatpush2.msra.mxu0 0.0
        %867 = vmatprep.subr.mxu0 0.0
        %868 = vmatpush2.msra.mxu0 0.0
        %869 = vmatprep.subr.mxu0 0.0
        %870 = vmatpush2.msra.mxu0 0.0
        %871 = vmatprep.subr.mxu0 0.0
        %872 = vmatpush2.msra.mxu0 0.0
        %873 = vmatprep.subr.mxu0 0.0
        %874 = vmatpush2.msra.mxu0 0.0
        %875 = vmatprep.subr.mxu0 0.0
        %876 = vmatpush2.msra.mxu0 0.0
        %877 = vmatprep.subr.mxu0 0.0
        %878 = vmatpush2.msra.mxu0 0.0
        %879 = vmatprep.subr.mxu0 0.0
        %880 = vmatpush2.msra.mxu0 0.0
        %881 = vmatprep.subr.mxu0 0.0
        %882 = vmatpush2.msra.mxu0 0.0
        %883 = vmatprep.subr.mxu0 0.0
        %884 = vmatpush2.msra.mxu0 0.0
        %885 = vmatprep.subr.mxu0 0.0
        %886 = vmatpush2.msra.mxu0 0.0
        %887 = vmatprep.mubr.f32.mxu0 0.0
        %888 = vmatmul.mubr.f32.gmra.mxu0 %v818
        %v889 = vpop.f32.mrf.mxu0
        %v890 = vadd.f32 0.0, %v889
        %v891 = vpop.f32.mrf.mxu0
        %892 = vmatprep.mubr.f32.mxu0 0.0
        %893 = vmatmul.mubr.f32.gmra.mxu0 %v821
        %v894 = vpop.f32.mrf.mxu0
        %v895 = vadd.f32 0.0, %v894
        %v896 = vpop.f32.mrf.mxu0
        %897 = vdwg.mxu0
        %vm900 = vcmask 1040384
        %v901 = vrot.slane %v890, 7
        %v902 = vrot.slane %v895, 7
        %v903 = vsel %vm900, %v901, %v902
        %v906 = vsel %vm900, 0.0, %v901
        %vm907 = vcmask 1045504
        %v908 = vsel %vm907, %v903, 0.0
        %v909 = vpack.c.bf16 %v908, %v906
        %v911 = vshrl.u32 %v909, 16
        %v913 = vshll.u32 %v909, 16
        %v915 = vrot.slane %v913, 1
        %v916 = vor.u32 %v911, %v915
        %v919 = vrot.slane %v909, 1
        %v921 = vld [vmem:[#allocation4] sm:$0xff]
        %v922 = vld [vmem:[#allocation4 + $0x8] sm:$0xf]
        %v923 = vld [vmem:[#allocation4 + $0xc] sm:$0xff]
        %v924 = vld [vmem:[#allocation4 + $0x14] sm:$0xf]
        %v925 = vld [vmem:[#allocation4 + $0x18] sm:$0xff]
        %v926 = vld [vmem:[#allocation4 + $0x20] sm:$0xf]
        %v927 = vld [vmem:[#allocation4 + $0x24] sm:$0xff]
        %v928 = vld [vmem:[#allocation4 + $0x2c] sm:$0xf]
        %v929 = vld [vmem:[#allocation4 + $0x30] sm:$0xff]
        %v930 = vld [vmem:[#allocation4 + $0x38] sm:$0xf]
        %v931 = vld [vmem:[#allocation4 + $0x3c] sm:$0xff]
        %v932 = vld [vmem:[#allocation4 + $0x44] sm:$0xf]
        %v933 = vld [vmem:[#allocation4 + $0x48] sm:$0xff]
        %v934 = vld [vmem:[#allocation4 + $0x50] sm:$0xf]
        %v935 = vld [vmem:[#allocation4 + $0x54] sm:$0xff]
        %v936 = vld [vmem:[#allocation4 + $0x5c] sm:$0xf]
        %v937 = vld [vmem:[#allocation4 + $0x60] sm:$0xff]
        %v938 = vld [vmem:[#allocation4 + $0x68] sm:$0xf]
        %v939 = vld [vmem:[#allocation4 + $0x6c] sm:$0xff]
        %v940 = vld [vmem:[#allocation4 + $0x74] sm:$0xf]
        %v941 = vld [vmem:[#allocation4 + $0x78] sm:$0xff]
        %v942 = vld [vmem:[#allocation4 + $0x80] sm:$0xf]
        %v943 = vld [vmem:[#allocation4 + $0x84] sm:$0xff]
        %v944 = vld [vmem:[#allocation4 + $0x8c] sm:$0xf]
        %v945 = vld [vmem:[#allocation4 + $0x90] sm:$0xff]
        %v946 = vld [vmem:[#allocation4 + $0x98] sm:$0xf]
        %v947 = vld [vmem:[#allocation4 + $0x9c] sm:$0xff]
        %v948 = vld [vmem:[#allocation4 + $0xa4] sm:$0xf]
        %v949 = vld [vmem:[#allocation4 + $0xa8] sm:$0xff]
        %v950 = vld [vmem:[#allocation4 + $0xb0] sm:$0xf]
        %v951 = vld [vmem:[#allocation4 + $0xb4] sm:$0xff]
        %v952 = vld [vmem:[#allocation4 + $0xbc] sm:$0xf]
        %v953 = vld [vmem:[#allocation4 + $0xc0] sm:$0xff]
        %v954 = vld [vmem:[#allocation4 + $0xc8] sm:$0xf]
        %v955 = vld [vmem:[#allocation4 + $0xcc] sm:$0xff]
        %v956 = vld [vmem:[#allocation4 + $0xd4] sm:$0xf]
        %v957 = vld [vmem:[#allocation4 + $0xd8] sm:$0xff]
        %v958 = vld [vmem:[#allocation4 + $0xe0] sm:$0xf]
        %v959 = vld [vmem:[#allocation4 + $0xe4] sm:$0xff]
        %v960 = vld [vmem:[#allocation4 + $0xec] sm:$0xf]
        %v961 = vld [vmem:[#allocation4 + $0xf0] sm:$0xff]
        %v962 = vld [vmem:[#allocation4 + $0xf8] sm:$0xf]
        %v963 = vld [vmem:[#allocation4 + $0xfc] sm:$0xff]
        %v964 = vld [vmem:[#allocation4 + $0x104] sm:$0xf]
        %v965 = vld [vmem:[#allocation4 + $0x108] sm:$0xff]
        %v966 = vld [vmem:[#allocation4 + $0x110] sm:$0xf]
        %v967 = vld [vmem:[#allocation4 + $0x114] sm:$0xff]
        %v968 = vld [vmem:[#allocation4 + $0x11c] sm:$0xf]
        %v969 = vld [vmem:[#allocation4 + $0x120] sm:$0xff]
        %v970 = vld [vmem:[#allocation4 + $0x128] sm:$0xf]
        %v971 = vld [vmem:[#allocation4 + $0x12c] sm:$0xff]
        %v972 = vld [vmem:[#allocation4 + $0x134] sm:$0xf]
        %v973 = vld [vmem:[#allocation4 + $0x138] sm:$0xff]
        %v974 = vld [vmem:[#allocation4 + $0x140] sm:$0xf]
        %v975 = vld [vmem:[#allocation4 + $0x144] sm:$0xff]
        %v976 = vld [vmem:[#allocation4 + $0x14c] sm:$0xf]
        %v977 = vld [vmem:[#allocation4 + $0x150] sm:$0xff]
        %v978 = vld [vmem:[#allocation4 + $0x158] sm:$0xf]
        %v979 = vld [vmem:[#allocation4 + $0x15c] sm:$0xff]
        %v980 = vld [vmem:[#allocation4 + $0x164] sm:$0xf]
        %v981 = vld [vmem:[#allocation4 + $0x168] sm:$0xff]
        %v982 = vld [vmem:[#allocation4 + $0x170] sm:$0xf]
        %v983 = vld [vmem:[#allocation4 + $0x174] sm:$0xff]
        %v984 = vld [vmem:[#allocation4 + $0x17c] sm:$0xf]
        %v985 = vld [vmem:[#allocation4 + $0x180] sm:$0xff]
        %v986 = vld [vmem:[#allocation4 + $0x188] sm:$0xf]
        %v987 = vld [vmem:[#allocation4 + $0x18c] sm:$0xff]
        %v988 = vld [vmem:[#allocation4 + $0x194] sm:$0xf]
        %v989 = vld [vmem:[#allocation4 + $0x198] sm:$0xff]
        %v990 = vld [vmem:[#allocation4 + $0x1a0] sm:$0xf]
        %v991 = vld [vmem:[#allocation4 + $0x1a4] sm:$0xff]
        %v992 = vld [vmem:[#allocation4 + $0x1ac] sm:$0xf]
        %v993 = vld [vmem:[#allocation4 + $0x1b0] sm:$0xff]
        %v994 = vld [vmem:[#allocation4 + $0x1b8] sm:$0xf]
        %v995 = vld [vmem:[#allocation4 + $0x1bc] sm:$0xff]
        %v996 = vld [vmem:[#allocation4 + $0x1c4] sm:$0xf]
        %v997 = vld [vmem:[#allocation4 + $0x1c8] sm:$0xff]
        %v998 = vld [vmem:[#allocation4 + $0x1d0] sm:$0xf]
        %v999 = vld [vmem:[#allocation4 + $0x1d4] sm:$0xff]
        %v1000 = vld [vmem:[#allocation4 + $0x1dc] sm:$0xf]
        %v1001 = vld [vmem:[#allocation4 + $0x1e0] sm:$0xff]
        %v1002 = vld [vmem:[#allocation4 + $0x1e8] sm:$0xf]
        %v1003 = vld [vmem:[#allocation4 + $0x1ec] sm:$0xff]
        %v1004 = vld [vmem:[#allocation4 + $0x1f4] sm:$0xf]
        %v1005 = vld [vmem:[#allocation4 + $0x1f8] sm:$0xff]
        %v1006 = vld [vmem:[#allocation4 + $0x200] sm:$0xf]
        %v1007 = vld [vmem:[#allocation4 + $0x204] sm:$0xff]
        %v1008 = vld [vmem:[#allocation4 + $0x20c] sm:$0xf]
        %v1009 = vld [vmem:[#allocation4 + $0x210] sm:$0xff]
        %v1010 = vld [vmem:[#allocation4 + $0x218] sm:$0xf]
        %v1011 = vld [vmem:[#allocation4 + $0x21c] sm:$0xff]
        %v1012 = vld [vmem:[#allocation4 + $0x224] sm:$0xf]
        %v1013 = vld [vmem:[#allocation4 + $0x228] sm:$0xff]
        %v1014 = vld [vmem:[#allocation4 + $0x230] sm:$0xf]
        %v1015 = vld [vmem:[#allocation4 + $0x234] sm:$0xff]
        %v1016 = vld [vmem:[#allocation4 + $0x23c] sm:$0xf]
        %v1017 = vld [vmem:[%s8] sm:$0x7]
        %v1019 = vlaneseq
        %v1020 = vshrl.u32 %v1019, 7
        %v1021 = vsub.s32 0, %v1020
        %v1022 = vrot.slane %v1017, %v1021
        %v1023 = vlaneseq
        %v1024 = vshrl.u32 %v1023, 7
        %v1025 = vsub.s32 1, %v1024
        %v1026 = vrot.slane %v1017, %v1025
        %v1027 = vlaneseq
        %v1028 = vshrl.u32 %v1027, 7
        %v1029 = vsub.s32 2, %v1028
        %v1030 = vrot.slane %v1017, %v1029
        %v1130 = vunpack.c.l.b16 %v921
        %v1131 = vunpack.c.h.b16 %v921
        %v1132 = vunpack.c.l.b16 %v922
        %v1133 = vunpack.c.l.b16 %v923
        %v1134 = vunpack.c.h.b16 %v923
        %v1135 = vunpack.c.l.b16 %v924
        %v1136 = vunpack.c.l.b16 %v925
        %v1137 = vunpack.c.h.b16 %v925
        %v1138 = vunpack.c.l.b16 %v926
        %v1139 = vunpack.c.l.b16 %v927
        %v1140 = vunpack.c.h.b16 %v927
        %v1141 = vunpack.c.l.b16 %v928
        %v1142 = vunpack.c.l.b16 %v929
        %v1143 = vunpack.c.h.b16 %v929
        %v1144 = vunpack.c.l.b16 %v930
        %v1145 = vunpack.c.l.b16 %v931
        %v1146 = vunpack.c.h.b16 %v931
        %v1147 = vunpack.c.l.b16 %v932
        %v1148 = vunpack.c.l.b16 %v933
        %v1149 = vunpack.c.h.b16 %v933
        %v1150 = vunpack.c.l.b16 %v934
        %v1151 = vunpack.c.l.b16 %v935
        %v1152 = vunpack.c.h.b16 %v935
        %v1153 = vunpack.c.l.b16 %v936
        %v1154 = vunpack.c.l.b16 %v937
        %v1155 = vunpack.c.h.b16 %v937
        %v1156 = vunpack.c.l.b16 %v938
        %v1157 = vunpack.c.l.b16 %v939
        %v1158 = vunpack.c.h.b16 %v939
        %v1159 = vunpack.c.l.b16 %v940
        %v1160 = vunpack.c.l.b16 %v941
        %v1161 = vunpack.c.h.b16 %v941
        %v1162 = vunpack.c.l.b16 %v942
        %v1163 = vunpack.c.l.b16 %v943
        %v1164 = vunpack.c.h.b16 %v943
        %v1165 = vunpack.c.l.b16 %v944
        %v1166 = vunpack.c.l.b16 %v945
        %v1167 = vunpack.c.h.b16 %v945
        %v1168 = vunpack.c.l.b16 %v946
        %v1169 = vunpack.c.l.b16 %v947
        %v1170 = vunpack.c.h.b16 %v947
        %v1171 = vunpack.c.l.b16 %v948
        %v1172 = vunpack.c.l.b16 %v949
        %v1173 = vunpack.c.h.b16 %v949
        %v1174 = vunpack.c.l.b16 %v950
        %v1175 = vunpack.c.l.b16 %v951
        %v1176 = vunpack.c.h.b16 %v951
        %v1177 = vunpack.c.l.b16 %v952
        %v1178 = vunpack.c.l.b16 %v953
        %v1179 = vunpack.c.h.b16 %v953
        %v1180 = vunpack.c.l.b16 %v954
        %v1181 = vunpack.c.l.b16 %v955
        %v1182 = vunpack.c.h.b16 %v955
        %v1183 = vunpack.c.l.b16 %v956
        %v1184 = vunpack.c.l.b16 %v957
        %v1185 = vunpack.c.h.b16 %v957
        %v1186 = vunpack.c.l.b16 %v958
        %v1187 = vunpack.c.l.b16 %v959
        %v1188 = vunpack.c.h.b16 %v959
        %v1189 = vunpack.c.l.b16 %v960
        %v1190 = vunpack.c.l.b16 %v961
        %v1191 = vunpack.c.h.b16 %v961
        %v1192 = vunpack.c.l.b16 %v962
        %v1193 = vunpack.c.l.b16 %v963
        %v1194 = vunpack.c.h.b16 %v963
        %v1195 = vunpack.c.l.b16 %v964
        %v1196 = vunpack.c.l.b16 %v965
        %v1197 = vunpack.c.h.b16 %v965
        %v1198 = vunpack.c.l.b16 %v966
        %v1199 = vunpack.c.l.b16 %v967
        %v1200 = vunpack.c.h.b16 %v967
        %v1201 = vunpack.c.l.b16 %v968
        %v1202 = vunpack.c.l.b16 %v969
        %v1203 = vunpack.c.h.b16 %v969
        %v1204 = vunpack.c.l.b16 %v970
        %v1205 = vunpack.c.l.b16 %v971
        %v1206 = vunpack.c.h.b16 %v971
        %v1207 = vunpack.c.l.b16 %v972
        %v1208 = vunpack.c.l.b16 %v973
        %v1209 = vunpack.c.h.b16 %v973
        %v1210 = vunpack.c.l.b16 %v974
        %v1211 = vunpack.c.l.b16 %v975
        %v1212 = vunpack.c.h.b16 %v975
        %v1213 = vunpack.c.l.b16 %v976
        %v1214 = vunpack.c.l.b16 %v977
        %v1215 = vunpack.c.h.b16 %v977
        %v1216 = vunpack.c.l.b16 %v978
        %v1217 = vunpack.c.l.b16 %v979
        %v1218 = vunpack.c.h.b16 %v979
        %v1219 = vunpack.c.l.b16 %v980
        %v1220 = vunpack.c.l.b16 %v981
        %v1221 = vunpack.c.h.b16 %v981
        %v1222 = vunpack.c.l.b16 %v982
        %v1223 = vunpack.c.l.b16 %v983
        %v1224 = vunpack.c.h.b16 %v983
        %v1225 = vunpack.c.l.b16 %v984
        %v1226 = vunpack.c.l.b16 %v985
        %v1227 = vunpack.c.h.b16 %v985
        %v1228 = vunpack.c.l.b16 %v986
        %v1229 = vunpack.c.l.b16 %v987
        %v1230 = vunpack.c.h.b16 %v987
        %v1231 = vunpack.c.l.b16 %v988
        %v1232 = vunpack.c.l.b16 %v989
        %v1233 = vunpack.c.h.b16 %v989
        %v1234 = vunpack.c.l.b16 %v990
        %v1235 = vunpack.c.l.b16 %v991
        %v1236 = vunpack.c.h.b16 %v991
        %v1237 = vunpack.c.l.b16 %v992
        %v1238 = vunpack.c.l.b16 %v993
        %v1239 = vunpack.c.h.b16 %v993
        %v1240 = vunpack.c.l.b16 %v994
        %v1241 = vunpack.c.l.b16 %v995
        %v1242 = vunpack.c.h.b16 %v995
        %v1243 = vunpack.c.l.b16 %v996
        %v1244 = vunpack.c.l.b16 %v997
        %v1245 = vunpack.c.h.b16 %v997
        %v1246 = vunpack.c.l.b16 %v998
        %v1247 = vunpack.c.l.b16 %v999
        %v1248 = vunpack.c.h.b16 %v999
        %v1249 = vunpack.c.l.b16 %v1000
        %v1250 = vunpack.c.l.b16 %v1001
        %v1251 = vunpack.c.h.b16 %v1001
        %v1252 = vunpack.c.l.b16 %v1002
        %v1253 = vunpack.c.l.b16 %v1003
        %v1254 = vunpack.c.h.b16 %v1003
        %v1255 = vunpack.c.l.b16 %v1004
        %v1256 = vunpack.c.l.b16 %v1005
        %v1257 = vunpack.c.h.b16 %v1005
        %v1258 = vunpack.c.l.b16 %v1006
        %v1259 = vunpack.c.l.b16 %v1007
        %v1260 = vunpack.c.h.b16 %v1007
        %v1261 = vunpack.c.l.b16 %v1008
        %v1262 = vunpack.c.l.b16 %v1009
        %v1263 = vunpack.c.h.b16 %v1009
        %v1264 = vunpack.c.l.b16 %v1010
        %v1265 = vunpack.c.l.b16 %v1011
        %v1266 = vunpack.c.h.b16 %v1011
        %v1267 = vunpack.c.l.b16 %v1012
        %v1268 = vunpack.c.l.b16 %v1013
        %v1269 = vunpack.c.h.b16 %v1013
        %v1270 = vunpack.c.l.b16 %v1014
        %v1271 = vunpack.c.l.b16 %v1015
        %v1272 = vunpack.c.h.b16 %v1015
        %v1273 = vunpack.c.l.b16 %v1016
        %v1274 = vpack.c.b16 %v1133, %v1130
        %v1275 = vpack.c.b16 %v1134, %v1131
        %v1276 = vpack.c.b16 %v1135, %v1132
        %v1277 = vpack.c.b16 %v1139, %v1136
        %v1278 = vpack.c.b16 %v1140, %v1137
        %v1279 = vpack.c.b16 %v1141, %v1138
        %v1280 = vpack.c.b16 %v1145, %v1142
        %v1281 = vpack.c.b16 %v1146, %v1143
        %v1282 = vpack.c.b16 %v1147, %v1144
        %v1283 = vpack.c.b16 %v1151, %v1148
        %v1284 = vpack.c.b16 %v1152, %v1149
        %v1285 = vpack.c.b16 %v1153, %v1150
        %v1286 = vpack.c.b16 %v1157, %v1154
        %v1287 = vpack.c.b16 %v1158, %v1155
        %v1288 = vpack.c.b16 %v1159, %v1156
        %v1289 = vpack.c.b16 %v1163, %v1160
        %v1290 = vpack.c.b16 %v1164, %v1161
        %v1291 = vpack.c.b16 %v1165, %v1162
        %v1292 = vpack.c.b16 %v1169, %v1166
        %v1293 = vpack.c.b16 %v1170, %v1167
        %v1294 = vpack.c.b16 %v1171, %v1168
        %v1295 = vpack.c.b16 %v1175, %v1172
        %v1296 = vpack.c.b16 %v1176, %v1173
        %v1297 = vpack.c.b16 %v1177, %v1174
        %v1298 = vpack.c.b16 %v1181, %v1178
        %v1299 = vpack.c.b16 %v1182, %v1179
        %v1300 = vpack.c.b16 %v1183, %v1180
        %v1301 = vpack.c.b16 %v1187, %v1184
        %v1302 = vpack.c.b16 %v1188, %v1185
        %v1303 = vpack.c.b16 %v1189, %v1186
        %v1304 = vpack.c.b16 %v1193, %v1190
        %v1305 = vpack.c.b16 %v1194, %v1191
        %v1306 = vpack.c.b16 %v1195, %v1192
        %v1307 = vpack.c.b16 %v1199, %v1196
        %v1308 = vpack.c.b16 %v1200, %v1197
        %v1309 = vpack.c.b16 %v1201, %v1198
        %v1310 = vpack.c.b16 %v1205, %v1202
        %v1311 = vpack.c.b16 %v1206, %v1203
        %v1312 = vpack.c.b16 %v1207, %v1204
        %v1313 = vpack.c.b16 %v1211, %v1208
        %v1314 = vpack.c.b16 %v1212, %v1209
        %v1315 = vpack.c.b16 %v1213, %v1210
        %v1316 = vpack.c.b16 %v1217, %v1214
        %v1317 = vpack.c.b16 %v1218, %v1215
        %v1318 = vpack.c.b16 %v1219, %v1216
        %v1319 = vpack.c.b16 %v1223, %v1220
        %v1320 = vpack.c.b16 %v1224, %v1221
        %v1321 = vpack.c.b16 %v1225, %v1222
        %v1322 = vpack.c.b16 %v1229, %v1226
        %v1323 = vpack.c.b16 %v1230, %v1227
        %v1324 = vpack.c.b16 %v1231, %v1228
        %v1325 = vpack.c.b16 %v1235, %v1232
        %v1326 = vpack.c.b16 %v1236, %v1233
        %v1327 = vpack.c.b16 %v1237, %v1234
        %v1328 = vpack.c.b16 %v1241, %v1238
        %v1329 = vpack.c.b16 %v1242, %v1239
        %v1330 = vpack.c.b16 %v1243, %v1240
        %v1331 = vpack.c.b16 %v1247, %v1244
        %v1332 = vpack.c.b16 %v1248, %v1245
        %v1333 = vpack.c.b16 %v1249, %v1246
        %v1334 = vpack.c.b16 %v1253, %v1250
        %v1335 = vpack.c.b16 %v1254, %v1251
        %v1336 = vpack.c.b16 %v1255, %v1252
        %v1337 = vpack.c.b16 %v1259, %v1256
        %v1338 = vpack.c.b16 %v1260, %v1257
        %v1339 = vpack.c.b16 %v1261, %v1258
        %v1340 = vpack.c.b16 %v1265, %v1262
        %v1341 = vpack.c.b16 %v1266, %v1263
        %v1342 = vpack.c.b16 %v1267, %v1264
        %v1343 = vpack.c.b16 %v1271, %v1268
        %v1344 = vpack.c.b16 %v1272, %v1269
        %v1345 = vpack.c.b16 %v1273, %v1270
        %1418 = vmatprep.subr.bf16.mxu0 %v1296
        %1419 = vmatpush1.bf16.msra.mxu0 %v1295
        %1420 = vmatprep.subr.bf16.mxu0 %v1293
        %1421 = vmatpush1.bf16.msra.mxu0 %v1292
        %1422 = vmatprep.subr.bf16.mxu0 %v1290
        %1423 = vmatpush1.bf16.msra.mxu0 %v1289
        %1424 = vmatprep.subr.bf16.mxu0 %v1287
        %1425 = vmatpush1.bf16.msra.mxu0 %v1286
        %1426 = vmatprep.subr.bf16.mxu0 %v1284
        %1427 = vmatpush1.bf16.msra.mxu0 %v1283
        %1428 = vmatprep.subr.bf16.mxu0 %v1281
        %1429 = vmatpush1.bf16.msra.mxu0 %v1280
        %1430 = vmatprep.subr.bf16.mxu0 %v1278
        %1431 = vmatpush1.bf16.msra.mxu0 %v1277
        %1432 = vmatprep.subr.bf16.mxu0 %v1275
        %1433 = vmatpush1.bf16.msra.mxu0 %v1274
        %1434 = vmatprep.subr.bf16.mxu0 %v1320
        %1435 = vmatpush2.bf16.msra.mxu0 %v1319
        %1436 = vmatprep.subr.bf16.mxu0 %v1317
        %1437 = vmatpush2.bf16.msra.mxu0 %v1316
        %1438 = vmatprep.subr.bf16.mxu0 %v1314
        %1439 = vmatpush2.bf16.msra.mxu0 %v1313
        %1440 = vmatprep.subr.bf16.mxu0 %v1311
        %1441 = vmatpush2.bf16.msra.mxu0 %v1310
        %1442 = vmatprep.subr.bf16.mxu0 %v1308
        %1443 = vmatpush2.bf16.msra.mxu0 %v1307
        %1444 = vmatprep.subr.bf16.mxu0 %v1305
        %1445 = vmatpush2.bf16.msra.mxu0 %v1304
        %1446 = vmatprep.subr.bf16.mxu0 %v1302
        %1447 = vmatpush2.bf16.msra.mxu0 %v1301
        %1448 = vmatprep.subr.bf16.mxu0 %v1299
        %1449 = vmatpush2.bf16.msra.mxu0 %v1298
        %1450 = vmatprep.mubr.bf16.mxu0 %v916
        %1451 = vmatmul.mubr.bf16.gmra.mxu0 %v909
        %v1452 = vpop.f32.mrf.mxu0
        %v1453 = vadd.f32 %v1022, %v1452
        %v1454 = vpop.f32.mrf.mxu0
        %v1455 = vadd.f32 %v1026, %v1454
        %v1456 = vpop.f32.mrf.mxu0
        %v1457 = vadd.f32 %v1022, %v1456
        %v1458 = vpop.f32.mrf.mxu0
        %v1459 = vadd.f32 %v1026, %v1458
        %1460 = vdwg.mxu0
        %1461 = vmatprep.subr.bf16.mxu0 %v1344
        %1462 = vmatpush1.bf16.msra.mxu0 %v1343
        %1463 = vmatprep.subr.bf16.mxu0 %v1341
        %1464 = vmatpush1.bf16.msra.mxu0 %v1340
        %1465 = vmatprep.subr.bf16.mxu0 %v1338
        %1466 = vmatpush1.bf16.msra.mxu0 %v1337
        %1467 = vmatprep.subr.bf16.mxu0 %v1335
        %1468 = vmatpush1.bf16.msra.mxu0 %v1334
        %1469 = vmatprep.subr.bf16.mxu0 %v1332
        %1470 = vmatpush1.bf16.msra.mxu0 %v1331
        %1471 = vmatprep.subr.bf16.mxu0 %v1329
        %1472 = vmatpush1.bf16.msra.mxu0 %v1328
        %1473 = vmatprep.subr.bf16.mxu0 %v1326
        %1474 = vmatpush1.bf16.msra.mxu0 %v1325
        %1475 = vmatprep.subr.bf16.mxu0 %v1323
        %1476 = vmatpush1.bf16.msra.mxu0 %v1322
        %1477 = vmatprep.subr.bf16.mxu0 0
        %1478 = vmatpush2.bf16.msra.mxu0 0
        %1479 = vmatprep.subr.bf16.mxu0 0
        %1480 = vmatpush2.bf16.msra.mxu0 0
        %1481 = vmatprep.subr.bf16.mxu0 0
        %1482 = vmatpush2.bf16.msra.mxu0 0
        %1483 = vmatprep.subr.bf16.mxu0 0
        %1484 = vmatpush2.bf16.msra.mxu0 0
        %1485 = vmatprep.subr.bf16.mxu0 0
        %1486 = vmatpush2.bf16.msra.mxu0 0
        %1487 = vmatprep.subr.bf16.mxu0 0
        %1488 = vmatpush2.bf16.msra.mxu0 0
        %1489 = vmatprep.subr.bf16.mxu0 0
        %1490 = vmatpush2.bf16.msra.mxu0 0
        %1491 = vmatprep.subr.bf16.mxu0 0
        %1492 = vmatpush2.bf16.msra.mxu0 0
        %1493 = vmatprep.mubr.bf16.mxu0 0
        %1494 = vmatmul.mubr.bf16.gmra.mxu0 %v919
        %v1495 = vpop.f32.mrf.mxu0
        %v1496 = vadd.f32 %v1453, %v1495
        %v1497 = vpop.f32.mrf.mxu0
        %v1498 = vadd.f32 %v1455, %v1497
        %v1499 = vpop.f32.mrf.mxu0
        %v1500 = vadd.f32 %v1457, %v1499
        %v1501 = vpop.f32.mrf.mxu0
        %v1502 = vadd.f32 %v1459, %v1501
        %1503 = vdwg.mxu0
        %1504 = vmatprep.subr.bf16.mxu0 0
        %1505 = vmatpush1.bf16.msra.mxu0 %v1297
        %1506 = vmatprep.subr.bf16.mxu0 0
        %1507 = vmatpush1.bf16.msra.mxu0 %v1294
        %1508 = vmatprep.subr.bf16.mxu0 0
        %1509 = vmatpush1.bf16.msra.mxu0 %v1291
        %1510 = vmatprep.subr.bf16.mxu0 0
        %1511 = vmatpush1.bf16.msra.mxu0 %v1288
        %1512 = vmatprep.subr.bf16.mxu0 0
        %1513 = vmatpush1.bf16.msra.mxu0 %v1285
        %1514 = vmatprep.subr.bf16.mxu0 0
        %1515 = vmatpush1.bf16.msra.mxu0 %v1282
        %1516 = vmatprep.subr.bf16.mxu0 0
        %1517 = vmatpush1.bf16.msra.mxu0 %v1279
        %1518 = vmatprep.subr.bf16.mxu0 0
        %1519 = vmatpush1.bf16.msra.mxu0 %v1276
        %1520 = vmatprep.subr.bf16.mxu0 0
        %1521 = vmatpush2.bf16.msra.mxu0 %v1321
        %1522 = vmatprep.subr.bf16.mxu0 0
        %1523 = vmatpush2.bf16.msra.mxu0 %v1318
        %1524 = vmatprep.subr.bf16.mxu0 0
        %1525 = vmatpush2.bf16.msra.mxu0 %v1315
        %1526 = vmatprep.subr.bf16.mxu0 0
        %1527 = vmatpush2.bf16.msra.mxu0 %v1312
        %1528 = vmatprep.subr.bf16.mxu0 0
        %1529 = vmatpush2.bf16.msra.mxu0 %v1309
        %1530 = vmatprep.subr.bf16.mxu0 0
        %1531 = vmatpush2.bf16.msra.mxu0 %v1306
        %1532 = vmatprep.subr.bf16.mxu0 0
        %1533 = vmatpush2.bf16.msra.mxu0 %v1303
        %1534 = vmatprep.subr.bf16.mxu0 0
        %1535 = vmatpush2.bf16.msra.mxu0 %v1300
        %1536 = vmatprep.mubr.bf16.mxu0 %v916
        %1537 = vmatmul.mubr.bf16.gmra.mxu0 %v909
        %v1538 = vpop.f32.mrf.mxu0
        %v1539 = vadd.f32 %v1030, %v1538
        %v1540 = vpop.f32.mrf.mxu0
        %v1541 = vpop.f32.mrf.mxu0
        %v1542 = vadd.f32 %v1030, %v1541
        %v1543 = vpop.f32.mrf.mxu0
        %1544 = vdwg.mxu0
        %1545 = vmatprep.subr.bf16.mxu0 0
        %1546 = vmatpush1.bf16.msra.mxu0 %v1345
        %1547 = vmatprep.subr.bf16.mxu0 0
        %1548 = vmatpush1.bf16.msra.mxu0 %v1342
        %1549 = vmatprep.subr.bf16.mxu0 0
        %1550 = vmatpush1.bf16.msra.mxu0 %v1339
        %1551 = vmatprep.subr.bf16.mxu0 0
        %1552 = vmatpush1.bf16.msra.mxu0 %v1336
        %1553 = vmatprep.subr.bf16.mxu0 0
        %1554 = vmatpush1.bf16.msra.mxu0 %v1333
        %1555 = vmatprep.subr.bf16.mxu0 0
        %1556 = vmatpush1.bf16.msra.mxu0 %v1330
        %1557 = vmatprep.subr.bf16.mxu0 0
        %1558 = vmatpush1.bf16.msra.mxu0 %v1327
        %1559 = vmatprep.subr.bf16.mxu0 0
        %1560 = vmatpush1.bf16.msra.mxu0 %v1324
        %1561 = vmatprep.subr.bf16.mxu0 0
        %1562 = vmatpush2.bf16.msra.mxu0 0
        %1563 = vmatprep.subr.bf16.mxu0 0
        %1564 = vmatpush2.bf16.msra.mxu0 0
        %1565 = vmatprep.subr.bf16.mxu0 0
        %1566 = vmatpush2.bf16.msra.mxu0 0
        %1567 = vmatprep.subr.bf16.mxu0 0
        %1568 = vmatpush2.bf16.msra.mxu0 0
        %1569 = vmatprep.subr.bf16.mxu0 0
        %1570 = vmatpush2.bf16.msra.mxu0 0
        %1571 = vmatprep.subr.bf16.mxu0 0
        %1572 = vmatpush2.bf16.msra.mxu0 0
        %1573 = vmatprep.subr.bf16.mxu0 0
        %1574 = vmatpush2.bf16.msra.mxu0 0
        %1575 = vmatprep.subr.bf16.mxu0 0
        %1576 = vmatpush2.bf16.msra.mxu0 0
        %1577 = vmatprep.mubr.bf16.mxu0 0
        %1578 = vmatmul.mubr.bf16.gmra.mxu0 %v919
        %v1579 = vpop.f32.mrf.mxu0
        %v1580 = vadd.f32 %v1539, %v1579
        %v1581 = vpop.f32.mrf.mxu0
        %v1582 = vpop.f32.mrf.mxu0
        %v1583 = vadd.f32 %v1542, %v1582
        %v1584 = vpop.f32.mrf.mxu0
        %1585 = vdwg.mxu0
        %vm1586 = vcmp.gt.f32.partialorder %v1496, 0.0
        %vm1587 = vcmp.gt.f32.partialorder %v1498, 0.0
        %vm1588 = vcmp.gt.f32.partialorder %v1580, 0.0
        %vm1589 = vcmp.gt.f32.partialorder %v1500, 0.0
        %vm1590 = vcmp.gt.f32.partialorder %v1502, 0.0
        %vm1591 = vcmp.gt.f32.partialorder %v1583, 0.0
        %v1592 = vmul.f32 %v1496, 0.2
        %v1593 = vmul.f32 %v1498, 0.2
        %v1594 = vmul.f32 %v1580, 0.2
        %v1595 = vmul.f32 %v1500, 0.2
        %v1596 = vmul.f32 %v1502, 0.2
        %v1597 = vmul.f32 %v1583, 0.2
        %v1598 = vsel %vm1586, %v1496, %v1592
        %v1599 = vsel %vm1587, %v1498, %v1593
        %v1600 = vsel %vm1588, %v1580, %v1594
        %v1601 = vsel %vm1589, %v1500, %v1595
        %v1602 = vsel %vm1590, %v1502, %v1596
        %v1603 = vsel %vm1591, %v1583, %v1597
        %1604 = vst [vmem:[%s740] sm:$0xff] %v1598
        %1605 = vst [vmem:[%s740 + $0x8] sm:$0xff] %v1599
        %1606 = vst [vmem:[%s740 + $0x10] sm:$0xff] %v1600
        %1607 = vst [vmem:[%s740 + $0x18] sm:$0x1f] %v1601
        %1608 = vst [vmem:[%s740 + $0x20] sm:$0x1f] %v1602
        %1609 = vst [vmem:[%s740 + $0x28] sm:$0x1f] %v1603
        %v1616 = vrot.slane %v1598, 7
        %v1617 = vrot.slane %v1599, 7
        %v1618 = vrot.slane %v1600, 7
        %v1619 = vrot.slane %v1601, 7
        %v1620 = vsel %vm900, %v1616, %v1619
        %v1621 = vrot.slane %v1602, 7
        %v1622 = vsel %vm900, %v1617, %v1621
        %v1623 = vrot.slane %v1603, 7
        %v1624 = vsel %vm900, %v1618, %v1623
        %v1631 = vsel %vm900, 0.0, %v1616
        %v1632 = vsel %vm900, 0.0, %v1617
        %v1633 = vsel %vm900, 0.0, %v1618
        %v1634 = vsel %vm907, %v1620, 0.0
        %v1635 = vsel %vm907, %v1622, 0.0
        %v1636 = vsel %vm907, %v1624, 0.0
        %v1637 = vpack.c.bf16 %v1634, %v1631
        %v1638 = vpack.c.bf16 %v1635, %v1632
        %v1639 = vpack.c.bf16 %v1636, %v1633
        %v1641 = vshrl.u32 %v1637, 16
        %v1643 = vshll.u32 %v1637, 16
        %v1645 = vrot.slane %v1643, 1
        %v1646 = vor.u32 %v1641, %v1645
        %v1648 = vshrl.u32 %v1638, 16
        %v1650 = vshll.u32 %v1638, 16
        %v1652 = vrot.slane %v1650, 1
        %v1653 = vor.u32 %v1648, %v1652
        %v1655 = vshrl.u32 %v1639, 16
        %v1657 = vshll.u32 %v1639, 16
        %v1659 = vrot.slane %v1657, 1
        %v1660 = vor.u32 %v1655, %v1659
        %v1667 = vrot.slane %v1637, 1
        %v1668 = vrot.slane %v1638, 1
        %v1669 = vrot.slane %v1639, 1
        %v1673 = vld [vmem:[#allocation6] sm:$0xff]
        %v1674 = vld [vmem:[#allocation6 + $0x8] sm:$0xff]
        %v1675 = vld [vmem:[#allocation6 + $0x10] sm:$0xff]
        %v1676 = vld [vmem:[#allocation6 + $0x18] sm:$0xff]
        %v1677 = vld [vmem:[#allocation6 + $0x20] sm:$0xff]
        %v1678 = vld [vmem:[#allocation6 + $0x28] sm:$0xff]
        %v1679 = vld [vmem:[#allocation6 + $0x30] sm:$0xff]
        %v1680 = vld [vmem:[#allocation6 + $0x38] sm:$0xff]
        %v1681 = vld [vmem:[#allocation6 + $0x40] sm:$0xff]
        %v1682 = vld [vmem:[#allocation6 + $0x48] sm:$0xff]
        %v1683 = vld [vmem:[#allocation6 + $0x50] sm:$0xff]
        %v1684 = vld [vmem:[#allocation6 + $0x58] sm:$0xff]
        %v1685 = vld [vmem:[#allocation6 + $0x60] sm:$0xff]
        %v1686 = vld [vmem:[#allocation6 + $0x68] sm:$0xff]
        %v1687 = vld [vmem:[#allocation6 + $0x70] sm:$0xff]
        %v1688 = vld [vmem:[#allocation6 + $0x78] sm:$0xff]
        %v1689 = vld [vmem:[#allocation6 + $0x80] sm:$0xff]
        %v1690 = vld [vmem:[#allocation6 + $0x88] sm:$0xff]
        %v1691 = vld [vmem:[#allocation6 + $0x90] sm:$0xff]
        %v1692 = vld [vmem:[#allocation6 + $0x98] sm:$0xff]
        %v1693 = vld [vmem:[#allocation6 + $0xa0] sm:$0xff]
        %v1694 = vld [vmem:[#allocation6 + $0xa8] sm:$0xff]
        %v1695 = vld [vmem:[#allocation6 + $0xb0] sm:$0xff]
        %v1696 = vld [vmem:[#allocation6 + $0xb8] sm:$0xff]
        %v1697 = vld [vmem:[#allocation6 + $0xc0] sm:$0xff]
        %v1698 = vld [vmem:[#allocation6 + $0xc8] sm:$0xff]
        %v1699 = vld [vmem:[#allocation6 + $0xd0] sm:$0xff]
        %v1700 = vld [vmem:[#allocation6 + $0xd8] sm:$0xff]
        %v1701 = vld [vmem:[#allocation6 + $0xe0] sm:$0xff]
        %v1702 = vld [vmem:[#allocation6 + $0xe8] sm:$0xff]
        %v1703 = vld [vmem:[#allocation6 + $0xf0] sm:$0xff]
        %v1704 = vld [vmem:[#allocation6 + $0xf8] sm:$0xff]
        %v1705 = vld [vmem:[#allocation6 + $0x100] sm:$0xff]
        %v1706 = vld [vmem:[#allocation6 + $0x108] sm:$0xff]
        %v1707 = vld [vmem:[#allocation6 + $0x110] sm:$0xff]
        %v1708 = vld [vmem:[#allocation6 + $0x118] sm:$0xff]
        %v1709 = vld [vmem:[#allocation6 + $0x120] sm:$0xff]
        %v1710 = vld [vmem:[#allocation6 + $0x128] sm:$0xff]
        %v1711 = vld [vmem:[#allocation6 + $0x130] sm:$0xff]
        %v1712 = vld [vmem:[#allocation6 + $0x138] sm:$0xff]
        %v1713 = vld [vmem:[#allocation6 + $0x140] sm:$0xff]
        %v1714 = vld [vmem:[#allocation6 + $0x148] sm:$0xff]
        %v1715 = vld [vmem:[#allocation6 + $0x150] sm:$0xff]
        %v1716 = vld [vmem:[#allocation6 + $0x158] sm:$0xff]
        %v1717 = vld [vmem:[#allocation6 + $0x160] sm:$0xff]
        %v1718 = vld [vmem:[#allocation6 + $0x168] sm:$0xff]
        %v1719 = vld [vmem:[#allocation6 + $0x170] sm:$0xff]
        %v1720 = vld [vmem:[#allocation6 + $0x178] sm:$0xff]
        %v1721 = vld [vmem:[#allocation6 + $0x180] sm:$0xff]
        %v1722 = vld [vmem:[#allocation6 + $0x188] sm:$0xff]
        %v1723 = vld [vmem:[#allocation6 + $0x190] sm:$0xff]
        %v1724 = vld [vmem:[#allocation6 + $0x198] sm:$0xff]
        %v1725 = vld [vmem:[#allocation6 + $0x1a0] sm:$0xff]
        %v1726 = vld [vmem:[#allocation6 + $0x1a8] sm:$0xff]
        %v1727 = vld [vmem:[#allocation6 + $0x1b0] sm:$0xff]
        %v1728 = vld [vmem:[#allocation6 + $0x1b8] sm:$0xff]
        %v1729 = vld [vmem:[#allocation6 + $0x1c0] sm:$0xff]
        %v1730 = vld [vmem:[#allocation6 + $0x1c8] sm:$0xff]
        %v1731 = vld [vmem:[#allocation6 + $0x1d0] sm:$0xff]
        %v1732 = vld [vmem:[#allocation6 + $0x1d8] sm:$0xff]
        %v1733 = vld [vmem:[#allocation6 + $0x1e0] sm:$0xff]
        %v1734 = vld [vmem:[#allocation6 + $0x1e8] sm:$0xff]
        %v1735 = vld [vmem:[#allocation6 + $0x1f0] sm:$0xff]
        %v1736 = vld [vmem:[#allocation6 + $0x1f8] sm:$0xff]
        %v1737 = vld [vmem:[#allocation6 + $0x200] sm:$0xff]
        %v1738 = vld [vmem:[#allocation6 + $0x208] sm:$0xff]
        %v1739 = vld [vmem:[#allocation6 + $0x210] sm:$0xff]
        %v1740 = vld [vmem:[#allocation6 + $0x218] sm:$0xff]
        %v1741 = vld [vmem:[#allocation6 + $0x220] sm:$0xff]
        %v1742 = vld [vmem:[#allocation6 + $0x228] sm:$0xff]
        %v1743 = vld [vmem:[#allocation6 + $0x230] sm:$0xff]
        %v1744 = vld [vmem:[#allocation6 + $0x238] sm:$0xff]
        %v1745 = vld [vmem:[#allocation6 + $0x240] sm:$0xff]
        %v1746 = vld [vmem:[#allocation6 + $0x248] sm:$0xff]
        %v1747 = vld [vmem:[#allocation6 + $0x250] sm:$0xff]
        %v1748 = vld [vmem:[#allocation6 + $0x258] sm:$0xff]
        %v1749 = vld [vmem:[#allocation6 + $0x260] sm:$0xff]
        %v1750 = vld [vmem:[#allocation6 + $0x268] sm:$0xff]
        %v1751 = vld [vmem:[#allocation6 + $0x270] sm:$0xff]
        %v1752 = vld [vmem:[#allocation6 + $0x278] sm:$0xff]
        %v1753 = vld [vmem:[#allocation6 + $0x280] sm:$0xff]
        %v1754 = vld [vmem:[#allocation6 + $0x288] sm:$0xff]
        %v1755 = vld [vmem:[#allocation6 + $0x290] sm:$0xff]
        %v1756 = vld [vmem:[#allocation6 + $0x298] sm:$0xff]
        %v1757 = vld [vmem:[#allocation6 + $0x2a0] sm:$0xff]
        %v1758 = vld [vmem:[#allocation6 + $0x2a8] sm:$0xff]
        %v1759 = vld [vmem:[#allocation6 + $0x2b0] sm:$0xff]
        %v1760 = vld [vmem:[#allocation6 + $0x2b8] sm:$0xff]
        %v1761 = vld [vmem:[#allocation6 + $0x2c0] sm:$0xff]
        %v1762 = vld [vmem:[#allocation6 + $0x2c8] sm:$0xff]
        %v1763 = vld [vmem:[#allocation6 + $0x2d0] sm:$0xff]
        %v1764 = vld [vmem:[#allocation6 + $0x2d8] sm:$0xff]
        %v1765 = vld [vmem:[#allocation6 + $0x2e0] sm:$0xff]
        %v1766 = vld [vmem:[#allocation6 + $0x2e8] sm:$0xff]
        %v1767 = vld [vmem:[#allocation6 + $0x2f0] sm:$0xff]
        %v1768 = vld [vmem:[#allocation6 + $0x2f8] sm:$0xff]
        %v1769 = vld [vmem:[#allocation6 + $0x300] sm:$0xff]
        %v1770 = vld [vmem:[#allocation6 + $0x308] sm:$0xff]
        %v1771 = vld [vmem:[#allocation6 + $0x310] sm:$0xff]
        %v1772 = vld [vmem:[#allocation6 + $0x318] sm:$0xff]
        %v1773 = vld [vmem:[#allocation6 + $0x320] sm:$0xff]
        %v1774 = vld [vmem:[#allocation6 + $0x328] sm:$0xff]
        %v1775 = vld [vmem:[#allocation6 + $0x330] sm:$0xff]
        %v1776 = vld [vmem:[#allocation6 + $0x338] sm:$0xff]
        %v1777 = vld [vmem:[#allocation6 + $0x340] sm:$0xff]
        %v1778 = vld [vmem:[#allocation6 + $0x348] sm:$0xff]
        %v1779 = vld [vmem:[#allocation6 + $0x350] sm:$0xff]
        %v1780 = vld [vmem:[#allocation6 + $0x358] sm:$0xff]
        %v1781 = vld [vmem:[#allocation6 + $0x360] sm:$0xff]
        %v1782 = vld [vmem:[#allocation6 + $0x368] sm:$0xff]
        %v1783 = vld [vmem:[#allocation6 + $0x370] sm:$0xff]
        %v1784 = vld [vmem:[#allocation6 + $0x378] sm:$0xff]
        %v1785 = vld [vmem:[#allocation6 + $0x380] sm:$0xff]
        %v1786 = vld [vmem:[#allocation6 + $0x388] sm:$0xff]
        %v1787 = vld [vmem:[#allocation6 + $0x390] sm:$0xff]
        %v1788 = vld [vmem:[#allocation6 + $0x398] sm:$0xff]
        %v1789 = vld [vmem:[#allocation6 + $0x3a0] sm:$0xff]
        %v1790 = vld [vmem:[#allocation6 + $0x3a8] sm:$0xff]
        %v1791 = vld [vmem:[#allocation6 + $0x3b0] sm:$0xff]
        %v1792 = vld [vmem:[#allocation6 + $0x3b8] sm:$0xff]
        %v1793 = vld [vmem:[#allocation6 + $0x3c0] sm:$0xff]
        %v1794 = vld [vmem:[#allocation6 + $0x3c8] sm:$0xff]
        %v1795 = vld [vmem:[#allocation6 + $0x3d0] sm:$0xff]
        %v1796 = vld [vmem:[#allocation6 + $0x3d8] sm:$0xff]
        %v1797 = vld [vmem:[#allocation6 + $0x3e0] sm:$0xff]
        %v1798 = vld [vmem:[#allocation6 + $0x3e8] sm:$0xff]
        %v1799 = vld [vmem:[#allocation6 + $0x3f0] sm:$0xff]
        %v1800 = vld [vmem:[#allocation6 + $0x3f8] sm:$0xff]
        %v1801 = vld [vmem:[#allocation6 + $0x400] sm:$0xff]
        %v1802 = vld [vmem:[#allocation6 + $0x408] sm:$0xff]
        %v1803 = vld [vmem:[#allocation6 + $0x410] sm:$0xff]
        %v1804 = vld [vmem:[#allocation6 + $0x418] sm:$0xff]
        %v1805 = vld [vmem:[#allocation6 + $0x420] sm:$0xff]
        %v1806 = vld [vmem:[#allocation6 + $0x428] sm:$0xff]
        %v1807 = vld [vmem:[#allocation6 + $0x430] sm:$0xff]
        %v1808 = vld [vmem:[#allocation6 + $0x438] sm:$0xff]
        %v1809 = vld [vmem:[#allocation6 + $0x440] sm:$0xff]
        %v1810 = vld [vmem:[#allocation6 + $0x448] sm:$0xff]
        %v1811 = vld [vmem:[#allocation6 + $0x450] sm:$0xff]
        %v1812 = vld [vmem:[#allocation6 + $0x458] sm:$0xff]
        %v1813 = vld [vmem:[#allocation6 + $0x460] sm:$0xff]
        %v1814 = vld [vmem:[#allocation6 + $0x468] sm:$0xff]
        %v1815 = vld [vmem:[#allocation6 + $0x470] sm:$0xff]
        %v1816 = vld [vmem:[#allocation6 + $0x478] sm:$0xff]
        %v1817 = vld [vmem:[%s9] sm:$0x3]
        %v1819 = vlaneseq
        %v1820 = vshrl.u32 %v1819, 7
        %v1821 = vsub.s32 0, %v1820
        %v1822 = vrot.slane %v1817, %v1821
        %v1823 = vlaneseq
        %v1824 = vshrl.u32 %v1823, 7
        %v1825 = vsub.s32 1, %v1824
        %v1826 = vrot.slane %v1817, %v1825
        %v1973 = vunpack.c.l.b16 %v1673
        %v1974 = vunpack.c.h.b16 %v1673
        %v1975 = vunpack.c.l.b16 %v1674
        %v1976 = vunpack.c.h.b16 %v1674
        %v1977 = vunpack.c.l.b16 %v1675
        %v1978 = vunpack.c.h.b16 %v1675
        %v1979 = vunpack.c.l.b16 %v1676
        %v1980 = vunpack.c.h.b16 %v1676
        %v1981 = vunpack.c.l.b16 %v1677
        %v1982 = vunpack.c.h.b16 %v1677
        %v1983 = vunpack.c.l.b16 %v1678
        %v1984 = vunpack.c.h.b16 %v1678
        %v1985 = vunpack.c.l.b16 %v1679
        %v1986 = vunpack.c.h.b16 %v1679
        %v1987 = vunpack.c.l.b16 %v1680
        %v1988 = vunpack.c.h.b16 %v1680
        %v1989 = vunpack.c.l.b16 %v1681
        %v1990 = vunpack.c.h.b16 %v1681
        %v1991 = vunpack.c.l.b16 %v1682
        %v1992 = vunpack.c.h.b16 %v1682
        %v1993 = vunpack.c.l.b16 %v1683
        %v1994 = vunpack.c.h.b16 %v1683
        %v1995 = vunpack.c.l.b16 %v1684
        %v1996 = vunpack.c.h.b16 %v1684
        %v1997 = vunpack.c.l.b16 %v1685
        %v1998 = vunpack.c.h.b16 %v1685
        %v1999 = vunpack.c.l.b16 %v1686
        %v2000 = vunpack.c.h.b16 %v1686
        %v2001 = vunpack.c.l.b16 %v1687
        %v2002 = vunpack.c.h.b16 %v1687
        %v2003 = vunpack.c.l.b16 %v1688
        %v2004 = vunpack.c.h.b16 %v1688
        %v2005 = vunpack.c.l.b16 %v1689
        %v2006 = vunpack.c.h.b16 %v1689
        %v2007 = vunpack.c.l.b16 %v1690
        %v2008 = vunpack.c.h.b16 %v1690
        %v2009 = vunpack.c.l.b16 %v1691
        %v2010 = vunpack.c.h.b16 %v1691
        %v2011 = vunpack.c.l.b16 %v1692
        %v2012 = vunpack.c.h.b16 %v1692
        %v2013 = vunpack.c.l.b16 %v1693
        %v2014 = vunpack.c.h.b16 %v1693
        %v2015 = vunpack.c.l.b16 %v1694
        %v2016 = vunpack.c.h.b16 %v1694
        %v2017 = vunpack.c.l.b16 %v1695
        %v2018 = vunpack.c.h.b16 %v1695
        %v2019 = vunpack.c.l.b16 %v1696
        %v2020 = vunpack.c.h.b16 %v1696
        %v2021 = vunpack.c.l.b16 %v1697
        %v2022 = vunpack.c.h.b16 %v1697
        %v2023 = vunpack.c.l.b16 %v1698
        %v2024 = vunpack.c.h.b16 %v1698
        %v2025 = vunpack.c.l.b16 %v1699
        %v2026 = vunpack.c.h.b16 %v1699
        %v2027 = vunpack.c.l.b16 %v1700
        %v2028 = vunpack.c.h.b16 %v1700
        %v2029 = vunpack.c.l.b16 %v1701
        %v2030 = vunpack.c.h.b16 %v1701
        %v2031 = vunpack.c.l.b16 %v1702
        %v2032 = vunpack.c.h.b16 %v1702
        %v2033 = vunpack.c.l.b16 %v1703
        %v2034 = vunpack.c.h.b16 %v1703
        %v2035 = vunpack.c.l.b16 %v1704
        %v2036 = vunpack.c.h.b16 %v1704
        %v2037 = vunpack.c.l.b16 %v1705
        %v2038 = vunpack.c.h.b16 %v1705
        %v2039 = vunpack.c.l.b16 %v1706
        %v2040 = vunpack.c.h.b16 %v1706
        %v2041 = vunpack.c.l.b16 %v1707
        %v2042 = vunpack.c.h.b16 %v1707
        %v2043 = vunpack.c.l.b16 %v1708
        %v2044 = vunpack.c.h.b16 %v1708
        %v2045 = vunpack.c.l.b16 %v1709
        %v2046 = vunpack.c.h.b16 %v1709
        %v2047 = vunpack.c.l.b16 %v1710
        %v2048 = vunpack.c.h.b16 %v1710
        %v2049 = vunpack.c.l.b16 %v1711
        %v2050 = vunpack.c.h.b16 %v1711
        %v2051 = vunpack.c.l.b16 %v1712
        %v2052 = vunpack.c.h.b16 %v1712
        %v2053 = vunpack.c.l.b16 %v1713
        %v2054 = vunpack.c.h.b16 %v1713
        %v2055 = vunpack.c.l.b16 %v1714
        %v2056 = vunpack.c.h.b16 %v1714
        %v2057 = vunpack.c.l.b16 %v1715
        %v2058 = vunpack.c.h.b16 %v1715
        %v2059 = vunpack.c.l.b16 %v1716
        %v2060 = vunpack.c.h.b16 %v1716
        %v2061 = vunpack.c.l.b16 %v1717
        %v2062 = vunpack.c.h.b16 %v1717
        %v2063 = vunpack.c.l.b16 %v1718
        %v2064 = vunpack.c.h.b16 %v1718
        %v2065 = vunpack.c.l.b16 %v1719
        %v2066 = vunpack.c.h.b16 %v1719
        %v2067 = vunpack.c.l.b16 %v1720
        %v2068 = vunpack.c.h.b16 %v1720
        %v2069 = vunpack.c.l.b16 %v1721
        %v2070 = vunpack.c.h.b16 %v1721
        %v2071 = vunpack.c.l.b16 %v1722
        %v2072 = vunpack.c.h.b16 %v1722
        %v2073 = vunpack.c.l.b16 %v1723
        %v2074 = vunpack.c.h.b16 %v1723
        %v2075 = vunpack.c.l.b16 %v1724
        %v2076 = vunpack.c.h.b16 %v1724
        %v2077 = vunpack.c.l.b16 %v1725
        %v2078 = vunpack.c.h.b16 %v1725
        %v2079 = vunpack.c.l.b16 %v1726
        %v2080 = vunpack.c.h.b16 %v1726
        %v2081 = vunpack.c.l.b16 %v1727
        %v2082 = vunpack.c.h.b16 %v1727
        %v2083 = vunpack.c.l.b16 %v1728
        %v2084 = vunpack.c.h.b16 %v1728
        %v2085 = vunpack.c.l.b16 %v1729
        %v2086 = vunpack.c.h.b16 %v1729
        %v2087 = vunpack.c.l.b16 %v1730
        %v2088 = vunpack.c.h.b16 %v1730
        %v2089 = vunpack.c.l.b16 %v1731
        %v2090 = vunpack.c.h.b16 %v1731
        %v2091 = vunpack.c.l.b16 %v1732
        %v2092 = vunpack.c.h.b16 %v1732
        %v2093 = vunpack.c.l.b16 %v1733
        %v2094 = vunpack.c.h.b16 %v1733
        %v2095 = vunpack.c.l.b16 %v1734
        %v2096 = vunpack.c.h.b16 %v1734
        %v2097 = vunpack.c.l.b16 %v1735
        %v2098 = vunpack.c.h.b16 %v1735
        %v2099 = vunpack.c.l.b16 %v1736
        %v2100 = vunpack.c.h.b16 %v1736
        %v2101 = vunpack.c.l.b16 %v1737
        %v2102 = vunpack.c.h.b16 %v1737
        %v2103 = vunpack.c.l.b16 %v1738
        %v2104 = vunpack.c.h.b16 %v1738
        %v2105 = vunpack.c.l.b16 %v1739
        %v2106 = vunpack.c.h.b16 %v1739
        %v2107 = vunpack.c.l.b16 %v1740
        %v2108 = vunpack.c.h.b16 %v1740
        %v2109 = vunpack.c.l.b16 %v1741
        %v2110 = vunpack.c.h.b16 %v1741
        %v2111 = vunpack.c.l.b16 %v1742
        %v2112 = vunpack.c.h.b16 %v1742
        %v2113 = vunpack.c.l.b16 %v1743
        %v2114 = vunpack.c.h.b16 %v1743
        %v2115 = vunpack.c.l.b16 %v1744
        %v2116 = vunpack.c.h.b16 %v1744
        %v2117 = vunpack.c.l.b16 %v1745
        %v2118 = vunpack.c.h.b16 %v1745
        %v2119 = vunpack.c.l.b16 %v1746
        %v2120 = vunpack.c.h.b16 %v1746
        %v2121 = vunpack.c.l.b16 %v1747
        %v2122 = vunpack.c.h.b16 %v1747
        %v2123 = vunpack.c.l.b16 %v1748
        %v2124 = vunpack.c.h.b16 %v1748
        %v2125 = vunpack.c.l.b16 %v1749
        %v2126 = vunpack.c.h.b16 %v1749
        %v2127 = vunpack.c.l.b16 %v1750
        %v2128 = vunpack.c.h.b16 %v1750
        %v2129 = vunpack.c.l.b16 %v1751
        %v2130 = vunpack.c.h.b16 %v1751
        %v2131 = vunpack.c.l.b16 %v1752
        %v2132 = vunpack.c.h.b16 %v1752
        %v2133 = vunpack.c.l.b16 %v1753
        %v2134 = vunpack.c.h.b16 %v1753
        %v2135 = vunpack.c.l.b16 %v1754
        %v2136 = vunpack.c.h.b16 %v1754
        %v2137 = vunpack.c.l.b16 %v1755
        %v2138 = vunpack.c.h.b16 %v1755
        %v2139 = vunpack.c.l.b16 %v1756
        %v2140 = vunpack.c.h.b16 %v1756
        %v2141 = vunpack.c.l.b16 %v1757
        %v2142 = vunpack.c.h.b16 %v1757
        %v2143 = vunpack.c.l.b16 %v1758
        %v2144 = vunpack.c.h.b16 %v1758
        %v2145 = vunpack.c.l.b16 %v1759
        %v2146 = vunpack.c.h.b16 %v1759
        %v2147 = vunpack.c.l.b16 %v1760
        %v2148 = vunpack.c.h.b16 %v1760
        %v2149 = vunpack.c.l.b16 %v1761
        %v2150 = vunpack.c.h.b16 %v1761
        %v2151 = vunpack.c.l.b16 %v1762
        %v2152 = vunpack.c.h.b16 %v1762
        %v2153 = vunpack.c.l.b16 %v1763
        %v2154 = vunpack.c.h.b16 %v1763
        %v2155 = vunpack.c.l.b16 %v1764
        %v2156 = vunpack.c.h.b16 %v1764
        %v2157 = vunpack.c.l.b16 %v1765
        %v2158 = vunpack.c.h.b16 %v1765
        %v2159 = vunpack.c.l.b16 %v1766
        %v2160 = vunpack.c.h.b16 %v1766
        %v2161 = vunpack.c.l.b16 %v1767
        %v2162 = vunpack.c.h.b16 %v1767
        %v2163 = vunpack.c.l.b16 %v1768
        %v2164 = vunpack.c.h.b16 %v1768
        %v2165 = vunpack.c.l.b16 %v1769
        %v2166 = vunpack.c.h.b16 %v1769
        %v2167 = vunpack.c.l.b16 %v1770
        %v2168 = vunpack.c.h.b16 %v1770
        %v2169 = vunpack.c.l.b16 %v1771
        %v2170 = vunpack.c.h.b16 %v1771
        %v2171 = vunpack.c.l.b16 %v1772
        %v2172 = vunpack.c.h.b16 %v1772
        %v2173 = vunpack.c.l.b16 %v1773
        %v2174 = vunpack.c.h.b16 %v1773
        %v2175 = vunpack.c.l.b16 %v1774
        %v2176 = vunpack.c.h.b16 %v1774
        %v2177 = vunpack.c.l.b16 %v1775
        %v2178 = vunpack.c.h.b16 %v1775
        %v2179 = vunpack.c.l.b16 %v1776
        %v2180 = vunpack.c.h.b16 %v1776
        %v2181 = vunpack.c.l.b16 %v1777
        %v2182 = vunpack.c.h.b16 %v1777
        %v2183 = vunpack.c.l.b16 %v1778
        %v2184 = vunpack.c.h.b16 %v1778
        %v2185 = vunpack.c.l.b16 %v1779
        %v2186 = vunpack.c.h.b16 %v1779
        %v2187 = vunpack.c.l.b16 %v1780
        %v2188 = vunpack.c.h.b16 %v1780
        %v2189 = vunpack.c.l.b16 %v1781
        %v2190 = vunpack.c.h.b16 %v1781
        %v2191 = vunpack.c.l.b16 %v1782
        %v2192 = vunpack.c.h.b16 %v1782
        %v2193 = vunpack.c.l.b16 %v1783
        %v2194 = vunpack.c.h.b16 %v1783
        %v2195 = vunpack.c.l.b16 %v1784
        %v2196 = vunpack.c.h.b16 %v1784
        %v2197 = vunpack.c.l.b16 %v1785
        %v2198 = vunpack.c.h.b16 %v1785
        %v2199 = vunpack.c.l.b16 %v1786
        %v2200 = vunpack.c.h.b16 %v1786
        %v2201 = vunpack.c.l.b16 %v1787
        %v2202 = vunpack.c.h.b16 %v1787
        %v2203 = vunpack.c.l.b16 %v1788
        %v2204 = vunpack.c.h.b16 %v1788
        %v2205 = vunpack.c.l.b16 %v1789
        %v2206 = vunpack.c.h.b16 %v1789
        %v2207 = vunpack.c.l.b16 %v1790
        %v2208 = vunpack.c.h.b16 %v1790
        %v2209 = vunpack.c.l.b16 %v1791
        %v2210 = vunpack.c.h.b16 %v1791
        %v2211 = vunpack.c.l.b16 %v1792
        %v2212 = vunpack.c.h.b16 %v1792
        %v2213 = vunpack.c.l.b16 %v1793
        %v2214 = vunpack.c.h.b16 %v1793
        %v2215 = vunpack.c.l.b16 %v1794
        %v2216 = vunpack.c.h.b16 %v1794
        %v2217 = vunpack.c.l.b16 %v1795
        %v2218 = vunpack.c.h.b16 %v1795
        %v2219 = vunpack.c.l.b16 %v1796
        %v2220 = vunpack.c.h.b16 %v1796
        %v2221 = vunpack.c.l.b16 %v1797
        %v2222 = vunpack.c.h.b16 %v1797
        %v2223 = vunpack.c.l.b16 %v1798
        %v2224 = vunpack.c.h.b16 %v1798
        %v2225 = vunpack.c.l.b16 %v1799
        %v2226 = vunpack.c.h.b16 %v1799
        %v2227 = vunpack.c.l.b16 %v1800
        %v2228 = vunpack.c.h.b16 %v1800
        %v2229 = vunpack.c.l.b16 %v1801
        %v2230 = vunpack.c.h.b16 %v1801
        %v2231 = vunpack.c.l.b16 %v1802
        %v2232 = vunpack.c.h.b16 %v1802
        %v2233 = vunpack.c.l.b16 %v1803
        %v2234 = vunpack.c.h.b16 %v1803
        %v2235 = vunpack.c.l.b16 %v1804
        %v2236 = vunpack.c.h.b16 %v1804
        %v2237 = vunpack.c.l.b16 %v1805
        %v2238 = vunpack.c.h.b16 %v1805
        %v2239 = vunpack.c.l.b16 %v1806
        %v2240 = vunpack.c.h.b16 %v1806
        %v2241 = vunpack.c.l.b16 %v1807
        %v2242 = vunpack.c.h.b16 %v1807
        %v2243 = vunpack.c.l.b16 %v1808
        %v2244 = vunpack.c.h.b16 %v1808
        %v2245 = vunpack.c.l.b16 %v1809
        %v2246 = vunpack.c.h.b16 %v1809
        %v2247 = vunpack.c.l.b16 %v1810
        %v2248 = vunpack.c.h.b16 %v1810
        %v2249 = vunpack.c.l.b16 %v1811
        %v2250 = vunpack.c.h.b16 %v1811
        %v2251 = vunpack.c.l.b16 %v1812
        %v2252 = vunpack.c.h.b16 %v1812
        %v2253 = vunpack.c.l.b16 %v1813
        %v2254 = vunpack.c.h.b16 %v1813
        %v2255 = vunpack.c.l.b16 %v1814
        %v2256 = vunpack.c.h.b16 %v1814
        %v2257 = vunpack.c.l.b16 %v1815
        %v2258 = vunpack.c.h.b16 %v1815
        %v2259 = vunpack.c.l.b16 %v1816
        %v2260 = vunpack.c.h.b16 %v1816
        %v2261 = vpack.c.b16 %v1975, %v1973
        %v2262 = vpack.c.b16 %v1976, %v1974
        %v2263 = vpack.c.b16 %v1979, %v1977
        %v2264 = vpack.c.b16 %v1980, %v1978
        %v2265 = vpack.c.b16 %v1983, %v1981
        %v2266 = vpack.c.b16 %v1984, %v1982
        %v2267 = vpack.c.b16 %v1987, %v1985
        %v2268 = vpack.c.b16 %v1988, %v1986
        %v2269 = vpack.c.b16 %v1991, %v1989
        %v2270 = vpack.c.b16 %v1992, %v1990
        %v2271 = vpack.c.b16 %v1995, %v1993
        %v2272 = vpack.c.b16 %v1996, %v1994
        %v2273 = vpack.c.b16 %v1999, %v1997
        %v2274 = vpack.c.b16 %v2000, %v1998
        %v2275 = vpack.c.b16 %v2003, %v2001
        %v2276 = vpack.c.b16 %v2004, %v2002
        %v2277 = vpack.c.b16 %v2007, %v2005
        %v2278 = vpack.c.b16 %v2008, %v2006
        %v2279 = vpack.c.b16 %v2011, %v2009
        %v2280 = vpack.c.b16 %v2012, %v2010
        %v2281 = vpack.c.b16 %v2015, %v2013
        %v2282 = vpack.c.b16 %v2016, %v2014
        %v2283 = vpack.c.b16 %v2019, %v2017
        %v2284 = vpack.c.b16 %v2020, %v2018
        %v2285 = vpack.c.b16 %v2023, %v2021
        %v2286 = vpack.c.b16 %v2024, %v2022
        %v2287 = vpack.c.b16 %v2027, %v2025
        %v2288 = vpack.c.b16 %v2028, %v2026
        %v2289 = vpack.c.b16 %v2031, %v2029
        %v2290 = vpack.c.b16 %v2032, %v2030
        %v2291 = vpack.c.b16 %v2035, %v2033
        %v2292 = vpack.c.b16 %v2036, %v2034
        %v2293 = vpack.c.b16 %v2039, %v2037
        %v2294 = vpack.c.b16 %v2040, %v2038
        %v2295 = vpack.c.b16 %v2043, %v2041
        %v2296 = vpack.c.b16 %v2044, %v2042
        %v2297 = vpack.c.b16 %v2047, %v2045
        %v2298 = vpack.c.b16 %v2048, %v2046
        %v2299 = vpack.c.b16 %v2051, %v2049
        %v2300 = vpack.c.b16 %v2052, %v2050
        %v2301 = vpack.c.b16 %v2055, %v2053
        %v2302 = vpack.c.b16 %v2056, %v2054
        %v2303 = vpack.c.b16 %v2059, %v2057
        %v2304 = vpack.c.b16 %v2060, %v2058
        %v2305 = vpack.c.b16 %v2063, %v2061
        %v2306 = vpack.c.b16 %v2064, %v2062
        %v2307 = vpack.c.b16 %v2067, %v2065
        %v2308 = vpack.c.b16 %v2068, %v2066
        %v2309 = vpack.c.b16 %v2071, %v2069
        %v2310 = vpack.c.b16 %v2072, %v2070
        %v2311 = vpack.c.b16 %v2075, %v2073
        %v2312 = vpack.c.b16 %v2076, %v2074
        %v2313 = vpack.c.b16 %v2079, %v2077
        %v2314 = vpack.c.b16 %v2080, %v2078
        %v2315 = vpack.c.b16 %v2083, %v2081
        %v2316 = vpack.c.b16 %v2084, %v2082
        %v2317 = vpack.c.b16 %v2087, %v2085
        %v2318 = vpack.c.b16 %v2088, %v2086
        %v2319 = vpack.c.b16 %v2091, %v2089
        %v2320 = vpack.c.b16 %v2092, %v2090
        %v2321 = vpack.c.b16 %v2095, %v2093
        %v2322 = vpack.c.b16 %v2096, %v2094
        %v2323 = vpack.c.b16 %v2099, %v2097
        %v2324 = vpack.c.b16 %v2100, %v2098
        %v2325 = vpack.c.b16 %v2103, %v2101
        %v2326 = vpack.c.b16 %v2104, %v2102
        %v2327 = vpack.c.b16 %v2107, %v2105
        %v2328 = vpack.c.b16 %v2108, %v2106
        %v2329 = vpack.c.b16 %v2111, %v2109
        %v2330 = vpack.c.b16 %v2112, %v2110
        %v2331 = vpack.c.b16 %v2115, %v2113
        %v2332 = vpack.c.b16 %v2116, %v2114
        %v2333 = vpack.c.b16 %v2119, %v2117
        %v2334 = vpack.c.b16 %v2120, %v2118
        %v2335 = vpack.c.b16 %v2123, %v2121
        %v2336 = vpack.c.b16 %v2124, %v2122
        %v2337 = vpack.c.b16 %v2127, %v2125
        %v2338 = vpack.c.b16 %v2128, %v2126
        %v2339 = vpack.c.b16 %v2131, %v2129
        %v2340 = vpack.c.b16 %v2132, %v2130
        %v2341 = vpack.c.b16 %v2135, %v2133
        %v2342 = vpack.c.b16 %v2136, %v2134
        %v2343 = vpack.c.b16 %v2139, %v2137
        %v2344 = vpack.c.b16 %v2140, %v2138
        %v2345 = vpack.c.b16 %v2143, %v2141
        %v2346 = vpack.c.b16 %v2144, %v2142
        %v2347 = vpack.c.b16 %v2147, %v2145
        %v2348 = vpack.c.b16 %v2148, %v2146
        %v2349 = vpack.c.b16 %v2151, %v2149
        %v2350 = vpack.c.b16 %v2152, %v2150
        %v2351 = vpack.c.b16 %v2155, %v2153
        %v2352 = vpack.c.b16 %v2156, %v2154
        %v2353 = vpack.c.b16 %v2159, %v2157
        %v2354 = vpack.c.b16 %v2160, %v2158
        %v2355 = vpack.c.b16 %v2163, %v2161
        %v2356 = vpack.c.b16 %v2164, %v2162
        %v2357 = vpack.c.b16 %v2167, %v2165
        %v2358 = vpack.c.b16 %v2168, %v2166
        %v2359 = vpack.c.b16 %v2171, %v2169
        %v2360 = vpack.c.b16 %v2172, %v2170
        %v2361 = vpack.c.b16 %v2175, %v2173
        %v2362 = vpack.c.b16 %v2176, %v2174
        %v2363 = vpack.c.b16 %v2179, %v2177
        %v2364 = vpack.c.b16 %v2180, %v2178
        %v2365 = vpack.c.b16 %v2183, %v2181
        %v2366 = vpack.c.b16 %v2184, %v2182
        %v2367 = vpack.c.b16 %v2187, %v2185
        %v2368 = vpack.c.b16 %v2188, %v2186
        %v2369 = vpack.c.b16 %v2191, %v2189
        %v2370 = vpack.c.b16 %v2192, %v2190
        %v2371 = vpack.c.b16 %v2195, %v2193
        %v2372 = vpack.c.b16 %v2196, %v2194
        %v2373 = vpack.c.b16 %v2199, %v2197
        %v2374 = vpack.c.b16 %v2200, %v2198
        %v2375 = vpack.c.b16 %v2203, %v2201
        %v2376 = vpack.c.b16 %v2204, %v2202
        %v2377 = vpack.c.b16 %v2207, %v2205
        %v2378 = vpack.c.b16 %v2208, %v2206
        %v2379 = vpack.c.b16 %v2211, %v2209
        %v2380 = vpack.c.b16 %v2212, %v2210
        %v2381 = vpack.c.b16 %v2215, %v2213
        %v2382 = vpack.c.b16 %v2216, %v2214
        %v2383 = vpack.c.b16 %v2219, %v2217
        %v2384 = vpack.c.b16 %v2220, %v2218
        %v2385 = vpack.c.b16 %v2223, %v2221
        %v2386 = vpack.c.b16 %v2224, %v2222
        %v2387 = vpack.c.b16 %v2227, %v2225
        %v2388 = vpack.c.b16 %v2228, %v2226
        %v2389 = vpack.c.b16 %v2231, %v2229
        %v2390 = vpack.c.b16 %v2232, %v2230
        %v2391 = vpack.c.b16 %v2235, %v2233
        %v2392 = vpack.c.b16 %v2236, %v2234
        %v2393 = vpack.c.b16 %v2239, %v2237
        %v2394 = vpack.c.b16 %v2240, %v2238
        %v2395 = vpack.c.b16 %v2243, %v2241
        %v2396 = vpack.c.b16 %v2244, %v2242
        %v2397 = vpack.c.b16 %v2247, %v2245
        %v2398 = vpack.c.b16 %v2248, %v2246
        %v2399 = vpack.c.b16 %v2251, %v2249
        %v2400 = vpack.c.b16 %v2252, %v2250
        %v2401 = vpack.c.b16 %v2255, %v2253
        %v2402 = vpack.c.b16 %v2256, %v2254
        %v2403 = vpack.c.b16 %v2259, %v2257
        %v2404 = vpack.c.b16 %v2260, %v2258
        %2549 = vmatprep.subr.bf16.mxu0 %v2276
        %2550 = vmatpush1.bf16.msra.mxu0 %v2275
        %2551 = vmatprep.subr.bf16.mxu0 %v2274
        %2552 = vmatpush1.bf16.msra.mxu0 %v2273
        %2553 = vmatprep.subr.bf16.mxu0 %v2272
        %2554 = vmatpush1.bf16.msra.mxu0 %v2271
        %2555 = vmatprep.subr.bf16.mxu0 %v2270
        %2556 = vmatpush1.bf16.msra.mxu0 %v2269
        %2557 = vmatprep.subr.bf16.mxu0 %v2268
        %2558 = vmatpush1.bf16.msra.mxu0 %v2267
        %2559 = vmatprep.subr.bf16.mxu0 %v2266
        %2560 = vmatpush1.bf16.msra.mxu0 %v2265
        %2561 = vmatprep.subr.bf16.mxu0 %v2264
        %2562 = vmatpush1.bf16.msra.mxu0 %v2263
        %2563 = vmatprep.subr.bf16.mxu0 %v2262
        %2564 = vmatpush1.bf16.msra.mxu0 %v2261
        %2565 = vmatprep.subr.bf16.mxu0 %v2292
        %2566 = vmatpush2.bf16.msra.mxu0 %v2291
        %2567 = vmatprep.subr.bf16.mxu0 %v2290
        %2568 = vmatpush2.bf16.msra.mxu0 %v2289
        %2569 = vmatprep.subr.bf16.mxu0 %v2288
        %2570 = vmatpush2.bf16.msra.mxu0 %v2287
        %2571 = vmatprep.subr.bf16.mxu0 %v2286
        %2572 = vmatpush2.bf16.msra.mxu0 %v2285
        %2573 = vmatprep.subr.bf16.mxu0 %v2284
        %2574 = vmatpush2.bf16.msra.mxu0 %v2283
        %2575 = vmatprep.subr.bf16.mxu0 %v2282
        %2576 = vmatpush2.bf16.msra.mxu0 %v2281
        %2577 = vmatprep.subr.bf16.mxu0 %v2280
        %2578 = vmatpush2.bf16.msra.mxu0 %v2279
        %2579 = vmatprep.subr.bf16.mxu0 %v2278
        %2580 = vmatpush2.bf16.msra.mxu0 %v2277
        %2581 = vmatprep.mubr.bf16.mxu0 %v1638
        %2582 = vmatmul.mubr.bf16.gmra.mxu0 %v1637
        %v2583 = vpop.f32.mrf.mxu0
        %v2584 = vadd.f32 %v1822, %v2583
        %v2585 = vpop.f32.mrf.mxu0
        %v2586 = vadd.f32 %v1826, %v2585
        %v2587 = vpop.f32.mrf.mxu0
        %v2588 = vadd.f32 %v1822, %v2587
        %v2589 = vpop.f32.mrf.mxu0
        %v2590 = vadd.f32 %v1826, %v2589
        %2591 = vdwg.mxu0
        %2592 = vmatprep.subr.bf16.mxu0 %v2308
        %2593 = vmatpush1.bf16.msra.mxu0 %v2307
        %2594 = vmatprep.subr.bf16.mxu0 %v2306
        %2595 = vmatpush1.bf16.msra.mxu0 %v2305
        %2596 = vmatprep.subr.bf16.mxu0 %v2304
        %2597 = vmatpush1.bf16.msra.mxu0 %v2303
        %2598 = vmatprep.subr.bf16.mxu0 %v2302
        %2599 = vmatpush1.bf16.msra.mxu0 %v2301
        %2600 = vmatprep.subr.bf16.mxu0 %v2300
        %2601 = vmatpush1.bf16.msra.mxu0 %v2299
        %2602 = vmatprep.subr.bf16.mxu0 %v2298
        %2603 = vmatpush1.bf16.msra.mxu0 %v2297
        %2604 = vmatprep.subr.bf16.mxu0 %v2296
        %2605 = vmatpush1.bf16.msra.mxu0 %v2295
        %2606 = vmatprep.subr.bf16.mxu0 %v2294
        %2607 = vmatpush1.bf16.msra.mxu0 %v2293
        %2608 = vmatprep.subr.bf16.mxu0 %v2324
        %2609 = vmatpush2.bf16.msra.mxu0 %v2323
        %2610 = vmatprep.subr.bf16.mxu0 %v2322
        %2611 = vmatpush2.bf16.msra.mxu0 %v2321
        %2612 = vmatprep.subr.bf16.mxu0 %v2320
        %2613 = vmatpush2.bf16.msra.mxu0 %v2319
        %2614 = vmatprep.subr.bf16.mxu0 %v2318
        %2615 = vmatpush2.bf16.msra.mxu0 %v2317
        %2616 = vmatprep.subr.bf16.mxu0 %v2316
        %2617 = vmatpush2.bf16.msra.mxu0 %v2315
        %2618 = vmatprep.subr.bf16.mxu0 %v2314
        %2619 = vmatpush2.bf16.msra.mxu0 %v2313
        %2620 = vmatprep.subr.bf16.mxu0 %v2312
        %2621 = vmatpush2.bf16.msra.mxu0 %v2311
        %2622 = vmatprep.subr.bf16.mxu0 %v2310
        %2623 = vmatpush2.bf16.msra.mxu0 %v2309
        %2624 = vmatprep.mubr.bf16.mxu0 %v1646
        %2625 = vmatmul.mubr.bf16.gmra.mxu0 %v1639
        %v2626 = vpop.f32.mrf.mxu0
        %v2627 = vadd.f32 %v2584, %v2626
        %v2628 = vpop.f32.mrf.mxu0
        %v2629 = vadd.f32 %v2586, %v2628
        %v2630 = vpop.f32.mrf.mxu0
        %v2631 = vadd.f32 %v2588, %v2630
        %v2632 = vpop.f32.mrf.mxu0
        %v2633 = vadd.f32 %v2590, %v2632
        %2634 = vdwg.mxu0
        %2635 = vmatprep.subr.bf16.mxu0 %v2340
        %2636 = vmatpush1.bf16.msra.mxu0 %v2339
        %2637 = vmatprep.subr.bf16.mxu0 %v2338
        %2638 = vmatpush1.bf16.msra.mxu0 %v2337
        %2639 = vmatprep.subr.bf16.mxu0 %v2336
        %2640 = vmatpush1.bf16.msra.mxu0 %v2335
        %2641 = vmatprep.subr.bf16.mxu0 %v2334
        %2642 = vmatpush1.bf16.msra.mxu0 %v2333
        %2643 = vmatprep.subr.bf16.mxu0 %v2332
        %2644 = vmatpush1.bf16.msra.mxu0 %v2331
        %2645 = vmatprep.subr.bf16.mxu0 %v2330
        %2646 = vmatpush1.bf16.msra.mxu0 %v2329
        %2647 = vmatprep.subr.bf16.mxu0 %v2328
        %2648 = vmatpush1.bf16.msra.mxu0 %v2327
        %2649 = vmatprep.subr.bf16.mxu0 %v2326
        %2650 = vmatpush1.bf16.msra.mxu0 %v2325
        %2651 = vmatprep.subr.bf16.mxu0 %v2356
        %2652 = vmatpush2.bf16.msra.mxu0 %v2355
        %2653 = vmatprep.subr.bf16.mxu0 %v2354
        %2654 = vmatpush2.bf16.msra.mxu0 %v2353
        %2655 = vmatprep.subr.bf16.mxu0 %v2352
        %2656 = vmatpush2.bf16.msra.mxu0 %v2351
        %2657 = vmatprep.subr.bf16.mxu0 %v2350
        %2658 = vmatpush2.bf16.msra.mxu0 %v2349
        %2659 = vmatprep.subr.bf16.mxu0 %v2348
        %2660 = vmatpush2.bf16.msra.mxu0 %v2347
        %2661 = vmatprep.subr.bf16.mxu0 %v2346
        %2662 = vmatpush2.bf16.msra.mxu0 %v2345
        %2663 = vmatprep.subr.bf16.mxu0 %v2344
        %2664 = vmatpush2.bf16.msra.mxu0 %v2343
        %2665 = vmatprep.subr.bf16.mxu0 %v2342
        %2666 = vmatpush2.bf16.msra.mxu0 %v2341
        %2667 = vmatprep.mubr.bf16.mxu0 %v1660
        %2668 = vmatmul.mubr.bf16.gmra.mxu0 %v1653
        %v2669 = vpop.f32.mrf.mxu0
        %v2670 = vadd.f32 %v2627, %v2669
        %v2671 = vpop.f32.mrf.mxu0
        %v2672 = vadd.f32 %v2629, %v2671
        %v2673 = vpop.f32.mrf.mxu0
        %v2674 = vadd.f32 %v2631, %v2673
        %v2675 = vpop.f32.mrf.mxu0
        %v2676 = vadd.f32 %v2633, %v2675
        %2677 = vdwg.mxu0
        %2678 = vmatprep.subr.bf16.mxu0 %v2372
        %2679 = vmatpush1.bf16.msra.mxu0 %v2371
        %2680 = vmatprep.subr.bf16.mxu0 %v2370
        %2681 = vmatpush1.bf16.msra.mxu0 %v2369
        %2682 = vmatprep.subr.bf16.mxu0 %v2368
        %2683 = vmatpush1.bf16.msra.mxu0 %v2367
        %2684 = vmatprep.subr.bf16.mxu0 %v2366
        %2685 = vmatpush1.bf16.msra.mxu0 %v2365
        %2686 = vmatprep.subr.bf16.mxu0 %v2364
        %2687 = vmatpush1.bf16.msra.mxu0 %v2363
        %2688 = vmatprep.subr.bf16.mxu0 %v2362
        %2689 = vmatpush1.bf16.msra.mxu0 %v2361
        %2690 = vmatprep.subr.bf16.mxu0 %v2360
        %2691 = vmatpush1.bf16.msra.mxu0 %v2359
        %2692 = vmatprep.subr.bf16.mxu0 %v2358
        %2693 = vmatpush1.bf16.msra.mxu0 %v2357
        %2694 = vmatprep.subr.bf16.mxu0 %v2388
        %2695 = vmatpush2.bf16.msra.mxu0 %v2387
        %2696 = vmatprep.subr.bf16.mxu0 %v2386
        %2697 = vmatpush2.bf16.msra.mxu0 %v2385
        %2698 = vmatprep.subr.bf16.mxu0 %v2384
        %2699 = vmatpush2.bf16.msra.mxu0 %v2383
        %2700 = vmatprep.subr.bf16.mxu0 %v2382
        %2701 = vmatpush2.bf16.msra.mxu0 %v2381
        %2702 = vmatprep.subr.bf16.mxu0 %v2380
        %2703 = vmatpush2.bf16.msra.mxu0 %v2379
        %2704 = vmatprep.subr.bf16.mxu0 %v2378
        %2705 = vmatpush2.bf16.msra.mxu0 %v2377
        %2706 = vmatprep.subr.bf16.mxu0 %v2376
        %2707 = vmatpush2.bf16.msra.mxu0 %v2375
        %2708 = vmatprep.subr.bf16.mxu0 %v2374
        %2709 = vmatpush2.bf16.msra.mxu0 %v2373
        %2710 = vmatprep.mubr.bf16.mxu0 %v1668
        %2711 = vmatmul.mubr.bf16.gmra.mxu0 %v1667
        %v2712 = vpop.f32.mrf.mxu0
        %v2713 = vadd.f32 %v2670, %v2712
        %v2714 = vpop.f32.mrf.mxu0
        %v2715 = vadd.f32 %v2672, %v2714
        %v2716 = vpop.f32.mrf.mxu0
        %v2717 = vadd.f32 %v2674, %v2716
        %v2718 = vpop.f32.mrf.mxu0
        %v2719 = vadd.f32 %v2676, %v2718
        %2720 = vdwg.mxu0
        %2721 = vmatprep.subr.bf16.mxu0 %v2404
        %2722 = vmatpush1.bf16.msra.mxu0 %v2403
        %2723 = vmatprep.subr.bf16.mxu0 %v2402
        %2724 = vmatpush1.bf16.msra.mxu0 %v2401
        %2725 = vmatprep.subr.bf16.mxu0 %v2400
        %2726 = vmatpush1.bf16.msra.mxu0 %v2399
        %2727 = vmatprep.subr.bf16.mxu0 %v2398
        %2728 = vmatpush1.bf16.msra.mxu0 %v2397
        %2729 = vmatprep.subr.bf16.mxu0 %v2396
        %2730 = vmatpush1.bf16.msra.mxu0 %v2395
        %2731 = vmatprep.subr.bf16.mxu0 %v2394
        %2732 = vmatpush1.bf16.msra.mxu0 %v2393
        %2733 = vmatprep.subr.bf16.mxu0 %v2392
        %2734 = vmatpush1.bf16.msra.mxu0 %v2391
        %2735 = vmatprep.subr.bf16.mxu0 %v2390
        %2736 = vmatpush1.bf16.msra.mxu0 %v2389
        %2737 = vmatprep.subr.bf16.mxu0 0
        %2738 = vmatpush2.bf16.msra.mxu0 0
        %2739 = vmatprep.subr.bf16.mxu0 0
        %2740 = vmatpush2.bf16.msra.mxu0 0
        %2741 = vmatprep.subr.bf16.mxu0 0
        %2742 = vmatpush2.bf16.msra.mxu0 0
        %2743 = vmatprep.subr.bf16.mxu0 0
        %2744 = vmatpush2.bf16.msra.mxu0 0
        %2745 = vmatprep.subr.bf16.mxu0 0
        %2746 = vmatpush2.bf16.msra.mxu0 0
        %2747 = vmatprep.subr.bf16.mxu0 0
        %2748 = vmatpush2.bf16.msra.mxu0 0
        %2749 = vmatprep.subr.bf16.mxu0 0
        %2750 = vmatpush2.bf16.msra.mxu0 0
        %2751 = vmatprep.subr.bf16.mxu0 0
        %2752 = vmatpush2.bf16.msra.mxu0 0
        %2753 = vmatprep.mubr.bf16.mxu0 0
        %2754 = vmatmul.mubr.bf16.gmra.mxu0 %v1669
        %v2755 = vpop.f32.mrf.mxu0
        %v2756 = vadd.f32 %v2713, %v2755
        %v2757 = vpop.f32.mrf.mxu0
        %v2758 = vadd.f32 %v2715, %v2757
        %v2759 = vpop.f32.mrf.mxu0
        %v2760 = vadd.f32 %v2717, %v2759
        %v2761 = vpop.f32.mrf.mxu0
        %v2762 = vadd.f32 %v2719, %v2761
        %2763 = vdwg.mxu0
        %vm2764 = vcmp.gt.f32.partialorder %v2756, 0.0
        %vm2765 = vcmp.gt.f32.partialorder %v2758, 0.0
        %vm2766 = vcmp.gt.f32.partialorder %v2760, 0.0
        %vm2767 = vcmp.gt.f32.partialorder %v2762, 0.0
        %v2768 = vmul.f32 %v2756, 0.2
        %v2769 = vmul.f32 %v2758, 0.2
        %v2770 = vmul.f32 %v2760, 0.2
        %v2771 = vmul.f32 %v2762, 0.2
        %v2772 = vsel %vm2764, %v2756, %v2768
        %v2773 = vsel %vm2765, %v2758, %v2769
        %v2774 = vsel %vm2766, %v2760, %v2770
        %v2775 = vsel %vm2767, %v2762, %v2771
        %2776 = vst [vmem:[%s745] sm:$0xff] %v2772
        %2777 = vst [vmem:[%s745 + $0x8] sm:$0xff] %v2773
        %2778 = vst [vmem:[%s745 + $0x10] sm:$0x1f] %v2774
        %2779 = vst [vmem:[%s745 + $0x18] sm:$0x1f] %v2775
        %vm2784 = vcmask 1041408
        %v2785 = vrot.slane %v2772, 6
        %v2786 = vrot.slane %v2773, 6
        %v2787 = vrot.slane %v2774, 6
        %v2788 = vsel %vm2784, %v2785, %v2787
        %v2789 = vrot.slane %v2775, 6
        %v2790 = vsel %vm2784, %v2786, %v2789
        %v2795 = vsel %vm2784, 0.0, %v2785
        %v2796 = vsel %vm2784, 0.0, %v2786
        %vm2797 = vcmask 1046528
        %v2798 = vsel %vm2797, %v2788, 0.0
        %v2799 = vsel %vm2797, %v2790, 0.0
        %v2800 = vpack.c.bf16 %v2798, %v2795
        %v2801 = vpack.c.bf16 %v2799, %v2796
        %v2802 = vpack.c.bf16 0.0, 0.0
        %v2805 = vrot.slane %v2800, 1
        %v2806 = vrot.slane %v2801, 1
        %vm2810 = vcmask 1045504
        %v2811 = vrot.slane %v2800, 2
        %v2812 = vrot.slane %v2802, 2
        %v2813 = vsel %vm2810, %v2811, %v2812
        %v2814 = vrot.slane %v2801, 2
        %v2815 = vsel %vm2810, %v2814, %v2812
        %v2818 = vld [vmem:[#allocation7] sm:$0xf]
        %v2819 = vld [vmem:[#allocation7 + $0x4] sm:$0xf]
        %v2820 = vld [vmem:[#allocation7 + $0x8] sm:$0xf]
        %v2821 = vld [vmem:[#allocation7 + $0xc] sm:$0xf]
        %v2822 = vld [vmem:[#allocation7 + $0x10] sm:$0xf]
        %v2823 = vld [vmem:[#allocation7 + $0x14] sm:$0xf]
        %v2824 = vld [vmem:[#allocation7 + $0x18] sm:$0xf]
        %v2825 = vld [vmem:[#allocation7 + $0x1c] sm:$0xf]
        %v2826 = vld [vmem:[#allocation7 + $0x20] sm:$0xf]
        %v2827 = vld [vmem:[#allocation7 + $0x24] sm:$0xf]
        %v2828 = vld [vmem:[#allocation7 + $0x28] sm:$0xf]
        %v2829 = vld [vmem:[#allocation7 + $0x2c] sm:$0xf]
        %v2830 = vld [vmem:[#allocation7 + $0x30] sm:$0xf]
        %v2831 = vld [vmem:[#allocation7 + $0x34] sm:$0xf]
        %v2832 = vld [vmem:[#allocation7 + $0x38] sm:$0xf]
        %v2833 = vld [vmem:[#allocation7 + $0x3c] sm:$0xf]
        %v2834 = vld [vmem:[#allocation7 + $0x40] sm:$0xf]
        %v2835 = vld [vmem:[#allocation7 + $0x44] sm:$0xf]
        %v2836 = vld [vmem:[#allocation7 + $0x48] sm:$0xf]
        %v2837 = vld [vmem:[#allocation7 + $0x4c] sm:$0xf]
        %v2838 = vld [vmem:[#allocation7 + $0x50] sm:$0xf]
        %v2839 = vld [vmem:[#allocation7 + $0x54] sm:$0xf]
        %v2840 = vld [vmem:[#allocation7 + $0x58] sm:$0xf]
        %v2841 = vld [vmem:[#allocation7 + $0x5c] sm:$0xf]
        %v2842 = vld [vmem:[#allocation7 + $0x60] sm:$0xf]
        %v2843 = vld [vmem:[#allocation7 + $0x64] sm:$0xf]
        %v2844 = vld [vmem:[#allocation7 + $0x68] sm:$0xf]
        %v2845 = vld [vmem:[#allocation7 + $0x6c] sm:$0xf]
        %v2846 = vld [vmem:[#allocation7 + $0x70] sm:$0xf]
        %v2847 = vld [vmem:[#allocation7 + $0x74] sm:$0xf]
        %v2848 = vld [vmem:[#allocation7 + $0x78] sm:$0xf]
        %v2849 = vld [vmem:[#allocation7 + $0x7c] sm:$0xf]
        %v2850 = vld [vmem:[#allocation7 + $0x80] sm:$0xf]
        %v2851 = vld [vmem:[#allocation7 + $0x84] sm:$0xf]
        %v2852 = vld [vmem:[#allocation7 + $0x88] sm:$0xf]
        %v2853 = vld [vmem:[#allocation7 + $0x8c] sm:$0xf]
        %v2854 = vld [vmem:[#allocation7 + $0x90] sm:$0xf]
        %v2855 = vld [vmem:[#allocation7 + $0x94] sm:$0xf]
        %v2856 = vld [vmem:[#allocation7 + $0x98] sm:$0xf]
        %v2857 = vld [vmem:[#allocation7 + $0x9c] sm:$0xf]
        %v2858 = vld [vmem:[#allocation7 + $0xa0] sm:$0xf]
        %v2859 = vld [vmem:[#allocation7 + $0xa4] sm:$0xf]
        %v2860 = vld [vmem:[#allocation7 + $0xa8] sm:$0xf]
        %v2861 = vld [vmem:[#allocation7 + $0xac] sm:$0xf]
        %v2862 = vld [vmem:[#allocation7 + $0xb0] sm:$0xf]
        %v2863 = vld [vmem:[#allocation7 + $0xb4] sm:$0xf]
        %v2864 = vld [vmem:[#allocation7 + $0xb8] sm:$0xf]
        %v2865 = vld [vmem:[#allocation7 + $0xbc] sm:$0xf]
        %v2866 = vld [vmem:[#allocation7 + $0xc0] sm:$0xf]
        %v2867 = vld [vmem:[#allocation7 + $0xc4] sm:$0xf]
        %v2868 = vld [vmem:[#allocation7 + $0xc8] sm:$0xf]
        %v2869 = vld [vmem:[#allocation7 + $0xcc] sm:$0xf]
        %v2870 = vld [vmem:[#allocation7 + $0xd0] sm:$0xf]
        %v2871 = vld [vmem:[#allocation7 + $0xd4] sm:$0xf]
        %v2872 = vld [vmem:[#allocation7 + $0xd8] sm:$0xf]
        %v2873 = vld [vmem:[#allocation7 + $0xdc] sm:$0xf]
        %v2874 = vld [vmem:[#allocation7 + $0xe0] sm:$0xf]
        %v2875 = vld [vmem:[#allocation7 + $0xe4] sm:$0xf]
        %v2876 = vld [vmem:[#allocation7 + $0xe8] sm:$0xf]
        %v2877 = vld [vmem:[#allocation7 + $0xec] sm:$0xf]
        %v2878 = vld [vmem:[#allocation7 + $0xf0] sm:$0xf]
        %v2879 = vld [vmem:[#allocation7 + $0xf4] sm:$0xf]
        %v2880 = vld [vmem:[#allocation7 + $0xf8] sm:$0xf]
        %v2881 = vld [vmem:[#allocation7 + $0xfc] sm:$0xf]
        %v2882 = vld [vmem:[#allocation7 + $0x100] sm:$0xf]
        %v2883 = vld [vmem:[#allocation7 + $0x104] sm:$0xf]
        %v2884 = vld [vmem:[#allocation7 + $0x108] sm:$0xf]
        %v2885 = vld [vmem:[#allocation7 + $0x10c] sm:$0xf]
        %v2886 = vld [vmem:[#allocation7 + $0x110] sm:$0xf]
        %v2887 = vld [vmem:[#allocation7 + $0x114] sm:$0xf]
        %v2888 = vld [vmem:[#allocation7 + $0x118] sm:$0xf]
        %v2889 = vld [vmem:[#allocation7 + $0x11c] sm:$0xf]
        %v2890 = vld [vmem:[#allocation7 + $0x120] sm:$0xf]
        %v2891 = vld [vmem:[#allocation7 + $0x124] sm:$0xf]
        %v2892 = vld [vmem:[#allocation7 + $0x128] sm:$0xf]
        %v2893 = vld [vmem:[#allocation7 + $0x12c] sm:$0xf]
        %v2894 = vld [vmem:[#allocation7 + $0x130] sm:$0xf]
        %v2895 = vld [vmem:[#allocation7 + $0x134] sm:$0xf]
        %v2896 = vld [vmem:[#allocation7 + $0x138] sm:$0xf]
        %v2897 = vld [vmem:[#allocation7 + $0x13c] sm:$0xf]
        %v2898 = vld [vmem:[#allocation7 + $0x140] sm:$0xf]
        %v2899 = vld [vmem:[#allocation7 + $0x144] sm:$0xf]
        %v2900 = vld [vmem:[#allocation7 + $0x148] sm:$0xf]
        %v2901 = vld [vmem:[#allocation7 + $0x14c] sm:$0xf]
        %v2902 = vld [vmem:[#allocation7 + $0x150] sm:$0xf]
        %v2903 = vld [vmem:[#allocation7 + $0x154] sm:$0xf]
        %v2904 = vld [vmem:[#allocation7 + $0x158] sm:$0xf]
        %v2905 = vld [vmem:[#allocation7 + $0x15c] sm:$0xf]
        %v2906 = vld [vmem:[#allocation7 + $0x160] sm:$0xf]
        %v2907 = vld [vmem:[#allocation7 + $0x164] sm:$0xf]
        %v2908 = vld [vmem:[#allocation7 + $0x168] sm:$0xf]
        %v2909 = vld [vmem:[#allocation7 + $0x16c] sm:$0xf]
        %v2910 = vld [vmem:[#allocation7 + $0x170] sm:$0xf]
        %v2911 = vld [vmem:[#allocation7 + $0x174] sm:$0xf]
        %v2912 = vld [vmem:[#allocation7 + $0x178] sm:$0xf]
        %v2913 = vld [vmem:[#allocation7 + $0x17c] sm:$0xf]
        %v2914 = vld [vmem:[%s10] sm:$0x1]
        %v2916 = vlaneseq
        %v2917 = vshrl.u32 %v2916, 7
        %v2918 = vsub.s32 0, %v2917
        %v2919 = vrot.slane %v2914, %v2918
        %v3017 = vunpack.c.l.b16 %v2818
        %v3018 = vunpack.c.l.b16 %v2819
        %v3019 = vunpack.c.l.b16 %v2820
        %v3020 = vunpack.c.l.b16 %v2821
        %v3021 = vunpack.c.l.b16 %v2822
        %v3022 = vunpack.c.l.b16 %v2823
        %v3023 = vunpack.c.l.b16 %v2824
        %v3024 = vunpack.c.l.b16 %v2825
        %v3025 = vunpack.c.l.b16 %v2826
        %v3026 = vunpack.c.l.b16 %v2827
        %v3027 = vunpack.c.l.b16 %v2828
        %v3028 = vunpack.c.l.b16 %v2829
        %v3029 = vunpack.c.l.b16 %v2830
        %v3030 = vunpack.c.l.b16 %v2831
        %v3031 = vunpack.c.l.b16 %v2832
        %v3032 = vunpack.c.l.b16 %v2833
        %v3033 = vunpack.c.l.b16 %v2834
        %v3034 = vunpack.c.l.b16 %v2835
        %v3035 = vunpack.c.l.b16 %v2836
        %v3036 = vunpack.c.l.b16 %v2837
        %v3037 = vunpack.c.l.b16 %v2838
        %v3038 = vunpack.c.l.b16 %v2839
        %v3039 = vunpack.c.l.b16 %v2840
        %v3040 = vunpack.c.l.b16 %v2841
        %v3041 = vunpack.c.l.b16 %v2842
        %v3042 = vunpack.c.l.b16 %v2843
        %v3043 = vunpack.c.l.b16 %v2844
        %v3044 = vunpack.c.l.b16 %v2845
        %v3045 = vunpack.c.l.b16 %v2846
        %v3046 = vunpack.c.l.b16 %v2847
        %v3047 = vunpack.c.l.b16 %v2848
        %v3048 = vunpack.c.l.b16 %v2849
        %v3049 = vunpack.c.l.b16 %v2850
        %v3050 = vunpack.c.l.b16 %v2851
        %v3051 = vunpack.c.l.b16 %v2852
        %v3052 = vunpack.c.l.b16 %v2853
        %v3053 = vunpack.c.l.b16 %v2854
        %v3054 = vunpack.c.l.b16 %v2855
        %v3055 = vunpack.c.l.b16 %v2856
        %v3056 = vunpack.c.l.b16 %v2857
        %v3057 = vunpack.c.l.b16 %v2858
        %v3058 = vunpack.c.l.b16 %v2859
        %v3059 = vunpack.c.l.b16 %v2860
        %v3060 = vunpack.c.l.b16 %v2861
        %v3061 = vunpack.c.l.b16 %v2862
        %v3062 = vunpack.c.l.b16 %v2863
        %v3063 = vunpack.c.l.b16 %v2864
        %v3064 = vunpack.c.l.b16 %v2865
        %v3065 = vunpack.c.l.b16 %v2866
        %v3066 = vunpack.c.l.b16 %v2867
        %v3067 = vunpack.c.l.b16 %v2868
        %v3068 = vunpack.c.l.b16 %v2869
        %v3069 = vunpack.c.l.b16 %v2870
        %v3070 = vunpack.c.l.b16 %v2871
        %v3071 = vunpack.c.l.b16 %v2872
        %v3072 = vunpack.c.l.b16 %v2873
        %v3073 = vunpack.c.l.b16 %v2874
        %v3074 = vunpack.c.l.b16 %v2875
        %v3075 = vunpack.c.l.b16 %v2876
        %v3076 = vunpack.c.l.b16 %v2877
        %v3077 = vunpack.c.l.b16 %v2878
        %v3078 = vunpack.c.l.b16 %v2879
        %v3079 = vunpack.c.l.b16 %v2880
        %v3080 = vunpack.c.l.b16 %v2881
        %v3081 = vunpack.c.l.b16 %v2882
        %v3082 = vunpack.c.l.b16 %v2883
        %v3083 = vunpack.c.l.b16 %v2884
        %v3084 = vunpack.c.l.b16 %v2885
        %v3085 = vunpack.c.l.b16 %v2886
        %v3086 = vunpack.c.l.b16 %v2887
        %v3087 = vunpack.c.l.b16 %v2888
        %v3088 = vunpack.c.l.b16 %v2889
        %v3089 = vunpack.c.l.b16 %v2890
        %v3090 = vunpack.c.l.b16 %v2891
        %v3091 = vunpack.c.l.b16 %v2892
        %v3092 = vunpack.c.l.b16 %v2893
        %v3093 = vunpack.c.l.b16 %v2894
        %v3094 = vunpack.c.l.b16 %v2895
        %v3095 = vunpack.c.l.b16 %v2896
        %v3096 = vunpack.c.l.b16 %v2897
        %v3097 = vunpack.c.l.b16 %v2898
        %v3098 = vunpack.c.l.b16 %v2899
        %v3099 = vunpack.c.l.b16 %v2900
        %v3100 = vunpack.c.l.b16 %v2901
        %v3101 = vunpack.c.l.b16 %v2902
        %v3102 = vunpack.c.l.b16 %v2903
        %v3103 = vunpack.c.l.b16 %v2904
        %v3104 = vunpack.c.l.b16 %v2905
        %v3105 = vunpack.c.l.b16 %v2906
        %v3106 = vunpack.c.l.b16 %v2907
        %v3107 = vunpack.c.l.b16 %v2908
        %v3108 = vunpack.c.l.b16 %v2909
        %v3109 = vunpack.c.l.b16 %v2910
        %v3110 = vunpack.c.l.b16 %v2911
        %v3111 = vunpack.c.l.b16 %v2912
        %v3112 = vunpack.c.l.b16 %v2913
        %v3113 = vpack.c.b16 %v3018, %v3017
        %v3114 = vpack.c.b16 %v3020, %v3019
        %v3115 = vpack.c.b16 %v3022, %v3021
        %v3116 = vpack.c.b16 %v3024, %v3023
        %v3117 = vpack.c.b16 %v3026, %v3025
        %v3118 = vpack.c.b16 %v3028, %v3027
        %v3119 = vpack.c.b16 %v3030, %v3029
        %v3120 = vpack.c.b16 %v3032, %v3031
        %v3121 = vpack.c.b16 %v3034, %v3033
        %v3122 = vpack.c.b16 %v3036, %v3035
        %v3123 = vpack.c.b16 %v3038, %v3037
        %v3124 = vpack.c.b16 %v3040, %v3039
        %v3125 = vpack.c.b16 %v3042, %v3041
        %v3126 = vpack.c.b16 %v3044, %v3043
        %v3127 = vpack.c.b16 %v3046, %v3045
        %v3128 = vpack.c.b16 %v3048, %v3047
        %v3129 = vpack.c.b16 %v3050, %v3049
        %v3130 = vpack.c.b16 %v3052, %v3051
        %v3131 = vpack.c.b16 %v3054, %v3053
        %v3132 = vpack.c.b16 %v3056, %v3055
        %v3133 = vpack.c.b16 %v3058, %v3057
        %v3134 = vpack.c.b16 %v3060, %v3059
        %v3135 = vpack.c.b16 %v3062, %v3061
        %v3136 = vpack.c.b16 %v3064, %v3063
        %v3137 = vpack.c.b16 %v3066, %v3065
        %v3138 = vpack.c.b16 %v3068, %v3067
        %v3139 = vpack.c.b16 %v3070, %v3069
        %v3140 = vpack.c.b16 %v3072, %v3071
        %v3141 = vpack.c.b16 %v3074, %v3073
        %v3142 = vpack.c.b16 %v3076, %v3075
        %v3143 = vpack.c.b16 %v3078, %v3077
        %v3144 = vpack.c.b16 %v3080, %v3079
        %v3145 = vpack.c.b16 %v3082, %v3081
        %v3146 = vpack.c.b16 %v3084, %v3083
        %v3147 = vpack.c.b16 %v3086, %v3085
        %v3148 = vpack.c.b16 %v3088, %v3087
        %v3149 = vpack.c.b16 %v3090, %v3089
        %v3150 = vpack.c.b16 %v3092, %v3091
        %v3151 = vpack.c.b16 %v3094, %v3093
        %v3152 = vpack.c.b16 %v3096, %v3095
        %v3153 = vpack.c.b16 %v3098, %v3097
        %v3154 = vpack.c.b16 %v3100, %v3099
        %v3155 = vpack.c.b16 %v3102, %v3101
        %v3156 = vpack.c.b16 %v3104, %v3103
        %v3157 = vpack.c.b16 %v3106, %v3105
        %v3158 = vpack.c.b16 %v3108, %v3107
        %v3159 = vpack.c.b16 %v3110, %v3109
        %v3160 = vpack.c.b16 %v3112, %v3111
        %3209 = vmatprep.subr.bf16.mxu0 0
        %3210 = vmatpush1.bf16.msra.mxu0 %v3120
        %3211 = vmatprep.subr.bf16.mxu0 0
        %3212 = vmatpush1.bf16.msra.mxu0 %v3119
        %3213 = vmatprep.subr.bf16.mxu0 0
        %3214 = vmatpush1.bf16.msra.mxu0 %v3118
        %3215 = vmatprep.subr.bf16.mxu0 0
        %3216 = vmatpush1.bf16.msra.mxu0 %v3117
        %3217 = vmatprep.subr.bf16.mxu0 0
        %3218 = vmatpush1.bf16.msra.mxu0 %v3116
        %3219 = vmatprep.subr.bf16.mxu0 0
        %3220 = vmatpush1.bf16.msra.mxu0 %v3115
        %3221 = vmatprep.subr.bf16.mxu0 0
        %3222 = vmatpush1.bf16.msra.mxu0 %v3114
        %3223 = vmatprep.subr.bf16.mxu0 0
        %3224 = vmatpush1.bf16.msra.mxu0 %v3113
        %3225 = vmatprep.subr.bf16.mxu0 0
        %3226 = vmatpush2.bf16.msra.mxu0 %v3128
        %3227 = vmatprep.subr.bf16.mxu0 0
        %3228 = vmatpush2.bf16.msra.mxu0 %v3127
        %3229 = vmatprep.subr.bf16.mxu0 0
        %3230 = vmatpush2.bf16.msra.mxu0 %v3126
        %3231 = vmatprep.subr.bf16.mxu0 0
        %3232 = vmatpush2.bf16.msra.mxu0 %v3125
        %3233 = vmatprep.subr.bf16.mxu0 0
        %3234 = vmatpush2.bf16.msra.mxu0 %v3124
        %3235 = vmatprep.subr.bf16.mxu0 0
        %3236 = vmatpush2.bf16.msra.mxu0 %v3123
        %3237 = vmatprep.subr.bf16.mxu0 0
        %3238 = vmatpush2.bf16.msra.mxu0 %v3122
        %3239 = vmatprep.subr.bf16.mxu0 0
        %3240 = vmatpush2.bf16.msra.mxu0 %v3121
        %3241 = vmatprep.mubr.bf16.mxu0 %v2801
        %3242 = vmatmul.mubr.bf16.gmra.mxu0 %v2800
        %v3243 = vpop.f32.mrf.mxu0
        %v3244 = vadd.f32 %v2919, %v3243
        %v3245 = vpop.f32.mrf.mxu0
        %v3246 = vpop.f32.mrf.mxu0
        %v3247 = vadd.f32 %v2919, %v3246
        %v3248 = vpop.f32.mrf.mxu0
        %3249 = vdwg.mxu0
        %3250 = vmatprep.subr.bf16.mxu0 0
        %3251 = vmatpush1.bf16.msra.mxu0 %v3136
        %3252 = vmatprep.subr.bf16.mxu0 0
        %3253 = vmatpush1.bf16.msra.mxu0 %v3135
        %3254 = vmatprep.subr.bf16.mxu0 0
        %3255 = vmatpush1.bf16.msra.mxu0 %v3134
        %3256 = vmatprep.subr.bf16.mxu0 0
        %3257 = vmatpush1.bf16.msra.mxu0 %v3133
        %3258 = vmatprep.subr.bf16.mxu0 0
        %3259 = vmatpush1.bf16.msra.mxu0 %v3132
        %3260 = vmatprep.subr.bf16.mxu0 0
        %3261 = vmatpush1.bf16.msra.mxu0 %v3131
        %3262 = vmatprep.subr.bf16.mxu0 0
        %3263 = vmatpush1.bf16.msra.mxu0 %v3130
        %3264 = vmatprep.subr.bf16.mxu0 0
        %3265 = vmatpush1.bf16.msra.mxu0 %v3129
        %3266 = vmatprep.subr.bf16.mxu0 0
        %3267 = vmatpush2.bf16.msra.mxu0 %v3144
        %3268 = vmatprep.subr.bf16.mxu0 0
        %3269 = vmatpush2.bf16.msra.mxu0 %v3143
        %3270 = vmatprep.subr.bf16.mxu0 0
        %3271 = vmatpush2.bf16.msra.mxu0 %v3142
        %3272 = vmatprep.subr.bf16.mxu0 0
        %3273 = vmatpush2.bf16.msra.mxu0 %v3141
        %3274 = vmatprep.subr.bf16.mxu0 0
        %3275 = vmatpush2.bf16.msra.mxu0 %v3140
        %3276 = vmatprep.subr.bf16.mxu0 0
        %3277 = vmatpush2.bf16.msra.mxu0 %v3139
        %3278 = vmatprep.subr.bf16.mxu0 0
        %3279 = vmatpush2.bf16.msra.mxu0 %v3138
        %3280 = vmatprep.subr.bf16.mxu0 0
        %3281 = vmatpush2.bf16.msra.mxu0 %v3137
        %3282 = vmatprep.mubr.bf16.mxu0 %v2806
        %3283 = vmatmul.mubr.bf16.gmra.mxu0 %v2805
        %v3284 = vpop.f32.mrf.mxu0
        %v3285 = vadd.f32 %v3244, %v3284
        %v3286 = vpop.f32.mrf.mxu0
        %v3287 = vpop.f32.mrf.mxu0
        %v3288 = vadd.f32 %v3247, %v3287
        %v3289 = vpop.f32.mrf.mxu0
        %3290 = vdwg.mxu0
        %3291 = vmatprep.subr.bf16.mxu0 0
        %3292 = vmatpush1.bf16.msra.mxu0 %v3152
        %3293 = vmatprep.subr.bf16.mxu0 0
        %3294 = vmatpush1.bf16.msra.mxu0 %v3151
        %3295 = vmatprep.subr.bf16.mxu0 0
        %3296 = vmatpush1.bf16.msra.mxu0 %v3150
        %3297 = vmatprep.subr.bf16.mxu0 0
        %3298 = vmatpush1.bf16.msra.mxu0 %v3149
        %3299 = vmatprep.subr.bf16.mxu0 0
        %3300 = vmatpush1.bf16.msra.mxu0 %v3148
        %3301 = vmatprep.subr.bf16.mxu0 0
        %3302 = vmatpush1.bf16.msra.mxu0 %v3147
        %3303 = vmatprep.subr.bf16.mxu0 0
        %3304 = vmatpush1.bf16.msra.mxu0 %v3146
        %3305 = vmatprep.subr.bf16.mxu0 0
        %3306 = vmatpush1.bf16.msra.mxu0 %v3145
        %3307 = vmatprep.subr.bf16.mxu0 0
        %3308 = vmatpush2.bf16.msra.mxu0 %v3160
        %3309 = vmatprep.subr.bf16.mxu0 0
        %3310 = vmatpush2.bf16.msra.mxu0 %v3159
        %3311 = vmatprep.subr.bf16.mxu0 0
        %3312 = vmatpush2.bf16.msra.mxu0 %v3158
        %3313 = vmatprep.subr.bf16.mxu0 0
        %3314 = vmatpush2.bf16.msra.mxu0 %v3157
        %3315 = vmatprep.subr.bf16.mxu0 0
        %3316 = vmatpush2.bf16.msra.mxu0 %v3156
        %3317 = vmatprep.subr.bf16.mxu0 0
        %3318 = vmatpush2.bf16.msra.mxu0 %v3155
        %3319 = vmatprep.subr.bf16.mxu0 0
        %3320 = vmatpush2.bf16.msra.mxu0 %v3154
        %3321 = vmatprep.subr.bf16.mxu0 0
        %3322 = vmatpush2.bf16.msra.mxu0 %v3153
        %3323 = vmatprep.mubr.bf16.mxu0 %v2815
        %3324 = vmatmul.mubr.bf16.gmra.mxu0 %v2813
        %v3325 = vpop.f32.mrf.mxu0
        %v3326 = vadd.f32 %v3285, %v3325
        %v3327 = vpop.f32.mrf.mxu0
        %v3328 = vpop.f32.mrf.mxu0
        %v3329 = vadd.f32 %v3288, %v3328
        %v3330 = vpop.f32.mrf.mxu0
        %3331 = vdwg.mxu0
        %vm3332 = vcmp.gt.f32.partialorder %v3326, 0.0
        %vm3333 = vcmp.gt.f32.partialorder %v3329, 0.0
        %v3334 = vmul.f32 %v3326, 0.2
        %v3335 = vmul.f32 %v3329, 0.2
        %v3336 = vsel %vm3332, %v3326, %v3334
        %v3337 = vsel %vm3333, %v3329, %v3335
        %3338 = vst [vmem:[%s750] sm:$0xff] %v3336
        %3339 = vst [vmem:[%s750 + $0x8] sm:$0x1f] %v3337
        %vm3342 = vcmask 1043456
        %v3343 = vrot.slane %v3336, 4
        %v3344 = vrot.slane %v3337, 4
        %v3345 = vsel %vm3342, %v3343, %v3344
        %v3349 = vsel %vm3342, 0.0, %v3343
        %v3350 = vsel %vm900, %v3344, 0.0
        %v3351 = vpack.c.bf16 %v3345, %v3349
        %v3352 = vpack.c.bf16 %v3350, %v3350
        %v3355 = vrot.slane %v3351, 2
        %v3356 = vrot.slane %v3352, 2
        %v3357 = vsel %vm2810, %v3355, %v3356
        %vm3359 = vcmask 1043456
        %v3360 = vrot.slane %v3351, 4
        %v3361 = vrot.slane %v3352, 4
        %v3362 = vsel %vm3359, %v3360, %v3361
        %v3364 = vld [vmem:[#allocation9] sm:$0xf]
        %v3365 = vld [vmem:[#allocation9 + $0x4] sm:$0xf]
        %v3366 = vld [vmem:[#allocation9 + $0x8] sm:$0xf]
        %v3367 = vld [vmem:[#allocation9 + $0xc] sm:$0xf]
        %v3368 = vld [vmem:[#allocation9 + $0x10] sm:$0xf]
        %v3369 = vld [vmem:[#allocation9 + $0x14] sm:$0xf]
        %v3370 = vld [vmem:[#allocation9 + $0x18] sm:$0xf]
        %v3371 = vld [vmem:[#allocation9 + $0x1c] sm:$0xf]
        %v3372 = vld [vmem:[#allocation9 + $0x20] sm:$0xf]
        %v3373 = vld [vmem:[#allocation9 + $0x24] sm:$0xf]
        %v3374 = vld [vmem:[#allocation9 + $0x28] sm:$0xf]
        %v3375 = vld [vmem:[#allocation9 + $0x2c] sm:$0xf]
        %v3376 = vld [vmem:[#allocation9 + $0x30] sm:$0xf]
        %v3377 = vld [vmem:[#allocation9 + $0x34] sm:$0xf]
        %v3378 = vld [vmem:[#allocation9 + $0x38] sm:$0xf]
        %v3379 = vld [vmem:[#allocation9 + $0x3c] sm:$0xf]
        %v3380 = vld [vmem:[#allocation9 + $0x40] sm:$0xf]
        %v3381 = vld [vmem:[#allocation9 + $0x44] sm:$0xf]
        %v3382 = vld [vmem:[#allocation9 + $0x48] sm:$0xf]
        %v3383 = vld [vmem:[#allocation9 + $0x4c] sm:$0xf]
        %v3384 = vld [vmem:[#allocation9 + $0x50] sm:$0xf]
        %v3385 = vld [vmem:[#allocation9 + $0x54] sm:$0xf]
        %v3386 = vld [vmem:[#allocation9 + $0x58] sm:$0xf]
        %v3387 = vld [vmem:[#allocation9 + $0x5c] sm:$0xf]
        %v3388 = vld [vmem:[#allocation9 + $0x60] sm:$0xf]
        %v3389 = vld [vmem:[#allocation9 + $0x64] sm:$0xf]
        %v3390 = vld [vmem:[#allocation9 + $0x68] sm:$0xf]
        %v3391 = vld [vmem:[#allocation9 + $0x6c] sm:$0xf]
        %v3392 = vld [vmem:[#allocation9 + $0x70] sm:$0xf]
        %v3393 = vld [vmem:[#allocation9 + $0x74] sm:$0xf]
        %v3394 = vld [vmem:[#allocation9 + $0x78] sm:$0xf]
        %v3395 = vld [vmem:[#allocation9 + $0x7c] sm:$0xf]
        %v3396 = vld [vmem:[#allocation9 + $0x80] sm:$0xf]
        %v3397 = vld [vmem:[#allocation9 + $0x84] sm:$0xf]
        %v3398 = vld [vmem:[#allocation9 + $0x88] sm:$0xf]
        %v3399 = vld [vmem:[#allocation9 + $0x8c] sm:$0xf]
        %v3400 = vld [vmem:[#allocation9 + $0x90] sm:$0xf]
        %v3401 = vld [vmem:[#allocation9 + $0x94] sm:$0xf]
        %v3402 = vld [vmem:[#allocation9 + $0x98] sm:$0xf]
        %v3403 = vld [vmem:[#allocation9 + $0x9c] sm:$0xf]
        %v3404 = vld [vmem:[#allocation9 + $0xa0] sm:$0xf]
        %v3405 = vld [vmem:[#allocation9 + $0xa4] sm:$0xf]
        %v3406 = vld [vmem:[#allocation9 + $0xa8] sm:$0xf]
        %v3407 = vld [vmem:[#allocation9 + $0xac] sm:$0xf]
        %v3408 = vld [vmem:[#allocation9 + $0xb0] sm:$0xf]
        %v3409 = vld [vmem:[#allocation9 + $0xb4] sm:$0xf]
        %v3410 = vld [vmem:[#allocation9 + $0xb8] sm:$0xf]
        %v3411 = vld [vmem:[#allocation9 + $0xbc] sm:$0xf]
        %v3412 = vld [vmem:[%s11] sm:$0x1]
        %v3414 = vlaneseq
        %v3415 = vshrl.u32 %v3414, 7
        %v3416 = vsub.s32 0, %v3415
        %v3417 = vrot.slane %v3412, %v3416
        %v3467 = vunpack.c.l.b16 %v3364
        %v3468 = vunpack.c.l.b16 %v3365
        %v3469 = vunpack.c.l.b16 %v3366
        %v3470 = vunpack.c.l.b16 %v3367
        %v3471 = vunpack.c.l.b16 %v3368
        %v3472 = vunpack.c.l.b16 %v3369
        %v3473 = vunpack.c.l.b16 %v3370
        %v3474 = vunpack.c.l.b16 %v3371
        %v3475 = vunpack.c.l.b16 %v3372
        %v3476 = vunpack.c.l.b16 %v3373
        %v3477 = vunpack.c.l.b16 %v3374
        %v3478 = vunpack.c.l.b16 %v3375
        %v3479 = vunpack.c.l.b16 %v3376
        %v3480 = vunpack.c.l.b16 %v3377
        %v3481 = vunpack.c.l.b16 %v3378
        %v3482 = vunpack.c.l.b16 %v3379
        %v3483 = vunpack.c.l.b16 %v3380
        %v3484 = vunpack.c.l.b16 %v3381
        %v3485 = vunpack.c.l.b16 %v3382
        %v3486 = vunpack.c.l.b16 %v3383
        %v3487 = vunpack.c.l.b16 %v3384
        %v3488 = vunpack.c.l.b16 %v3385
        %v3489 = vunpack.c.l.b16 %v3386
        %v3490 = vunpack.c.l.b16 %v3387
        %v3491 = vunpack.c.l.b16 %v3388
        %v3492 = vunpack.c.l.b16 %v3389
        %v3493 = vunpack.c.l.b16 %v3390
        %v3494 = vunpack.c.l.b16 %v3391
        %v3495 = vunpack.c.l.b16 %v3392
        %v3496 = vunpack.c.l.b16 %v3393
        %v3497 = vunpack.c.l.b16 %v3394
        %v3498 = vunpack.c.l.b16 %v3395
        %v3499 = vunpack.c.l.b16 %v3396
        %v3500 = vunpack.c.l.b16 %v3397
        %v3501 = vunpack.c.l.b16 %v3398
        %v3502 = vunpack.c.l.b16 %v3399
        %v3503 = vunpack.c.l.b16 %v3400
        %v3504 = vunpack.c.l.b16 %v3401
        %v3505 = vunpack.c.l.b16 %v3402
        %v3506 = vunpack.c.l.b16 %v3403
        %v3507 = vunpack.c.l.b16 %v3404
        %v3508 = vunpack.c.l.b16 %v3405
        %v3509 = vunpack.c.l.b16 %v3406
        %v3510 = vunpack.c.l.b16 %v3407
        %v3511 = vunpack.c.l.b16 %v3408
        %v3512 = vunpack.c.l.b16 %v3409
        %v3513 = vunpack.c.l.b16 %v3410
        %v3514 = vunpack.c.l.b16 %v3411
        %v3515 = vpack.c.b16 %v3468, %v3467
        %v3516 = vpack.c.b16 %v3470, %v3469
        %v3517 = vpack.c.b16 %v3472, %v3471
        %v3518 = vpack.c.b16 %v3474, %v3473
        %v3519 = vpack.c.b16 %v3476, %v3475
        %v3520 = vpack.c.b16 %v3478, %v3477
        %v3521 = vpack.c.b16 %v3480, %v3479
        %v3522 = vpack.c.b16 %v3482, %v3481
        %v3523 = vpack.c.b16 %v3484, %v3483
        %v3524 = vpack.c.b16 %v3486, %v3485
        %v3525 = vpack.c.b16 %v3488, %v3487
        %v3526 = vpack.c.b16 %v3490, %v3489
        %v3527 = vpack.c.b16 %v3492, %v3491
        %v3528 = vpack.c.b16 %v3494, %v3493
        %v3529 = vpack.c.b16 %v3496, %v3495
        %v3530 = vpack.c.b16 %v3498, %v3497
        %v3531 = vpack.c.b16 %v3500, %v3499
        %v3532 = vpack.c.b16 %v3502, %v3501
        %v3533 = vpack.c.b16 %v3504, %v3503
        %v3534 = vpack.c.b16 %v3506, %v3505
        %v3535 = vpack.c.b16 %v3508, %v3507
        %v3536 = vpack.c.b16 %v3510, %v3509
        %v3537 = vpack.c.b16 %v3512, %v3511
        %v3538 = vpack.c.b16 %v3514, %v3513
        %3563 = vmatprep.subr.bf16.mxu0 0
        %3564 = vmatpush1.bf16.msra.mxu0 %v3522
        %3565 = vmatprep.subr.bf16.mxu0 0
        %3566 = vmatpush1.bf16.msra.mxu0 %v3521
        %3567 = vmatprep.subr.bf16.mxu0 0
        %3568 = vmatpush1.bf16.msra.mxu0 %v3520
        %3569 = vmatprep.subr.bf16.mxu0 0
        %3570 = vmatpush1.bf16.msra.mxu0 %v3519
        %3571 = vmatprep.subr.bf16.mxu0 0
        %3572 = vmatpush1.bf16.msra.mxu0 %v3518
        %3573 = vmatprep.subr.bf16.mxu0 0
        %3574 = vmatpush1.bf16.msra.mxu0 %v3517
        %3575 = vmatprep.subr.bf16.mxu0 0
        %3576 = vmatpush1.bf16.msra.mxu0 %v3516
        %3577 = vmatprep.subr.bf16.mxu0 0
        %3578 = vmatpush1.bf16.msra.mxu0 %v3515
        %3579 = vmatprep.subr.bf16.mxu0 0
        %3580 = vmatpush2.bf16.msra.mxu0 %v3530
        %3581 = vmatprep.subr.bf16.mxu0 0
        %3582 = vmatpush2.bf16.msra.mxu0 %v3529
        %3583 = vmatprep.subr.bf16.mxu0 0
        %3584 = vmatpush2.bf16.msra.mxu0 %v3528
        %3585 = vmatprep.subr.bf16.mxu0 0
        %3586 = vmatpush2.bf16.msra.mxu0 %v3527
        %3587 = vmatprep.subr.bf16.mxu0 0
        %3588 = vmatpush2.bf16.msra.mxu0 %v3526
        %3589 = vmatprep.subr.bf16.mxu0 0
        %3590 = vmatpush2.bf16.msra.mxu0 %v3525
        %3591 = vmatprep.subr.bf16.mxu0 0
        %3592 = vmatpush2.bf16.msra.mxu0 %v3524
        %3593 = vmatprep.subr.bf16.mxu0 0
        %3594 = vmatpush2.bf16.msra.mxu0 %v3523
        %3595 = vmatprep.mubr.bf16.mxu0 %v3357
        %3596 = vmatmul.mubr.bf16.gmra.mxu0 %v3351
        %v3597 = vpop.f32.mrf.mxu0
        %v3598 = vadd.f32 %v3417, %v3597
        %v3599 = vpop.f32.mrf.mxu0
        %v3600 = vpop.f32.mrf.mxu0
        %v3601 = vadd.f32 %v3417, %v3600
        %v3602 = vpop.f32.mrf.mxu0
        %3603 = vdwg.mxu0
        %3604 = vmatprep.subr.bf16.mxu0 0
        %3605 = vmatpush1.bf16.msra.mxu0 %v3538
        %3606 = vmatprep.subr.bf16.mxu0 0
        %3607 = vmatpush1.bf16.msra.mxu0 %v3537
        %3608 = vmatprep.subr.bf16.mxu0 0
        %3609 = vmatpush1.bf16.msra.mxu0 %v3536
        %3610 = vmatprep.subr.bf16.mxu0 0
        %3611 = vmatpush1.bf16.msra.mxu0 %v3535
        %3612 = vmatprep.subr.bf16.mxu0 0
        %3613 = vmatpush1.bf16.msra.mxu0 %v3534
        %3614 = vmatprep.subr.bf16.mxu0 0
        %3615 = vmatpush1.bf16.msra.mxu0 %v3533
        %3616 = vmatprep.subr.bf16.mxu0 0
        %3617 = vmatpush1.bf16.msra.mxu0 %v3532
        %3618 = vmatprep.subr.bf16.mxu0 0
        %3619 = vmatpush1.bf16.msra.mxu0 %v3531
        %3620 = vmatprep.subr.bf16.mxu0 0
        %3621 = vmatpush2.bf16.msra.mxu0 0
        %3622 = vmatprep.subr.bf16.mxu0 0
        %3623 = vmatpush2.bf16.msra.mxu0 0
        %3624 = vmatprep.subr.bf16.mxu0 0
        %3625 = vmatpush2.bf16.msra.mxu0 0
        %3626 = vmatprep.subr.bf16.mxu0 0
        %3627 = vmatpush2.bf16.msra.mxu0 0
        %3628 = vmatprep.subr.bf16.mxu0 0
        %3629 = vmatpush2.bf16.msra.mxu0 0
        %3630 = vmatprep.subr.bf16.mxu0 0
        %3631 = vmatpush2.bf16.msra.mxu0 0
        %3632 = vmatprep.subr.bf16.mxu0 0
        %3633 = vmatpush2.bf16.msra.mxu0 0
        %3634 = vmatprep.subr.bf16.mxu0 0
        %3635 = vmatpush2.bf16.msra.mxu0 0
        %3636 = vmatprep.mubr.bf16.mxu0 0
        %3637 = vmatmul.mubr.bf16.gmra.mxu0 %v3362
        %v3638 = vpop.f32.mrf.mxu0
        %v3639 = vadd.f32 %v3598, %v3638
        %v3640 = vpop.f32.mrf.mxu0
        %v3641 = vpop.f32.mrf.mxu0
        %v3642 = vadd.f32 %v3601, %v3641
        %v3643 = vpop.f32.mrf.mxu0
        %3644 = vdwg.mxu0
        %vm3645 = vcmp.gt.f32.partialorder %v3639, 0.0
        %vm3646 = vcmp.gt.f32.partialorder %v3642, 0.0
        %v3647 = vmul.f32 %v3639, 0.2
        %v3648 = vmul.f32 %v3642, 0.2
        %v3649 = vsel %vm3645, %v3639, %v3647
        %v3650 = vsel %vm3646, %v3642, %v3648
        %3651 = vst [vmem:[%s755] sm:$0xff] %v3649
        %3652 = vst [vmem:[%s755 + $0x8] sm:$0x1f] %v3650
        %v3655 = vrot.slane %v3649, 7
        %v3656 = vrot.slane %v3650, 7
        %v3657 = vsel %vm900, %v3655, %v3656
        %v3660 = vsel %vm900, 0.0, %v3655
        %v3661 = vsel %vm907, %v3657, 0.0
        %v3662 = vpack.c.bf16 %v3661, %v3660
        %v3664 = vshrl.u32 %v3662, 16
        %v3666 = vshll.u32 %v3662, 16
        %v3668 = vrot.slane %v3666, 1
        %v3669 = vor.u32 %v3664, %v3668
        %v3672 = vrot.slane %v3662, 1
        %v3674 = vld [vmem:[#allocation10] sm:$0xf]
        %v3675 = vld [vmem:[#allocation10 + $0x4] sm:$0xf]
        %v3676 = vld [vmem:[#allocation10 + $0x8] sm:$0xf]
        %v3677 = vld [vmem:[#allocation10 + $0xc] sm:$0xf]
        %v3678 = vld [vmem:[#allocation10 + $0x10] sm:$0xf]
        %v3679 = vld [vmem:[#allocation10 + $0x14] sm:$0xf]
        %v3680 = vld [vmem:[#allocation10 + $0x18] sm:$0xf]
        %v3681 = vld [vmem:[#allocation10 + $0x1c] sm:$0xf]
        %v3682 = vld [vmem:[#allocation10 + $0x20] sm:$0xf]
        %v3683 = vld [vmem:[#allocation10 + $0x24] sm:$0xf]
        %v3684 = vld [vmem:[#allocation10 + $0x28] sm:$0xf]
        %v3685 = vld [vmem:[#allocation10 + $0x2c] sm:$0xf]
        %v3686 = vld [vmem:[#allocation10 + $0x30] sm:$0xf]
        %v3687 = vld [vmem:[#allocation10 + $0x34] sm:$0xf]
        %v3688 = vld [vmem:[#allocation10 + $0x38] sm:$0xf]
        %v3689 = vld [vmem:[#allocation10 + $0x3c] sm:$0xf]
        %v3690 = vld [vmem:[#allocation10 + $0x40] sm:$0xf]
        %v3691 = vld [vmem:[#allocation10 + $0x44] sm:$0xf]
        %v3692 = vld [vmem:[#allocation10 + $0x48] sm:$0xf]
        %v3693 = vld [vmem:[#allocation10 + $0x4c] sm:$0xf]
        %v3694 = vld [vmem:[#allocation10 + $0x50] sm:$0xf]
        %v3695 = vld [vmem:[#allocation10 + $0x54] sm:$0xf]
        %v3696 = vld [vmem:[#allocation10 + $0x58] sm:$0xf]
        %v3697 = vld [vmem:[#allocation10 + $0x5c] sm:$0xf]
        %v3698 = vld [vmem:[#allocation10 + $0x60] sm:$0xf]
        %v3699 = vld [vmem:[#allocation10 + $0x64] sm:$0xf]
        %v3700 = vld [vmem:[#allocation10 + $0x68] sm:$0xf]
        %v3701 = vld [vmem:[#allocation10 + $0x6c] sm:$0xf]
        %v3702 = vld [vmem:[#allocation10 + $0x70] sm:$0xf]
        %v3703 = vld [vmem:[#allocation10 + $0x74] sm:$0xf]
        %v3704 = vld [vmem:[#allocation10 + $0x78] sm:$0xf]
        %v3705 = vld [vmem:[#allocation10 + $0x7c] sm:$0xf]
        %v3706 = vld [vmem:[#allocation10 + $0x80] sm:$0xf]
        %v3707 = vld [vmem:[#allocation10 + $0x84] sm:$0xf]
        %v3708 = vld [vmem:[#allocation10 + $0x88] sm:$0xf]
        %v3709 = vld [vmem:[#allocation10 + $0x8c] sm:$0xf]
        %v3710 = vld [vmem:[#allocation10 + $0x90] sm:$0xf]
        %v3711 = vld [vmem:[#allocation10 + $0x94] sm:$0xf]
        %v3712 = vld [vmem:[#allocation10 + $0x98] sm:$0xf]
        %v3713 = vld [vmem:[#allocation10 + $0x9c] sm:$0xf]
        %v3714 = vld [vmem:[#allocation10 + $0xa0] sm:$0xf]
        %v3715 = vld [vmem:[#allocation10 + $0xa4] sm:$0xf]
        %v3716 = vld [vmem:[#allocation10 + $0xa8] sm:$0xf]
        %v3717 = vld [vmem:[#allocation10 + $0xac] sm:$0xf]
        %v3718 = vld [vmem:[#allocation10 + $0xb0] sm:$0xf]
        %v3719 = vld [vmem:[#allocation10 + $0xb4] sm:$0xf]
        %v3720 = vld [vmem:[#allocation10 + $0xb8] sm:$0xf]
        %v3721 = vld [vmem:[#allocation10 + $0xbc] sm:$0xf]
        %v3722 = vld [vmem:[%s12] sm:$0x1]
        %v3724 = vlaneseq
        %v3725 = vshrl.u32 %v3724, 7
        %v3726 = vsub.s32 0, %v3725
        %v3727 = vrot.slane %v3722, %v3726
        %v3777 = vunpack.c.l.b16 %v3674
        %v3778 = vunpack.c.l.b16 %v3675
        %v3779 = vunpack.c.l.b16 %v3676
        %v3780 = vunpack.c.l.b16 %v3677
        %v3781 = vunpack.c.l.b16 %v3678
        %v3782 = vunpack.c.l.b16 %v3679
        %v3783 = vunpack.c.l.b16 %v3680
        %v3784 = vunpack.c.l.b16 %v3681
        %v3785 = vunpack.c.l.b16 %v3682
        %v3786 = vunpack.c.l.b16 %v3683
        %v3787 = vunpack.c.l.b16 %v3684
        %v3788 = vunpack.c.l.b16 %v3685
        %v3789 = vunpack.c.l.b16 %v3686
        %v3790 = vunpack.c.l.b16 %v3687
        %v3791 = vunpack.c.l.b16 %v3688
        %v3792 = vunpack.c.l.b16 %v3689
        %v3793 = vunpack.c.l.b16 %v3690
        %v3794 = vunpack.c.l.b16 %v3691
        %v3795 = vunpack.c.l.b16 %v3692
        %v3796 = vunpack.c.l.b16 %v3693
        %v3797 = vunpack.c.l.b16 %v3694
        %v3798 = vunpack.c.l.b16 %v3695
        %v3799 = vunpack.c.l.b16 %v3696
        %v3800 = vunpack.c.l.b16 %v3697
        %v3801 = vunpack.c.l.b16 %v3698
        %v3802 = vunpack.c.l.b16 %v3699
        %v3803 = vunpack.c.l.b16 %v3700
        %v3804 = vunpack.c.l.b16 %v3701
        %v3805 = vunpack.c.l.b16 %v3702
        %v3806 = vunpack.c.l.b16 %v3703
        %v3807 = vunpack.c.l.b16 %v3704
        %v3808 = vunpack.c.l.b16 %v3705
        %v3809 = vunpack.c.l.b16 %v3706
        %v3810 = vunpack.c.l.b16 %v3707
        %v3811 = vunpack.c.l.b16 %v3708
        %v3812 = vunpack.c.l.b16 %v3709
        %v3813 = vunpack.c.l.b16 %v3710
        %v3814 = vunpack.c.l.b16 %v3711
        %v3815 = vunpack.c.l.b16 %v3712
        %v3816 = vunpack.c.l.b16 %v3713
        %v3817 = vunpack.c.l.b16 %v3714
        %v3818 = vunpack.c.l.b16 %v3715
        %v3819 = vunpack.c.l.b16 %v3716
        %v3820 = vunpack.c.l.b16 %v3717
        %v3821 = vunpack.c.l.b16 %v3718
        %v3822 = vunpack.c.l.b16 %v3719
        %v3823 = vunpack.c.l.b16 %v3720
        %v3824 = vunpack.c.l.b16 %v3721
        %v3825 = vpack.c.b16 %v3778, %v3777
        %v3826 = vpack.c.b16 %v3780, %v3779
        %v3827 = vpack.c.b16 %v3782, %v3781
        %v3828 = vpack.c.b16 %v3784, %v3783
        %v3829 = vpack.c.b16 %v3786, %v3785
        %v3830 = vpack.c.b16 %v3788, %v3787
        %v3831 = vpack.c.b16 %v3790, %v3789
        %v3832 = vpack.c.b16 %v3792, %v3791
        %v3833 = vpack.c.b16 %v3794, %v3793
        %v3834 = vpack.c.b16 %v3796, %v3795
        %v3835 = vpack.c.b16 %v3798, %v3797
        %v3836 = vpack.c.b16 %v3800, %v3799
        %v3837 = vpack.c.b16 %v3802, %v3801
        %v3838 = vpack.c.b16 %v3804, %v3803
        %v3839 = vpack.c.b16 %v3806, %v3805
        %v3840 = vpack.c.b16 %v3808, %v3807
        %v3841 = vpack.c.b16 %v3810, %v3809
        %v3842 = vpack.c.b16 %v3812, %v3811
        %v3843 = vpack.c.b16 %v3814, %v3813
        %v3844 = vpack.c.b16 %v3816, %v3815
        %v3845 = vpack.c.b16 %v3818, %v3817
        %v3846 = vpack.c.b16 %v3820, %v3819
        %v3847 = vpack.c.b16 %v3822, %v3821
        %v3848 = vpack.c.b16 %v3824, %v3823
        %3873 = vmatprep.subr.bf16.mxu0 0
        %3874 = vmatpush1.bf16.msra.mxu0 %v3832
        %3875 = vmatprep.subr.bf16.mxu0 0
        %3876 = vmatpush1.bf16.msra.mxu0 %v3831
        %3877 = vmatprep.subr.bf16.mxu0 0
        %3878 = vmatpush1.bf16.msra.mxu0 %v3830
        %3879 = vmatprep.subr.bf16.mxu0 0
        %3880 = vmatpush1.bf16.msra.mxu0 %v3829
        %3881 = vmatprep.subr.bf16.mxu0 0
        %3882 = vmatpush1.bf16.msra.mxu0 %v3828
        %3883 = vmatprep.subr.bf16.mxu0 0
        %3884 = vmatpush1.bf16.msra.mxu0 %v3827
        %3885 = vmatprep.subr.bf16.mxu0 0
        %3886 = vmatpush1.bf16.msra.mxu0 %v3826
        %3887 = vmatprep.subr.bf16.mxu0 0
        %3888 = vmatpush1.bf16.msra.mxu0 %v3825
        %3889 = vmatprep.subr.bf16.mxu0 0
        %3890 = vmatpush2.bf16.msra.mxu0 %v3840
        %3891 = vmatprep.subr.bf16.mxu0 0
        %3892 = vmatpush2.bf16.msra.mxu0 %v3839
        %3893 = vmatprep.subr.bf16.mxu0 0
        %3894 = vmatpush2.bf16.msra.mxu0 %v3838
        %3895 = vmatprep.subr.bf16.mxu0 0
        %3896 = vmatpush2.bf16.msra.mxu0 %v3837
        %3897 = vmatprep.subr.bf16.mxu0 0
        %3898 = vmatpush2.bf16.msra.mxu0 %v3836
        %3899 = vmatprep.subr.bf16.mxu0 0
        %3900 = vmatpush2.bf16.msra.mxu0 %v3835
        %3901 = vmatprep.subr.bf16.mxu0 0
        %3902 = vmatpush2.bf16.msra.mxu0 %v3834
        %3903 = vmatprep.subr.bf16.mxu0 0
        %3904 = vmatpush2.bf16.msra.mxu0 %v3833
        %3905 = vmatprep.mubr.bf16.mxu0 %v3669
        %3906 = vmatmul.mubr.bf16.gmra.mxu0 %v3662
        %v3907 = vpop.f32.mrf.mxu0
        %v3908 = vadd.f32 %v3727, %v3907
        %v3909 = vpop.f32.mrf.mxu0
        %v3910 = vpop.f32.mrf.mxu0
        %v3911 = vadd.f32 %v3727, %v3910
        %v3912 = vpop.f32.mrf.mxu0
        %3913 = vdwg.mxu0
        %3914 = vmatprep.subr.bf16.mxu0 0
        %3915 = vmatpush1.bf16.msra.mxu0 %v3848
        %3916 = vmatprep.subr.bf16.mxu0 0
        %3917 = vmatpush1.bf16.msra.mxu0 %v3847
        %3918 = vmatprep.subr.bf16.mxu0 0
        %3919 = vmatpush1.bf16.msra.mxu0 %v3846
        %3920 = vmatprep.subr.bf16.mxu0 0
        %3921 = vmatpush1.bf16.msra.mxu0 %v3845
        %3922 = vmatprep.subr.bf16.mxu0 0
        %3923 = vmatpush1.bf16.msra.mxu0 %v3844
        %3924 = vmatprep.subr.bf16.mxu0 0
        %3925 = vmatpush1.bf16.msra.mxu0 %v3843
        %3926 = vmatprep.subr.bf16.mxu0 0
        %3927 = vmatpush1.bf16.msra.mxu0 %v3842
        %3928 = vmatprep.subr.bf16.mxu0 0
        %3929 = vmatpush1.bf16.msra.mxu0 %v3841
        %3930 = vmatprep.subr.bf16.mxu0 0
        %3931 = vmatpush2.bf16.msra.mxu0 0
        %3932 = vmatprep.subr.bf16.mxu0 0
        %3933 = vmatpush2.bf16.msra.mxu0 0
        %3934 = vmatprep.subr.bf16.mxu0 0
        %3935 = vmatpush2.bf16.msra.mxu0 0
        %3936 = vmatprep.subr.bf16.mxu0 0
        %3937 = vmatpush2.bf16.msra.mxu0 0
        %3938 = vmatprep.subr.bf16.mxu0 0
        %3939 = vmatpush2.bf16.msra.mxu0 0
        %3940 = vmatprep.subr.bf16.mxu0 0
        %3941 = vmatpush2.bf16.msra.mxu0 0
        %3942 = vmatprep.subr.bf16.mxu0 0
        %3943 = vmatpush2.bf16.msra.mxu0 0
        %3944 = vmatprep.subr.bf16.mxu0 0
        %3945 = vmatpush2.bf16.msra.mxu0 0
        %3946 = vmatprep.mubr.bf16.mxu0 0
        %3947 = vmatmul.mubr.bf16.gmra.mxu0 %v3672
        %v3948 = vpop.f32.mrf.mxu0
        %v3949 = vadd.f32 %v3908, %v3948
        %v3950 = vpop.f32.mrf.mxu0
        %v3951 = vpop.f32.mrf.mxu0
        %v3952 = vadd.f32 %v3911, %v3951
        %v3953 = vpop.f32.mrf.mxu0
        %3954 = vdwg.mxu0
        %vm3955 = vcmp.gt.f32.partialorder %v3949, 0.0
        %vm3956 = vcmp.gt.f32.partialorder %v3952, 0.0
        %v3957 = vmul.f32 %v3949, 0.2
        %v3958 = vmul.f32 %v3952, 0.2
        %v3959 = vsel %vm3955, %v3949, %v3957
        %v3960 = vsel %vm3956, %v3952, %v3958
        %3961 = vst [vmem:[%s760] sm:$0xff] %v3959
        %3962 = vst [vmem:[%s760 + $0x8] sm:$0x1f] %v3960
        %v3965 = vrot.slane %v3959, 7
        %v3966 = vrot.slane %v3960, 7
        %v3967 = vsel %vm900, %v3965, %v3966
        %v3970 = vsel %vm900, 0.0, %v3965
        %v3971 = vsel %vm907, %v3967, 0.0
        %v3972 = vpack.c.bf16 %v3971, %v3970
        %v3974 = vshrl.u32 %v3972, 16
        %v3976 = vshll.u32 %v3972, 16
        %v3978 = vrot.slane %v3976, 1
        %v3979 = vor.u32 %v3974, %v3978
        %v3982 = vrot.slane %v3972, 1
        %v3984 = vld [vmem:[#allocation12] sm:$0xf]
        %v3985 = vld [vmem:[#allocation12 + $0x4] sm:$0xf]
        %v3986 = vld [vmem:[#allocation12 + $0x8] sm:$0xf]
        %v3987 = vld [vmem:[#allocation12 + $0xc] sm:$0xf]
        %v3988 = vld [vmem:[#allocation12 + $0x10] sm:$0xf]
        %v3989 = vld [vmem:[#allocation12 + $0x14] sm:$0xf]
        %v3990 = vld [vmem:[#allocation12 + $0x18] sm:$0xf]
        %v3991 = vld [vmem:[#allocation12 + $0x1c] sm:$0xf]
        %v3992 = vld [vmem:[#allocation12 + $0x20] sm:$0xf]
        %v3993 = vld [vmem:[#allocation12 + $0x24] sm:$0xf]
        %v3994 = vld [vmem:[#allocation12 + $0x28] sm:$0xf]
        %v3995 = vld [vmem:[#allocation12 + $0x2c] sm:$0xf]
        %v3996 = vld [vmem:[#allocation12 + $0x30] sm:$0xf]
        %v3997 = vld [vmem:[#allocation12 + $0x34] sm:$0xf]
        %v3998 = vld [vmem:[#allocation12 + $0x38] sm:$0xf]
        %v3999 = vld [vmem:[#allocation12 + $0x3c] sm:$0xf]
        %v4000 = vld [vmem:[#allocation12 + $0x40] sm:$0xf]
        %v4001 = vld [vmem:[#allocation12 + $0x44] sm:$0xf]
        %v4002 = vld [vmem:[#allocation12 + $0x48] sm:$0xf]
        %v4003 = vld [vmem:[#allocation12 + $0x4c] sm:$0xf]
        %v4004 = vld [vmem:[#allocation12 + $0x50] sm:$0xf]
        %v4005 = vld [vmem:[#allocation12 + $0x54] sm:$0xf]
        %v4006 = vld [vmem:[#allocation12 + $0x58] sm:$0xf]
        %v4007 = vld [vmem:[#allocation12 + $0x5c] sm:$0xf]
        %v4008 = vld [vmem:[#allocation12 + $0x60] sm:$0xf]
        %v4009 = vld [vmem:[#allocation12 + $0x64] sm:$0xf]
        %v4010 = vld [vmem:[#allocation12 + $0x68] sm:$0xf]
        %v4011 = vld [vmem:[#allocation12 + $0x6c] sm:$0xf]
        %v4012 = vld [vmem:[#allocation12 + $0x70] sm:$0xf]
        %v4013 = vld [vmem:[#allocation12 + $0x74] sm:$0xf]
        %v4014 = vld [vmem:[#allocation12 + $0x78] sm:$0xf]
        %v4015 = vld [vmem:[#allocation12 + $0x7c] sm:$0xf]
        %v4016 = vld [vmem:[#allocation12 + $0x80] sm:$0xf]
        %v4017 = vld [vmem:[#allocation12 + $0x84] sm:$0xf]
        %v4018 = vld [vmem:[#allocation12 + $0x88] sm:$0xf]
        %v4019 = vld [vmem:[#allocation12 + $0x8c] sm:$0xf]
        %v4020 = vld [vmem:[#allocation12 + $0x90] sm:$0xf]
        %v4021 = vld [vmem:[#allocation12 + $0x94] sm:$0xf]
        %v4022 = vld [vmem:[#allocation12 + $0x98] sm:$0xf]
        %v4023 = vld [vmem:[#allocation12 + $0x9c] sm:$0xf]
        %v4024 = vld [vmem:[#allocation12 + $0xa0] sm:$0xf]
        %v4025 = vld [vmem:[#allocation12 + $0xa4] sm:$0xf]
        %v4026 = vld [vmem:[#allocation12 + $0xa8] sm:$0xf]
        %v4027 = vld [vmem:[#allocation12 + $0xac] sm:$0xf]
        %v4028 = vld [vmem:[#allocation12 + $0xb0] sm:$0xf]
        %v4029 = vld [vmem:[#allocation12 + $0xb4] sm:$0xf]
        %v4030 = vld [vmem:[#allocation12 + $0xb8] sm:$0xf]
        %v4031 = vld [vmem:[#allocation12 + $0xbc] sm:$0xf]
        %v4032 = vld [vmem:[%s13] sm:$0x1]
        %v4034 = vlaneseq
        %v4035 = vshrl.u32 %v4034, 7
        %v4036 = vsub.s32 0, %v4035
        %v4037 = vrot.slane %v4032, %v4036
        %v4087 = vunpack.c.l.b16 %v3984
        %v4088 = vunpack.c.l.b16 %v3985
        %v4089 = vunpack.c.l.b16 %v3986
        %v4090 = vunpack.c.l.b16 %v3987
        %v4091 = vunpack.c.l.b16 %v3988
        %v4092 = vunpack.c.l.b16 %v3989
        %v4093 = vunpack.c.l.b16 %v3990
        %v4094 = vunpack.c.l.b16 %v3991
        %v4095 = vunpack.c.l.b16 %v3992
        %v4096 = vunpack.c.l.b16 %v3993
        %v4097 = vunpack.c.l.b16 %v3994
        %v4098 = vunpack.c.l.b16 %v3995
        %v4099 = vunpack.c.l.b16 %v3996
        %v4100 = vunpack.c.l.b16 %v3997
        %v4101 = vunpack.c.l.b16 %v3998
        %v4102 = vunpack.c.l.b16 %v3999
        %v4103 = vunpack.c.l.b16 %v4000
        %v4104 = vunpack.c.l.b16 %v4001
        %v4105 = vunpack.c.l.b16 %v4002
        %v4106 = vunpack.c.l.b16 %v4003
        %v4107 = vunpack.c.l.b16 %v4004
        %v4108 = vunpack.c.l.b16 %v4005
        %v4109 = vunpack.c.l.b16 %v4006
        %v4110 = vunpack.c.l.b16 %v4007
        %v4111 = vunpack.c.l.b16 %v4008
        %v4112 = vunpack.c.l.b16 %v4009
        %v4113 = vunpack.c.l.b16 %v4010
        %v4114 = vunpack.c.l.b16 %v4011
        %v4115 = vunpack.c.l.b16 %v4012
        %v4116 = vunpack.c.l.b16 %v4013
        %v4117 = vunpack.c.l.b16 %v4014
        %v4118 = vunpack.c.l.b16 %v4015
        %v4119 = vunpack.c.l.b16 %v4016
        %v4120 = vunpack.c.l.b16 %v4017
        %v4121 = vunpack.c.l.b16 %v4018
        %v4122 = vunpack.c.l.b16 %v4019
        %v4123 = vunpack.c.l.b16 %v4020
        %v4124 = vunpack.c.l.b16 %v4021
        %v4125 = vunpack.c.l.b16 %v4022
        %v4126 = vunpack.c.l.b16 %v4023
        %v4127 = vunpack.c.l.b16 %v4024
        %v4128 = vunpack.c.l.b16 %v4025
        %v4129 = vunpack.c.l.b16 %v4026
        %v4130 = vunpack.c.l.b16 %v4027
        %v4131 = vunpack.c.l.b16 %v4028
        %v4132 = vunpack.c.l.b16 %v4029
        %v4133 = vunpack.c.l.b16 %v4030
        %v4134 = vunpack.c.l.b16 %v4031
        %v4135 = vpack.c.b16 %v4088, %v4087
        %v4136 = vpack.c.b16 %v4090, %v4089
        %v4137 = vpack.c.b16 %v4092, %v4091
        %v4138 = vpack.c.b16 %v4094, %v4093
        %v4139 = vpack.c.b16 %v4096, %v4095
        %v4140 = vpack.c.b16 %v4098, %v4097
        %v4141 = vpack.c.b16 %v4100, %v4099
        %v4142 = vpack.c.b16 %v4102, %v4101
        %v4143 = vpack.c.b16 %v4104, %v4103
        %v4144 = vpack.c.b16 %v4106, %v4105
        %v4145 = vpack.c.b16 %v4108, %v4107
        %v4146 = vpack.c.b16 %v4110, %v4109
        %v4147 = vpack.c.b16 %v4112, %v4111
        %v4148 = vpack.c.b16 %v4114, %v4113
        %v4149 = vpack.c.b16 %v4116, %v4115
        %v4150 = vpack.c.b16 %v4118, %v4117
        %v4151 = vpack.c.b16 %v4120, %v4119
        %v4152 = vpack.c.b16 %v4122, %v4121
        %v4153 = vpack.c.b16 %v4124, %v4123
        %v4154 = vpack.c.b16 %v4126, %v4125
        %v4155 = vpack.c.b16 %v4128, %v4127
        %v4156 = vpack.c.b16 %v4130, %v4129
        %v4157 = vpack.c.b16 %v4132, %v4131
        %v4158 = vpack.c.b16 %v4134, %v4133
        %4183 = vmatprep.subr.bf16.mxu0 0
        %4184 = vmatpush1.bf16.msra.mxu0 %v4142
        %4185 = vmatprep.subr.bf16.mxu0 0
        %4186 = vmatpush1.bf16.msra.mxu0 %v4141
        %4187 = vmatprep.subr.bf16.mxu0 0
        %4188 = vmatpush1.bf16.msra.mxu0 %v4140
        %4189 = vmatprep.subr.bf16.mxu0 0
        %4190 = vmatpush1.bf16.msra.mxu0 %v4139
        %4191 = vmatprep.subr.bf16.mxu0 0
        %4192 = vmatpush1.bf16.msra.mxu0 %v4138
        %4193 = vmatprep.subr.bf16.mxu0 0
        %4194 = vmatpush1.bf16.msra.mxu0 %v4137
        %4195 = vmatprep.subr.bf16.mxu0 0
        %4196 = vmatpush1.bf16.msra.mxu0 %v4136
        %4197 = vmatprep.subr.bf16.mxu0 0
        %4198 = vmatpush1.bf16.msra.mxu0 %v4135
        %4199 = vmatprep.subr.bf16.mxu0 0
        %4200 = vmatpush2.bf16.msra.mxu0 %v4150
        %4201 = vmatprep.subr.bf16.mxu0 0
        %4202 = vmatpush2.bf16.msra.mxu0 %v4149
        %4203 = vmatprep.subr.bf16.mxu0 0
        %4204 = vmatpush2.bf16.msra.mxu0 %v4148
        %4205 = vmatprep.subr.bf16.mxu0 0
        %4206 = vmatpush2.bf16.msra.mxu0 %v4147
        %4207 = vmatprep.subr.bf16.mxu0 0
        %4208 = vmatpush2.bf16.msra.mxu0 %v4146
        %4209 = vmatprep.subr.bf16.mxu0 0
        %4210 = vmatpush2.bf16.msra.mxu0 %v4145
        %4211 = vmatprep.subr.bf16.mxu0 0
        %4212 = vmatpush2.bf16.msra.mxu0 %v4144
        %4213 = vmatprep.subr.bf16.mxu0 0
        %4214 = vmatpush2.bf16.msra.mxu0 %v4143
        %4215 = vmatprep.mubr.bf16.mxu0 %v3979
        %4216 = vmatmul.mubr.bf16.gmra.mxu0 %v3972
        %v4217 = vpop.f32.mrf.mxu0
        %v4218 = vadd.f32 %v4037, %v4217
        %v4219 = vpop.f32.mrf.mxu0
        %v4220 = vpop.f32.mrf.mxu0
        %v4221 = vadd.f32 %v4037, %v4220
        %v4222 = vpop.f32.mrf.mxu0
        %4223 = vdwg.mxu0
        %4224 = vmatprep.subr.bf16.mxu0 0
        %4225 = vmatpush1.bf16.msra.mxu0 %v4158
        %4226 = vmatprep.subr.bf16.mxu0 0
        %4227 = vmatpush1.bf16.msra.mxu0 %v4157
        %4228 = vmatprep.subr.bf16.mxu0 0
        %4229 = vmatpush1.bf16.msra.mxu0 %v4156
        %4230 = vmatprep.subr.bf16.mxu0 0
        %4231 = vmatpush1.bf16.msra.mxu0 %v4155
        %4232 = vmatprep.subr.bf16.mxu0 0
        %4233 = vmatpush1.bf16.msra.mxu0 %v4154
        %4234 = vmatprep.subr.bf16.mxu0 0
        %4235 = vmatpush1.bf16.msra.mxu0 %v4153
        %4236 = vmatprep.subr.bf16.mxu0 0
        %4237 = vmatpush1.bf16.msra.mxu0 %v4152
        %4238 = vmatprep.subr.bf16.mxu0 0
        %4239 = vmatpush1.bf16.msra.mxu0 %v4151
        %4240 = vmatprep.subr.bf16.mxu0 0
        %4241 = vmatpush2.bf16.msra.mxu0 0
        %4242 = vmatprep.subr.bf16.mxu0 0
        %4243 = vmatpush2.bf16.msra.mxu0 0
        %4244 = vmatprep.subr.bf16.mxu0 0
        %4245 = vmatpush2.bf16.msra.mxu0 0
        %4246 = vmatprep.subr.bf16.mxu0 0
        %4247 = vmatpush2.bf16.msra.mxu0 0
        %4248 = vmatprep.subr.bf16.mxu0 0
        %4249 = vmatpush2.bf16.msra.mxu0 0
        %4250 = vmatprep.subr.bf16.mxu0 0
        %4251 = vmatpush2.bf16.msra.mxu0 0
        %4252 = vmatprep.subr.bf16.mxu0 0
        %4253 = vmatpush2.bf16.msra.mxu0 0
        %4254 = vmatprep.subr.bf16.mxu0 0
        %4255 = vmatpush2.bf16.msra.mxu0 0
        %4256 = vmatprep.mubr.bf16.mxu0 0
        %4257 = vmatmul.mubr.bf16.gmra.mxu0 %v3982
        %v4258 = vpop.f32.mrf.mxu0
        %v4259 = vadd.f32 %v4218, %v4258
        %v4260 = vpop.f32.mrf.mxu0
        %v4261 = vpop.f32.mrf.mxu0
        %v4262 = vadd.f32 %v4221, %v4261
        %v4263 = vpop.f32.mrf.mxu0
        %4264 = vdwg.mxu0
        %4265 = vst [vmem:[%s765] sm:$0xff] %v4259
        %4266 = vst [vmem:[%s765 + $0x8] sm:$0x1f] %v4262
        %p4267 = scmp.lt.s32.totalorder %s35, 1
        %s4268 = scalar_select %p4267, %s35, 1
        %s4269 = smul.addr %s4268, 6
        %s4270 = smul.addr %s4269, 8
        %s4271 = scalar_lea.vmem %s14, %s4270
        %p4272 = scmp.lt.s32.totalorder %s35, 1
        %s4273 = scalar_select %p4272, %s35, 1
        %s4274 = smul.addr %s4273, 4
        %s4275 = smul.addr %s4274, 8
        %s4276 = scalar_lea.vmem %s15, %s4275
        %p4277 = scmp.lt.s32.totalorder %s35, 1
        %s4278 = scalar_select %p4277, %s35, 1
        %s4279 = smul.addr %s4278, 2
        %s4280 = smul.addr %s4279, 8
        %s4281 = scalar_lea.vmem %s16, %s4280
        %p4282 = scmp.lt.s32.totalorder %s35, 1
        %s4283 = scalar_select %p4282, %s35, 1
        %s4284 = smul.addr %s4283, 2
        %s4285 = smul.addr %s4284, 8
        %s4286 = scalar_lea.vmem %s17, %s4285
        %p4287 = scmp.lt.s32.totalorder %s35, 1
        %s4288 = scalar_select %p4287, %s35, 1
        %s4289 = smul.addr %s4288, 2
        %s4290 = smul.addr %s4289, 8
        %s4291 = scalar_lea.vmem %s18, %s4290
        %p4292 = scmp.lt.s32.totalorder %s35, 1
        %s4293 = scalar_select %p4292, %s35, 1
        %s4294 = smul.addr %s4293, 2
        %s4295 = smul.addr %s4294, 8
        %s4296 = scalar_lea.vmem %s19, %s4295
        // Predicated region
        $region105: #{discriminator_stft_forward.1} parent=75 // pred_check
          %p4297 = pneg %p352
        $region106: #{discriminator_stft_forward.1} parent=75 // pred_check_branch
          %4299 = sbr.rel (%p4297) target = $region108
        $region107: #{discriminator_stft_forward.1} parent=75 // pred_region
          _
        $region108: #{discriminator_stft_forward.1} parent=75 // pred_fallthru
          _
        // Predicated region
        $region109: #{discriminator_stft_forward.1} parent=75 // pred_check
          %p4300 = pneg %p378
        $region110: #{discriminator_stft_forward.1} parent=75 // pred_check_branch
          %4302 = sbr.rel (%p4300) target = $region112
        $region111: #{discriminator_stft_forward.1} parent=75 // pred_region
          _
        $region112: #{discriminator_stft_forward.1} parent=75 // pred_fallthru
          _
        // Predicated region
        $region113: #{discriminator_stft_forward.1} parent=75 // pred_check
          %p4303 = pneg %p404
        $region114: #{discriminator_stft_forward.1} parent=75 // pred_check_branch
          %4305 = sbr.rel (%p4303) target = $region116
        $region115: #{discriminator_stft_forward.1} parent=75 // pred_region
          _
        $region116: #{discriminator_stft_forward.1} parent=75 // pred_fallthru
          _
        // Predicated region
        $region117: #{discriminator_stft_forward.1} parent=75 // pred_check
          %p4306 = pneg %p430
        $region118: #{discriminator_stft_forward.1} parent=75 // pred_check_branch
          %4308 = sbr.rel (%p4306) target = $region120
        $region119: #{discriminator_stft_forward.1} parent=75 // pred_region
          _
        $region120: #{discriminator_stft_forward.1} parent=75 // pred_fallthru
          _
        // Predicated region
        $region121: #{discriminator_stft_forward.1} parent=75 // pred_check
          %p4309 = pneg %p456
        $region122: #{discriminator_stft_forward.1} parent=75 // pred_check_branch
          %4311 = sbr.rel (%p4309) target = $region124
        $region123: #{discriminator_stft_forward.1} parent=75 // pred_region
          _
        $region124: #{discriminator_stft_forward.1} parent=75 // pred_fallthru
          _
        // Predicated region
        $region125: #{discriminator_stft_forward.1} parent=75 // pred_check
          %p4312 = pneg %p482
        $region126: #{discriminator_stft_forward.1} parent=75 // pred_check_branch
          %4314 = sbr.rel (%p4312) target = $region128
        $region127: #{discriminator_stft_forward.1} parent=75 // pred_region
          _
        $region128: #{discriminator_stft_forward.1} parent=75 // pred_fallthru
          _
      $region76: #{discriminator_stft_forward.1} parent=5 // pred_fallthru
        _
      %p4315 = scmp.le.s32.totalorder 2, %s30
      // Predicated region
      $region129: #{discriminator_stft_forward.1} parent=5 // pred_check
        %p4316 = pneg %p4315
      $region130: #{discriminator_stft_forward.1} parent=5 // pred_check_branch
        %4318 = sbr.rel (%p4316) target = $region132
      $region131: #{discriminator_stft_forward.1} parent=5 // pred_region
        %s4319 = ssub.s32 %s30, 2
        // Predicated region
        $region133: #{discriminator_stft_forward.1} parent=131 // pred_check
          %p4320 = pneg %p358
        $region134: #{discriminator_stft_forward.1} parent=131 // pred_check_branch
          %4322 = sbr.rel (%p4320) target = $region136
        $region135: #{discriminator_stft_forward.1} parent=131 // pred_region
          %p4323 = scmp.lt.s32.totalorder %s36, 1
          %s4324 = scalar_select %p4323, %s36, 1
          %s4325 = smul.addr %s4324, 6
          %s4326 = smul.addr %s4325, 8
          %s4327 = scalar_lea.vmem %s14, %s4326
        $region136: #{discriminator_stft_forward.1} parent=131 // pred_fallthru
          _
        // Predicated region
        $region137: #{discriminator_stft_forward.1} parent=131 // pred_check
          %p4328 = pneg %p384
        $region138: #{discriminator_stft_forward.1} parent=131 // pred_check_branch
          %4330 = sbr.rel (%p4328) target = $region140
        $region139: #{discriminator_stft_forward.1} parent=131 // pred_region
          %p4331 = scmp.lt.s32.totalorder %s36, 1
          %s4332 = scalar_select %p4331, %s36, 1
          %s4333 = smul.addr %s4332, 4
          %s4334 = smul.addr %s4333, 8
          %s4335 = scalar_lea.vmem %s15, %s4334
        $region140: #{discriminator_stft_forward.1} parent=131 // pred_fallthru
          _
        // Predicated region
        $region141: #{discriminator_stft_forward.1} parent=131 // pred_check
          %p4336 = pneg %p410
        $region142: #{discriminator_stft_forward.1} parent=131 // pred_check_branch
          %4338 = sbr.rel (%p4336) target = $region144
        $region143: #{discriminator_stft_forward.1} parent=131 // pred_region
          %p4339 = scmp.lt.s32.totalorder %s36, 1
          %s4340 = scalar_select %p4339, %s36, 1
          %s4341 = smul.addr %s4340, 2
          %s4342 = smul.addr %s4341, 8
          %s4343 = scalar_lea.vmem %s16, %s4342
        $region144: #{discriminator_stft_forward.1} parent=131 // pred_fallthru
          _
        // Predicated region
        $region145: #{discriminator_stft_forward.1} parent=131 // pred_check
          %p4344 = pneg %p436
        $region146: #{discriminator_stft_forward.1} parent=131 // pred_check_branch
          %4346 = sbr.rel (%p4344) target = $region148
        $region147: #{discriminator_stft_forward.1} parent=131 // pred_region
          %p4347 = scmp.lt.s32.totalorder %s36, 1
          %s4348 = scalar_select %p4347, %s36, 1
          %s4349 = smul.addr %s4348, 2
          %s4350 = smul.addr %s4349, 8
          %s4351 = scalar_lea.vmem %s17, %s4350
        $region148: #{discriminator_stft_forward.1} parent=131 // pred_fallthru
          _
        // Predicated region
        $region149: #{discriminator_stft_forward.1} parent=131 // pred_check
          %p4352 = pneg %p462
        $region150: #{discriminator_stft_forward.1} parent=131 // pred_check_branch
          %4354 = sbr.rel (%p4352) target = $region152
        $region151: #{discriminator_stft_forward.1} parent=131 // pred_region
          %p4355 = scmp.lt.s32.totalorder %s36, 1
          %s4356 = scalar_select %p4355, %s36, 1
          %s4357 = smul.addr %s4356, 2
          %s4358 = smul.addr %s4357, 8
          %s4359 = scalar_lea.vmem %s18, %s4358
        $region152: #{discriminator_stft_forward.1} parent=131 // pred_fallthru
          _
        // Predicated region
        $region153: #{discriminator_stft_forward.1} parent=131 // pred_check
          %p4360 = pneg %p488
        $region154: #{discriminator_stft_forward.1} parent=131 // pred_check_branch
          %4362 = sbr.rel (%p4360) target = $region156
        $region155: #{discriminator_stft_forward.1} parent=131 // pred_region
          %p4363 = scmp.lt.s32.totalorder %s36, 1
          %s4364 = scalar_select %p4363, %s36, 1
          %s4365 = smul.addr %s4364, 2
          %s4366 = smul.addr %s4365, 8
          %s4367 = scalar_lea.vmem %s19, %s4366
        $region156: #{discriminator_stft_forward.1} parent=131 // pred_fallthru
          _
      $region132: #{discriminator_stft_forward.1} parent=5 // pred_fallthru
        _
    $region6: #{discriminator_stft_forward.1} parent=1 // loop_footer
      %s34 = sadd.s32 1, %s30
    $region7: #{discriminator_stft_forward.1} parent=1 // loop_footer_branch
      %29 = sbr.rel target = $region3
    $region8: #{discriminator_stft_forward.1} parent=1 // loop_exit
      _
    %4368 = vsyncpa [#allocation3], 1
    %s4369 = scalar_lea.sflag [#allocation3], 1
    %4370 = vsyncpa %s4369, 1
    %4371 = vsyncpa [#allocation5], 1
    %4372 = vsyncpa [#allocation8], 1
    %4373 = vsyncpa [#allocation11], 1

</llo_original>
